<compile_context>
chip_gen: v7x
topology: tpu7x:2x2x1
jax: 0.10.0
libtpu: 0.0.40
codegen_flags: <defaults>
</compile_context>

<pallas_src>
import functools
import math

import numpy as np

import jax
import jax.numpy as jnp
from jax.experimental import pallas as pl
from jax.experimental.pallas import tpu as pltpu

_EPS = 1e-6
_LOG1P_EPS = math.log1p(_EPS)
_PACK_MAX_C = 32                       # pack rows into lanes when C <= this
_VMEM_TEMP_BUDGET = 20 * 1024 * 1024   # target bytes of live in-kernel temps


def _round_up(x, m):
    return ((x + m - 1) // m) * m


def _choose_pack(n, c):
    """Rows packed per lane-row.  g must divide n so the (N,C)->(N/g, g*C)
    reshape is free (no padded HBM copy); falls back to g=1 otherwise."""
    if c > _PACK_MAX_C:
        return 1
    g_max = max(1, 128 // c)
    for g in range(g_max, 0, -1):
        if n % g == 0:
            return g
    return 1


def _choose_tile_m(m_rows, w, itemsize):
    # Per-packed-row VMEM footprint estimate: ~6 live (tile_m, W) f32 temps,
    # ~10 (tile_m, g) per-segment temps (lane dim pads to 128 -> 512 B/row),
    # plus the double-buffered native-dtype input block.
    per_row = 6 * 4 * w + 10 * 512 + 2 * itemsize * w
    t = _VMEM_TEMP_BUDGET // max(1, per_row)
    t = max(32, (t // 32) * 32)
    return min(t, _round_up(m_rows, 32))


def _mpu_loss_kernel(x_ref, lab_ref, prior_ref, idx_ref, wseg_ref, wsegt_ref,
                     out_ref, *, num_class, g, tile_m, m_valid):
    """Per-tile partial sums for MPULoss_V2 on a lane-packed (tile_m, g*C) block.

    Emits 8 scalars per grid step (SMEM row):
      [0] sum_U log(denom)            [1] sum_P log(denom)
      [2] sum_U dot(log(d(1+eps)-ex), idx)   [3] same over P rows
      [4] sum_P neglog@label * prior@label   [5] sum_P prior@label
      [6] sum_P (log(denom) - (x@label - max))   (cross-entropy numerator)
      [7] number of valid positive rows
    """
    C = num_class
    W = g * C
    f32 = jnp.float32

    def seg_sum(v):
        # Sum within each C-wide lane segment: (tile_m, W) -> (tile_m, g).
        # Packed case uses the idle MXU; unpacked (g==1) keeps the cheap
        # lane reduce (a (C,1) MXU operand would pad lanes 128x in VMEM).
        if g == 1:
            return jnp.sum(v, axis=1, keepdims=True)
        return jnp.dot(v, wseg_ref[...], preferred_element_type=f32,
                       precision=jax.lax.Precision.HIGHEST)

    def seg_expand(v):
        # Replicate per-segment values back over the segment's C lanes.
        if g == 1:
            return v
        return jnp.dot(v, wsegt_ref[...], preferred_element_type=f32,
                       precision=jax.lax.Precision.HIGHEST)

    # ---- validity of packed rows (ragged last block; inputs are unpadded) --
    row = (pl.program_id(0) * tile_m
           + jax.lax.broadcasted_iota(jnp.int32, (tile_m, 1), 0))
    valid = row < m_valid                                        # (tile_m, 1)

    # Sanitize garbage rows of the partial block before any exp/log.
    x = jnp.where(valid, x_ref[...].astype(f32), 0.0)            # (tile_m, W)
    lab = lab_ref[...]                                           # (tile_m, g)

    p_f = jnp.logical_and(valid, lab <= (C - 1)).astype(f32)     # positives
    u_f = jnp.logical_and(valid, lab > (C - 1)).astype(f32)      # unlabeled

    pos = jax.lax.broadcasted_iota(jnp.int32, (1, W), 1) % C     # class per lane

    # ---- per-segment max -----------------------------------------------------
    if g == 1:
        m_full = jnp.max(x, axis=1, keepdims=True)
    else:
        # Masked cyclic-roll butterfly: ceil(log2(C)) steps, values never leak
        # across segment boundaries (wrap stays inside the segment).
        t = x
        s = 1
        while s < C:
            a = jnp.roll(t, s, axis=1)        # value of lane j - s
            b = jnp.roll(t, s - C, axis=1)    # cyclic wrap inside the segment
            t = jnp.maximum(t, jnp.where(pos >= s, a, b))
            s *= 2
        m_full = t                                               # (tile_m, W)

    xm = x - m_full
    ex = jnp.exp(xm)                                             # (tile_m, W)
    denom = seg_sum(ex)                                          # (tile_m, g)
    log_denom = jnp.log(denom)
    den_eps = seg_expand(denom) * (1.0 + _EPS)

    # -log(1 - softmax + eps) == log(denom) - log(denom*(1+eps) - ex).
    # The log(denom)*sum(indexlist) part is hoisted to the wrapper; only the
    # idx-weighted log term is reduced here.
    lmat = jnp.log(den_eps - ex)                                 # (tile_m, W)
    d = seg_sum(lmat * idx_ref[...])                             # (tile_m, g)

    # ---- label-column picks without materializing a one-hot ----------------
    lab_f = lab.astype(f32)
    lab_rep = lab_f if g == 1 else jnp.dot(
        lab_f, wsegt_ref[...], preferred_element_type=f32,
        precision=jax.lax.Precision.HIGHEST)                    # exact 0/1 picks
    sel = pos.astype(f32) == lab_rep                             # (tile_m, W)
    xm_at = seg_sum(jnp.where(sel, xm, 0.0))                     # logit@label - m
    prior_at = seg_sum(jnp.where(sel, prior_ref[...], 0.0))      # prior@label
    ex_at = jnp.exp(xm_at)
    neglog_at = log_denom - jnp.log(denom * (1.0 + _EPS) - ex_at)

    # ---- per-tile scalar partials -------------------------------------------
    out_ref[0, 0] = jnp.sum(log_denom * u_f)
    out_ref[0, 1] = jnp.sum(log_denom * p_f)
    out_ref[0, 2] = jnp.sum(d * u_f)
    out_ref[0, 3] = jnp.sum(d * p_f)
    out_ref[0, 4] = jnp.sum(neglog_at * prior_at * p_f)
    out_ref[0, 5] = jnp.sum(prior_at * p_f)
    out_ref[0, 6] = jnp.sum((log_denom - xm_at) * p_f)
    out_ref[0, 7] = jnp.sum(p_f)


def mpu_loss_v2(outputs, labels, priorlist, indexlist, *, num_class, pu_w):
    """JAX/Pallas equivalent of MPULoss_V2.forward.

    outputs:   (N, C) logits, C == num_class (any float dtype; upcast in-kernel)
    labels:    (N,)   class ids in [0, 2*num_class)
    priorlist: (C,)   class priors
    indexlist: (L,)   L == C (multi-hot) or L == 1 (broadcast), matching the
                      PyTorch broadcasting semantics.
    """
    N, C = outputs.shape
    L = int(indexlist.shape[0])
    need_pu1 = num_class > L

    g = _choose_pack(N, C)
    W = g * C
    M = N // g
    tile_m = _choose_tile_m(M, W, outputs.dtype.itemsize)
    num_tiles = pl.cdiv(M, tile_m)

    # Free metadata-only reshapes (g divides N): no padded copy of the logits.
    x = outputs.reshape(M, W)
    lab = labels.astype(jnp.int32).reshape(M, g)

    prior_row = priorlist.astype(jnp.float32).reshape(1, C)
    if L == C:
        idx_row = indexlist.astype(jnp.float32).reshape(1, C)
    else:
        idx_row = jnp.broadcast_to(
            indexlist.astype(jnp.float32).reshape(1, L), (1, C))
    prior_w = jnp.tile(prior_row, (1, g))                        # (1, W)
    idx_w = jnp.tile(idx_row, (1, g))                            # (1, W)

    if g > 1:
        seg = np.arange(W) // C
        w_seg = (seg[:, None] == np.arange(g)[None, :]).astype(np.float32)
        w_segt = np.ascontiguousarray(w_seg.T)
    else:  # unused dummies (kernel skips them statically when g == 1)
        w_seg = np.zeros((1, 1), np.float32)
        w_segt = np.zeros((1, 1), np.float32)

    kernel = functools.partial(_mpu_loss_kernel, num_class=num_class, g=g,
                               tile_m=tile_m, m_valid=M)

    partials = pl.pallas_call(
        kernel,
        out_shape=jax.ShapeDtypeStruct((num_tiles, 8), jnp.float32),
        grid=(num_tiles,),
        in_specs=[
            pl.BlockSpec((tile_m, W), lambda i: (i, 0)),   # packed logits tile
            pl.BlockSpec((tile_m, g), lambda i: (i, 0)),   # packed labels tile
            pl.BlockSpec((1, W), lambda i: (0, 0)),        # prior, tiled per seg
            pl.BlockSpec((1, W), lambda i: (0, 0)),        # indexlist, tiled
            pl.BlockSpec(w_seg.shape, lambda i: (0, 0)),   # segment-sum matrix
            pl.BlockSpec(w_segt.shape, lambda i: (0, 0)),  # segment-bcast matrix
        ],
        out_specs=pl.BlockSpec((1, 8), lambda i: (i, 0),
                               memory_space=pltpu.SMEM),
        compiler_params=pltpu.CompilerParams(
            dimension_semantics=("parallel",),
            vmem_limit_bytes=48 * 1024 * 1024),
    )(x, lab, prior_w, idx_w, w_seg, w_segt)

    totals = jnp.sum(partials, axis=0)
    ld_u, ld_p, d_u, d_p, b_p, pa_p, ce_sum, n_p = (totals[i] for i in range(8))
    n_u = jnp.float32(N) - n_p

    s_idx = jnp.sum(idx_row)                   # sum of the broadcast indexlist
    prior_sum = jnp.sum(prior_row)

    # pu3 over unlabeled rows
    sum_u3 = s_idx * ld_u - d_u
    pu = sum_u3 / jnp.maximum(1.0, n_u) / float(L)

    # pu1 (static condition, matches `if self.numClass > len(indexlist)`)
    if need_pu1:
        prior_sel = priorlist[indexlist[0].astype(jnp.int32)]
        sum_p1 = s_idx * ld_p - d_p
        pu = pu + (sum_p1 * prior_sel / jnp.maximum(1.0, n_p)
                   / float(num_class - L))

    # pu2 over positive rows
    sum_p2 = b_p - _LOG1P_EPS * (prior_sum * n_p - pa_p)
    pu = pu - sum_p2 / jnp.maximum(1.0, n_p)

    # cross entropy (mean over positive samples)
    # TODO(synk): PyTorch's CrossEntropyLoss returns NaN when there are zero
    # positive rows; here the divisor is guarded with max(1, nP) instead.
    crossloss = ce_sum / jnp.maximum(1.0, n_p)

    pu_loss_w = jnp.reshape(pu * pu_w, (1,))   # torch PULoss has shape (1,)
    objective = pu_loss_w + crossloss
    return objective, pu_loss_w, crossloss


def _pure_jax_reference(outputs, labels, priorlist, indexlist, num_class, pu_w):
    eps = 1e-6
    x = outputs.astype(jnp.float32)
    soft = jax.nn.softmax(x, axis=1)
    p_mask = (labels <= num_class - 1).astype(jnp.float32)[:, None]
    u_mask = 1.0 - p_mask
    L = int(indexlist.shape[0])
    idx = jnp.broadcast_to(indexlist.reshape(1, -1), (1, x.shape[1]))
    neglog = -jnp.log(1.0 - soft + eps)
    sum_u3 = jnp.sum(jnp.sum(neglog * idx, axis=1, keepdims=True) * u_mask)
    n_p = jnp.sum(p_mask)
    n_u = x.shape[0] - n_p
    pu = sum_u3 / jnp.maximum(1.0, n_u) / L
    if num_class > L:
        prior_sel = priorlist[indexlist[0].astype(jnp.int32)]
        sum_p1 = jnp.sum(jnp.sum(neglog * idx, axis=1, keepdims=True) * p_mask)
        pu = pu + sum_p1 * prior_sel / jnp.maximum(1.0, n_p) / (num_class - L)
    onehot = jax.nn.one_hot(labels, x.shape[1], dtype=jnp.float32)
    log_res = -jnp.log(1.0 - soft * onehot + eps)
    sum_p2 = jnp.sum(jnp.sum(log_res * priorlist[None, :], axis=1,
                             keepdims=True) * p_mask)
    pu = pu - sum_p2 / jnp.maximum(1.0, n_p)
    lse = jax.nn.logsumexp(x, axis=1, keepdims=True)
    ce = jnp.sum((lse - jnp.sum(x * onehot, axis=1, keepdims=True)) * p_mask)
    ce = ce / jnp.maximum(1.0, n_p)
    puw = jnp.reshape(pu * pu_w, (1,))
    return puw + ce, puw, ce


if __name__ == "__main__":
    key = jax.random.PRNGKey(0)
    k0, k1, k2, k3 = jax.random.split(key, 4)
    PU_W = 0.5

    # --- small-C cases: exercise the lane-packed path (g = 8, 10, 32) -------
    K = 4
    priorlist = jnp.array([0.1, 0.2, 0.3, 0.4], dtype=jnp.float32)
    indexlist = jnp.array([1.0, 0.0, 1.0, 0.0], dtype=jnp.float32)  # multi-hot

    cases = []
    labels1 = jnp.array([0, 5, 2, 7, 1, 6, 3, 4], dtype=jnp.int32)
    cases.append((jax.random.normal(k0, (8, K), jnp.float32), labels1))
    labels2 = jnp.array([0, 5, 2, 7, 1, 6, 3, 4, 0, 7], dtype=jnp.int32)
    cases.append((jax.random.normal(k1, (10, K), jnp.float32), labels2))
    labels3 = jax.random.randint(k2, (64,), 0, 2 * K).astype(jnp.int32)
    cases.append((jax.random.normal(k2, (64, K), jnp.float32), labels3))

    for outputs, labels in cases:
        got = mpu_loss_v2(outputs, labels, priorlist, indexlist,
                          num_class=K, pu_w=PU_W)
        jax.block_until_ready(got)
        want = _pure_jax_reference(outputs, labels, priorlist, indexlist,
                                   K, PU_W)
        for a, b in zip(got, want):
            assert jnp.allclose(a, b, rtol=2e-3, atol=2e-4), (a, b)

    # --- larger-C case (unpacked path) with L == 1 so the pu1 branch runs ----
    K2 = 40
    prior2 = jnp.arange(K2, dtype=jnp.float32) + 1.0
    prior2 = prior2 / jnp.sum(prior2)
    index2 = jnp.array([3.0], dtype=jnp.float32)
    outputs4 = jax.random.normal(k3, (16, K2), jnp.float32)
    labels4 = (jnp.arange(16, dtype=jnp.int32) * 5) % (2 * K2)
    got = mpu_loss_v2(outputs4, labels4, prior2, index2,
                      num_class=K2, pu_w=PU_W)
    jax.block_until_ready(got)
    want = _pure_jax_reference(outputs4, labels4, prior2, index2, K2, PU_W)
    for a, b in zip(got, want):
        assert jnp.allclose(a, b, rtol=2e-3, atol=2e-4), (a, b)

    print("KERNEL_OK")
</pallas_src>

<mosaic_0001>
module attributes {stable_mosaic.version = 11 : i64} {
  func.func @_mpu_loss_kernel(%arg0: i32, %arg1: memref<32x32xf32, #tpu.memory_space<vmem>>, %arg2: memref<32x8xi32, #tpu.memory_space<vmem>>, %arg3: memref<1x32xf32, #tpu.memory_space<vmem>>, %arg4: memref<1x32xf32, #tpu.memory_space<vmem>>, %arg5: memref<32x8xf32, #tpu.memory_space<vmem>>, %arg6: memref<8x32xf32, #tpu.memory_space<vmem>>, %arg7: memref<1x8xf32, #tpu.memory_space<smem>>) attributes {dimension_semantics = [#tpu.dimension_semantics<parallel>], iteration_bounds = array<i64: 1>, scalar_prefetch = 0 : i64, scratch_operands = 0 : i64, tpu.core_type = #tpu.core_type<tc>, window_params = [{transform_indices = @transform_0, window_bounds = array<i64: 32, 32>}, {transform_indices = @transform_1, window_bounds = array<i64: 32, 8>}, {pipeline_mode = #tpu.pipeline_mode<synchronous>, transform_indices = @transform_2, window_bounds = array<i64: 1, 32>}, {pipeline_mode = #tpu.pipeline_mode<synchronous>, transform_indices = @transform_3, window_bounds = array<i64: 1, 32>}, {pipeline_mode = #tpu.pipeline_mode<synchronous>, transform_indices = @transform_4, window_bounds = array<i64: 32, 8>}, {pipeline_mode = #tpu.pipeline_mode<synchronous>, transform_indices = @transform_5, window_bounds = array<i64: 8, 32>}, {transform_indices = @transform_6, window_bounds = array<i64: 1, 8>}]} {
    %c32_i32 = arith.constant 32 : i32
    %0 = arith.muli %arg0, %c32_i32 : i32
    %1 = tpu.iota {dimensions = array<i32: 0>} : vector<32x1xi32>
    %2 = vector.broadcast %0 : i32 to vector<32x1xi32>
    %3 = arith.addi %2, %1 : vector<32x1xi32>
    %c1_i32 = arith.constant 1 : i32
    %4 = vector.broadcast %c1_i32 : i32 to vector<32x1xi32>
    %5 = arith.cmpi slt, %3, %4 : vector<32x1xi32>
    %c0 = arith.constant 0 : index
    %c0_0 = arith.constant 0 : index
    %6 = vector.load %arg1[%c0, %c0_0] : memref<32x32xf32, #tpu.memory_space<vmem>>, vector<32x32xf32>
    %cst = arith.constant 0.000000e+00 : f32
    %7 = vector.shape_cast %5 : vector<32x1xi1> to vector<32x1xi1>
    %8 = vector.broadcast %7 : vector<32x1xi1> to vector<32x32xi1>
    %9 = vector.broadcast %cst : f32 to vector<32x32xf32>
    %10 = arith.select %8, %6, %9 : vector<32x32xi1>, vector<32x32xf32>
    %c0_1 = arith.constant 0 : index
    %c0_2 = arith.constant 0 : index
    %11 = vector.load %arg2[%c0_1, %c0_2] : memref<32x8xi32, #tpu.memory_space<vmem>>, vector<32x8xi32>
    %c3_i32 = arith.constant 3 : i32
    %12 = vector.broadcast %c3_i32 : i32 to vector<32x8xi32>
    %13 = arith.cmpi sle, %11, %12 : vector<32x8xi32>
    %14 = vector.broadcast %5 : vector<32x1xi1> to vector<32x8xi1>
    %15 = arith.andi %14, %13 : vector<32x8xi1>
    %16 = arith.extui %15 : vector<32x8xi1> to vector<32x8xi32>
    %17 = arith.sitofp %16 : vector<32x8xi32> to vector<32x8xf32>
    %c3_i32_3 = arith.constant 3 : i32
    %18 = vector.broadcast %c3_i32_3 : i32 to vector<32x8xi32>
    %19 = arith.cmpi sgt, %11, %18 : vector<32x8xi32>
    %20 = vector.broadcast %5 : vector<32x1xi1> to vector<32x8xi1>
    %21 = arith.andi %20, %19 : vector<32x8xi1>
    %22 = arith.extui %21 : vector<32x8xi1> to vector<32x8xi32>
    %23 = arith.sitofp %22 : vector<32x8xi32> to vector<32x8xf32>
    %24 = tpu.iota {dimensions = array<i32: 1>} : vector<1x32xi32>
    %c4_i32 = arith.constant 4 : i32
    %c0_i32 = arith.constant 0 : i32
    %25 = arith.cmpi eq, %c4_i32, %c0_i32 : i32
    %c1_i32_4 = arith.constant 1 : i32
    %26 = arith.select %25, %c1_i32_4, %c4_i32 : i32
    %27 = vector.broadcast %26 : i32 to vector<1x32xi32>
    %28 = arith.remsi %24, %27 : vector<1x32xi32>
    %c0_i32_5 = arith.constant 0 : i32
    %29 = vector.broadcast %c0_i32_5 : i32 to vector<1x32xi32>
    %30 = arith.cmpi ne, %28, %29 : vector<1x32xi32>
    %c0_i32_6 = arith.constant 0 : i32
    %31 = vector.broadcast %c0_i32_6 : i32 to vector<1x32xi32>
    %32 = arith.cmpi slt, %28, %31 : vector<1x32xi32>
    %c0_i32_7 = arith.constant 0 : i32
    %33 = arith.cmpi slt, %26, %c0_i32_7 : i32
    %34 = vector.broadcast %33 : i1 to vector<1x32xi1>
    %35 = vector.broadcast %34 : vector<1x32xi1> to vector<1x32xi1>
    %36 = arith.xori %32, %35 : vector<1x32xi1>
    %37 = arith.andi %36, %30 : vector<1x32xi1>
    %38 = vector.broadcast %26 : i32 to vector<1x32xi32>
    %39 = arith.addi %28, %38 : vector<1x32xi32>
    %40 = arith.select %37, %39, %28 : vector<1x32xi1>, vector<1x32xi32>
    %41 = vector.extract_strided_slice %10 {offsets = [0, 31], sizes = [32, 1], strides = [1, 1]} : vector<32x32xf32> to vector<32x1xf32>
    %42 = vector.extract_strided_slice %10 {offsets = [0, 0], sizes = [32, 31], strides = [1, 1]} : vector<32x32xf32> to vector<32x31xf32>
    %43 = tpu.concatenate %41, %42 in 1 : vector<32x1xf32>, vector<32x31xf32> -> vector<32x32xf32>
    %44 = vector.extract_strided_slice %10 {offsets = [0, 3], sizes = [32, 29], strides = [1, 1]} : vector<32x32xf32> to vector<32x29xf32>
    %45 = vector.extract_strided_slice %10 {offsets = [0, 0], sizes = [32, 3], strides = [1, 1]} : vector<32x32xf32> to vector<32x3xf32>
    %46 = tpu.concatenate %44, %45 in 1 : vector<32x29xf32>, vector<32x3xf32> -> vector<32x32xf32>
    %c1_i32_8 = arith.constant 1 : i32
    %47 = vector.broadcast %c1_i32_8 : i32 to vector<1x32xi32>
    %48 = arith.cmpi sge, %40, %47 : vector<1x32xi32>
    %49 = vector.shape_cast %48 : vector<1x32xi1> to vector<1x32xi1>
    %50 = vector.broadcast %49 : vector<1x32xi1> to vector<32x32xi1>
    %51 = arith.select %50, %43, %46 : vector<32x32xi1>, vector<32x32xf32>
    %52 = arith.maximumf %10, %51 : vector<32x32xf32>
    %53 = vector.extract_strided_slice %52 {offsets = [0, 30], sizes = [32, 2], strides = [1, 1]} : vector<32x32xf32> to vector<32x2xf32>
    %54 = vector.extract_strided_slice %52 {offsets = [0, 0], sizes = [32, 30], strides = [1, 1]} : vector<32x32xf32> to vector<32x30xf32>
    %55 = tpu.concatenate %53, %54 in 1 : vector<32x2xf32>, vector<32x30xf32> -> vector<32x32xf32>
    %56 = vector.extract_strided_slice %52 {offsets = [0, 2], sizes = [32, 30], strides = [1, 1]} : vector<32x32xf32> to vector<32x30xf32>
    %57 = vector.extract_strided_slice %52 {offsets = [0, 0], sizes = [32, 2], strides = [1, 1]} : vector<32x32xf32> to vector<32x2xf32>
    %58 = tpu.concatenate %56, %57 in 1 : vector<32x30xf32>, vector<32x2xf32> -> vector<32x32xf32>
    %c2_i32 = arith.constant 2 : i32
    %59 = vector.broadcast %c2_i32 : i32 to vector<1x32xi32>
    %60 = arith.cmpi sge, %40, %59 : vector<1x32xi32>
    %61 = vector.shape_cast %60 : vector<1x32xi1> to vector<1x32xi1>
    %62 = vector.broadcast %61 : vector<1x32xi1> to vector<32x32xi1>
    %63 = arith.select %62, %55, %58 : vector<32x32xi1>, vector<32x32xf32>
    %64 = arith.maximumf %52, %63 : vector<32x32xf32>
    %65 = arith.subf %10, %64 : vector<32x32xf32>
    %66 = math.exp %65 : vector<32x32xf32>
    %c0_9 = arith.constant 0 : index
    %c0_10 = arith.constant 0 : index
    %67 = vector.load %arg5[%c0_9, %c0_10] : memref<32x8xf32, #tpu.memory_space<vmem>>, vector<32x8xf32>
    %cst_11 = arith.constant dense<0.000000e+00> : vector<32x8xf32>
    %68 = tpu.matmul %66, %67, %cst_11 {dimension_numbers = #tpu.dot_dimension_numbers<[1], [0], [0], [1], [0, 0, 1, 1], [], []>, precision = #tpu.contract_precision<fp32>} : vector<32x32xf32>, vector<32x8xf32>, vector<32x8xf32> -> vector<32x8xf32>
    %69 = math.log %68 : vector<32x8xf32>
    %c0_12 = arith.constant 0 : index
    %c0_13 = arith.constant 0 : index
    %70 = vector.load %arg6[%c0_12, %c0_13] : memref<8x32xf32, #tpu.memory_space<vmem>>, vector<8x32xf32>
    %cst_14 = arith.constant dense<0.000000e+00> : vector<32x32xf32>
    %71 = tpu.matmul %68, %70, %cst_14 {dimension_numbers = #tpu.dot_dimension_numbers<[1], [0], [0], [1], [0, 0, 1, 1], [], []>, precision = #tpu.contract_precision<fp32>} : vector<32x8xf32>, vector<8x32xf32>, vector<32x32xf32> -> vector<32x32xf32>
    %cst_15 = arith.constant 1.00000095 : f32
    %72 = vector.broadcast %cst_15 : f32 to vector<32x32xf32>
    %73 = arith.mulf %71, %72 : vector<32x32xf32>
    %74 = arith.subf %73, %66 : vector<32x32xf32>
    %75 = math.log %74 : vector<32x32xf32>
    %c0_16 = arith.constant 0 : index
    %c0_17 = arith.constant 0 : index
    %76 = vector.load %arg4[%c0_16, %c0_17] : memref<1x32xf32, #tpu.memory_space<vmem>>, vector<1x32xf32>
    %77 = vector.broadcast %76 : vector<1x32xf32> to vector<32x32xf32>
    %78 = arith.mulf %75, %77 : vector<32x32xf32>
    %c0_18 = arith.constant 0 : index
    %c0_19 = arith.constant 0 : index
    %79 = vector.load %arg5[%c0_18, %c0_19] : memref<32x8xf32, #tpu.memory_space<vmem>>, vector<32x8xf32>
    %cst_20 = arith.constant dense<0.000000e+00> : vector<32x8xf32>
    %80 = tpu.matmul %78, %79, %cst_20 {dimension_numbers = #tpu.dot_dimension_numbers<[1], [0], [0], [1], [0, 0, 1, 1], [], []>, precision = #tpu.contract_precision<fp32>} : vector<32x32xf32>, vector<32x8xf32>, vector<32x8xf32> -> vector<32x8xf32>
    %81 = arith.sitofp %11 : vector<32x8xi32> to vector<32x8xf32>
    %c0_21 = arith.constant 0 : index
    %c0_22 = arith.constant 0 : index
    %82 = vector.load %arg6[%c0_21, %c0_22] : memref<8x32xf32, #tpu.memory_space<vmem>>, vector<8x32xf32>
    %cst_23 = arith.constant dense<0.000000e+00> : vector<32x32xf32>
    %83 = tpu.matmul %81, %82, %cst_23 {dimension_numbers = #tpu.dot_dimension_numbers<[1], [0], [0], [1], [0, 0, 1, 1], [], []>, precision = #tpu.contract_precision<fp32>} : vector<32x8xf32>, vector<8x32xf32>, vector<32x32xf32> -> vector<32x32xf32>
    %84 = arith.sitofp %40 : vector<1x32xi32> to vector<1x32xf32>
    %85 = vector.broadcast %84 : vector<1x32xf32> to vector<32x32xf32>
    %86 = arith.cmpf oeq, %85, %83 : vector<32x32xf32>
    %cst_24 = arith.constant 0.000000e+00 : f32
    %87 = vector.broadcast %cst_24 : f32 to vector<32x32xf32>
    %88 = arith.select %86, %65, %87 : vector<32x32xi1>, vector<32x32xf32>
    %c0_25 = arith.constant 0 : index
    %c0_26 = arith.constant 0 : index
    %89 = vector.load %arg5[%c0_25, %c0_26] : memref<32x8xf32, #tpu.memory_space<vmem>>, vector<32x8xf32>
    %cst_27 = arith.constant dense<0.000000e+00> : vector<32x8xf32>
    %90 = tpu.matmul %88, %89, %cst_27 {dimension_numbers = #tpu.dot_dimension_numbers<[1], [0], [0], [1], [0, 0, 1, 1], [], []>, precision = #tpu.contract_precision<fp32>} : vector<32x32xf32>, vector<32x8xf32>, vector<32x8xf32> -> vector<32x8xf32>
    %c0_28 = arith.constant 0 : index
    %c0_29 = arith.constant 0 : index
    %91 = vector.load %arg3[%c0_28, %c0_29] : memref<1x32xf32, #tpu.memory_space<vmem>>, vector<1x32xf32>
    %cst_30 = arith.constant 0.000000e+00 : f32
    %92 = vector.shape_cast %91 : vector<1x32xf32> to vector<1x32xf32>
    %93 = vector.broadcast %92 : vector<1x32xf32> to vector<32x32xf32>
    %94 = vector.broadcast %cst_30 : f32 to vector<32x32xf32>
    %95 = arith.select %86, %93, %94 : vector<32x32xi1>, vector<32x32xf32>
    %c0_31 = arith.constant 0 : index
    %c0_32 = arith.constant 0 : index
    %96 = vector.load %arg5[%c0_31, %c0_32] : memref<32x8xf32, #tpu.memory_space<vmem>>, vector<32x8xf32>
    %cst_33 = arith.constant dense<0.000000e+00> : vector<32x8xf32>
    %97 = tpu.matmul %95, %96, %cst_33 {dimension_numbers = #tpu.dot_dimension_numbers<[1], [0], [0], [1], [0, 0, 1, 1], [], []>, precision = #tpu.contract_precision<fp32>} : vector<32x32xf32>, vector<32x8xf32>, vector<32x8xf32> -> vector<32x8xf32>
    %98 = math.exp %90 : vector<32x8xf32>
    %cst_34 = arith.constant 1.00000095 : f32
    %99 = vector.broadcast %cst_34 : f32 to vector<32x8xf32>
    %100 = arith.mulf %68, %99 : vector<32x8xf32>
    %101 = arith.subf %100, %98 : vector<32x8xf32>
    %102 = math.log %101 : vector<32x8xf32>
    %103 = arith.subf %69, %102 : vector<32x8xf32>
    %104 = arith.mulf %69, %23 : vector<32x8xf32>
    %105 = vector.shape_cast %104 : vector<32x8xf32> to vector<1x32x8xf32>
    %cst_35 = arith.constant dense<0.000000e+00> : vector<1xf32>
    %106 = vector.multi_reduction <add>, %105, %cst_35 [1, 2] : vector<1x32x8xf32> to vector<1xf32>
    %107 = vector.shape_cast %106 : vector<1xf32> to vector<1x1x1xf32>
    %108 = vector.extract %107[0, 0, 0] : f32 from vector<1x1x1xf32>
    %c0_36 = arith.constant 0 : index
    %c0_37 = arith.constant 0 : index
    %109 = memref.load %arg7[%c0_36, %c0_37] : memref<1x8xf32, #tpu.memory_space<smem>>
    memref.store %108, %arg7[%c0_36, %c0_37] : memref<1x8xf32, #tpu.memory_space<smem>>
    %110 = arith.mulf %69, %17 : vector<32x8xf32>
    %111 = vector.shape_cast %110 : vector<32x8xf32> to vector<1x32x8xf32>
    %cst_38 = arith.constant dense<0.000000e+00> : vector<1xf32>
    %112 = vector.multi_reduction <add>, %111, %cst_38 [1, 2] : vector<1x32x8xf32> to vector<1xf32>
    %113 = vector.shape_cast %112 : vector<1xf32> to vector<1x1x1xf32>
    %114 = vector.extract %113[0, 0, 0] : f32 from vector<1x1x1xf32>
    %c0_39 = arith.constant 0 : index
    %c1 = arith.constant 1 : index
    %115 = memref.load %arg7[%c0_39, %c1] : memref<1x8xf32, #tpu.memory_space<smem>>
    memref.store %114, %arg7[%c0_39, %c1] : memref<1x8xf32, #tpu.memory_space<smem>>
    %116 = arith.mulf %80, %23 : vector<32x8xf32>
    %117 = vector.shape_cast %116 : vector<32x8xf32> to vector<1x32x8xf32>
    %cst_40 = arith.constant dense<0.000000e+00> : vector<1xf32>
    %118 = vector.multi_reduction <add>, %117, %cst_40 [1, 2] : vector<1x32x8xf32> to vector<1xf32>
    %119 = vector.shape_cast %118 : vector<1xf32> to vector<1x1x1xf32>
    %120 = vector.extract %119[0, 0, 0] : f32 from vector<1x1x1xf32>
    %c0_41 = arith.constant 0 : index
    %c2 = arith.constant 2 : index
    %121 = memref.load %arg7[%c0_41, %c2] : memref<1x8xf32, #tpu.memory_space<smem>>
    memref.store %120, %arg7[%c0_41, %c2] : memref<1x8xf32, #tpu.memory_space<smem>>
    %122 = arith.mulf %80, %17 : vector<32x8xf32>
    %123 = vector.shape_cast %122 : vector<32x8xf32> to vector<1x32x8xf32>
    %cst_42 = arith.constant dense<0.000000e+00> : vector<1xf32>
    %124 = vector.multi_reduction <add>, %123, %cst_42 [1, 2] : vector<1x32x8xf32> to vector<1xf32>
    %125 = vector.shape_cast %124 : vector<1xf32> to vector<1x1x1xf32>
    %126 = vector.extract %125[0, 0, 0] : f32 from vector<1x1x1xf32>
    %c0_43 = arith.constant 0 : index
    %c3 = arith.constant 3 : index
    %127 = memref.load %arg7[%c0_43, %c3] : memref<1x8xf32, #tpu.memory_space<smem>>
    memref.store %126, %arg7[%c0_43, %c3] : memref<1x8xf32, #tpu.memory_space<smem>>
    %128 = arith.mulf %103, %97 : vector<32x8xf32>
    %129 = arith.mulf %128, %17 : vector<32x8xf32>
    %130 = vector.shape_cast %129 : vector<32x8xf32> to vector<1x32x8xf32>
    %cst_44 = arith.constant dense<0.000000e+00> : vector<1xf32>
    %131 = vector.multi_reduction <add>, %130, %cst_44 [1, 2] : vector<1x32x8xf32> to vector<1xf32>
    %132 = vector.shape_cast %131 : vector<1xf32> to vector<1x1x1xf32>
    %133 = vector.extract %132[0, 0, 0] : f32 from vector<1x1x1xf32>
    %c0_45 = arith.constant 0 : index
    %c4 = arith.constant 4 : index
    %134 = memref.load %arg7[%c0_45, %c4] : memref<1x8xf32, #tpu.memory_space<smem>>
    memref.store %133, %arg7[%c0_45, %c4] : memref<1x8xf32, #tpu.memory_space<smem>>
    %135 = arith.mulf %97, %17 : vector<32x8xf32>
    %136 = vector.shape_cast %135 : vector<32x8xf32> to vector<1x32x8xf32>
    %cst_46 = arith.constant dense<0.000000e+00> : vector<1xf32>
    %137 = vector.multi_reduction <add>, %136, %cst_46 [1, 2] : vector<1x32x8xf32> to vector<1xf32>
    %138 = vector.shape_cast %137 : vector<1xf32> to vector<1x1x1xf32>
    %139 = vector.extract %138[0, 0, 0] : f32 from vector<1x1x1xf32>
    %c0_47 = arith.constant 0 : index
    %c5 = arith.constant 5 : index
    %140 = memref.load %arg7[%c0_47, %c5] : memref<1x8xf32, #tpu.memory_space<smem>>
    memref.store %139, %arg7[%c0_47, %c5] : memref<1x8xf32, #tpu.memory_space<smem>>
    %141 = arith.subf %69, %90 : vector<32x8xf32>
    %142 = arith.mulf %141, %17 : vector<32x8xf32>
    %143 = vector.shape_cast %142 : vector<32x8xf32> to vector<1x32x8xf32>
    %cst_48 = arith.constant dense<0.000000e+00> : vector<1xf32>
    %144 = vector.multi_reduction <add>, %143, %cst_48 [1, 2] : vector<1x32x8xf32> to vector<1xf32>
    %145 = vector.shape_cast %144 : vector<1xf32> to vector<1x1x1xf32>
    %146 = vector.extract %145[0, 0, 0] : f32 from vector<1x1x1xf32>
    %c0_49 = arith.constant 0 : index
    %c6 = arith.constant 6 : index
    %147 = memref.load %arg7[%c0_49, %c6] : memref<1x8xf32, #tpu.memory_space<smem>>
    memref.store %146, %arg7[%c0_49, %c6] : memref<1x8xf32, #tpu.memory_space<smem>>
    %148 = vector.shape_cast %17 : vector<32x8xf32> to vector<1x32x8xf32>
    %cst_50 = arith.constant dense<0.000000e+00> : vector<1xf32>
    %149 = vector.multi_reduction <add>, %148, %cst_50 [1, 2] : vector<1x32x8xf32> to vector<1xf32>
    %150 = vector.shape_cast %149 : vector<1xf32> to vector<1x1x1xf32>
    %151 = vector.extract %150[0, 0, 0] : f32 from vector<1x1x1xf32>
    %c0_51 = arith.constant 0 : index
    %c7 = arith.constant 7 : index
    %152 = memref.load %arg7[%c0_51, %c7] : memref<1x8xf32, #tpu.memory_space<smem>>
    memref.store %151, %arg7[%c0_51, %c7] : memref<1x8xf32, #tpu.memory_space<smem>>
    return
  }
  func.func @transform_0(%arg0: i32) -> (i32, i32) {
    %c0_i32 = arith.constant 0 : i32
    %c0_i32_0 = arith.constant 0 : i32
    return %arg0, %c0_i32 : i32, i32
  }
  func.func @transform_1(%arg0: i32) -> (i32, i32) {
    %c0_i32 = arith.constant 0 : i32
    %c0_i32_0 = arith.constant 0 : i32
    return %arg0, %c0_i32 : i32, i32
  }
  func.func @transform_2(%arg0: i32) -> (i32, i32) {
    %c0_i32 = arith.constant 0 : i32
    %c0_i32_0 = arith.constant 0 : i32
    %c0_i32_1 = arith.constant 0 : i32
    return %c0_i32, %c0_i32_0 : i32, i32
  }
  func.func @transform_3(%arg0: i32) -> (i32, i32) {
    %c0_i32 = arith.constant 0 : i32
    %c0_i32_0 = arith.constant 0 : i32
    %c0_i32_1 = arith.constant 0 : i32
    return %c0_i32, %c0_i32_0 : i32, i32
  }
  func.func @transform_4(%arg0: i32) -> (i32, i32) {
    %c0_i32 = arith.constant 0 : i32
    %c0_i32_0 = arith.constant 0 : i32
    %c0_i32_1 = arith.constant 0 : i32
    return %c0_i32, %c0_i32_0 : i32, i32
  }
  func.func @transform_5(%arg0: i32) -> (i32, i32) {
    %c0_i32 = arith.constant 0 : i32
    %c0_i32_0 = arith.constant 0 : i32
    %c0_i32_1 = arith.constant 0 : i32
    return %c0_i32, %c0_i32_0 : i32, i32
  }
  func.func @transform_6(%arg0: i32) -> (i32, i32) {
    %c0_i32 = arith.constant 0 : i32
    %c0_i32_0 = arith.constant 0 : i32
    return %arg0, %c0_i32 : i32, i32
  }
}

</mosaic_0001>

<llo_original>
// kernel: tpu_custom_call.1
$region0: #{tpu_custom_call.1}
  #allocation0 [shape = 'u32[]', space=smem, size = 0x4, offset = 0x4, fixed_abs, tag = 'smem constant byte address 0x4 - core index']
  #allocation1 [shape = 'u32[144,128]{1,0:T(1,128)}', space=vmem, size = 0x12000, scoped, tag = 'internal scratch']
  %s0 = inlined_call_operand.vmem [shape: f32[1,32], index: 0, kind: input, shape index: {}]
  %s1 = inlined_call_operand.vmem [shape: s32[1,8], index: 1, kind: input, shape index: {}]
  %s2 = inlined_call_operand.vmem [shape: f32[1,32], index: 2, kind: input, shape index: {}]
  %s3 = inlined_call_operand.vmem [shape: f32[1,32], index: 3, kind: input, shape index: {}]
  %s4 = inlined_call_operand.vmem [shape: f32[32,8], index: 4, kind: input, shape index: {}]
  %s5 = inlined_call_operand.vmem [shape: f32[8,32], index: 5, kind: input, shape index: {}]
  %s6 = inlined_call_operand.hbm [shape: f32[1,8], index: 6, kind: output, shape index: {}]
  %s7 = sld [smem:[#allocation0]]
  $region34: #{tpu_custom_call.1} parent=0
    _
  %s9 = ssub.s32 1, %s7
  %s10 = scalar_select 0, %s9, %s7
  $region1: #{tpu_custom_call.1} parent=0
    #allocation2 [shape = 'u8[512]{0}', space=smem, size = 0x200, scoped, tag = 'output window, operand 0, single buffered']
    #allocation3 [shape = 's32[1]{0}', space=sflag, size = 0x4, scoped, tag = 'scoped memory for tpu_custom_call.1']
    %11 = vsyncpa [#allocation3], 0
    // Predicated region
    $region2: #{tpu_custom_call.1} parent=1 // pred_check
      _
    $region3: #{tpu_custom_call.1} parent=1 // pred_check_branch
      %13 = sbr.rel (0) target = $region5
    $region4: #{tpu_custom_call.1} parent=1 // pred_region
      _
    $region5: #{tpu_custom_call.1} parent=1 // pred_fallthru
      _
    // Predicated region
    $region6: #{tpu_custom_call.1} parent=1 // pred_check
      _
    $region7: #{tpu_custom_call.1} parent=1 // pred_check_branch
      %15 = sbr.rel (0) target = $region9
    $region8: #{tpu_custom_call.1} parent=1 // pred_region
      _
    $region9: #{tpu_custom_call.1} parent=1 // pred_fallthru
      _
    // Predicated region
    $region10: #{tpu_custom_call.1} parent=1 // pred_check
      _
    $region11: #{tpu_custom_call.1} parent=1 // pred_check_branch
      %17 = sbr.rel (0) target = $region13
    $region12: #{tpu_custom_call.1} parent=1 // pred_region
      _
    $region13: #{tpu_custom_call.1} parent=1 // pred_fallthru
      _
    // Predicated region
    $region14: #{tpu_custom_call.1} parent=1 // pred_check
      _
    $region15: #{tpu_custom_call.1} parent=1 // pred_check_branch
      %19 = sbr.rel (0) target = $region17
    $region16: #{tpu_custom_call.1} parent=1 // pred_region
      _
    $region17: #{tpu_custom_call.1} parent=1 // pred_fallthru
      _
    // Predicated region
    $region18: #{tpu_custom_call.1} parent=1 // pred_check
      _
    $region19: #{tpu_custom_call.1} parent=1 // pred_check_branch
      %21 = sbr.rel (0) target = $region21
    $region20: #{tpu_custom_call.1} parent=1 // pred_region
      _
    $region21: #{tpu_custom_call.1} parent=1 // pred_fallthru
      _
    // Predicated region
    $region22: #{tpu_custom_call.1} parent=1 // pred_check
      _
    $region23: #{tpu_custom_call.1} parent=1 // pred_check_branch
      %23 = sbr.rel (0) target = $region25
    $region24: #{tpu_custom_call.1} parent=1 // pred_region
      _
    $region25: #{tpu_custom_call.1} parent=1 // pred_fallthru
      _
    %s24 = smul.u32 0, 32
    %v25 = vlaneseq
    %v26 = vshrl.u32 %v25, 7
    %v27 = vadd.s32 %v26, 8
    %v28 = vadd.s32 %v26, 16
    %v29 = vadd.s32 %v26, 24
    %v30 = vstv %s24
    %v31 = vadd.s32 %v30, %v26
    %v32 = vadd.s32 %v30, %v27
    %v33 = vadd.s32 %v30, %v28
    %v34 = vadd.s32 %v30, %v29
    %vm35 = vcmp.lt.s32.totalorder %v31, 1
    %vm36 = vcmp.lt.s32.totalorder %v32, 1
    %vm37 = vcmp.lt.s32.totalorder %v33, 1
    %vm38 = vcmp.lt.s32.totalorder %v34, 1
    %v39 = vld [vmem:[%s0] sm:$0xff]
    %v40 = vld [vmem:[%s0 + $0x8] sm:$0xff]
    %v41 = vld [vmem:[%s0 + $0x10] sm:$0xff]
    %v42 = vld [vmem:[%s0 + $0x18] sm:$0xff]
    %v43 = vsel %vm35, 1, 0
    %v44 = vsel %vm36, 1, 0
    %v45 = vsel %vm37, 1, 0
    %v46 = vsel %vm38, 1, 0
    %vm47 = vcmp.eq.s32.totalorder %v43, 1
    %vm48 = vcmp.eq.s32.totalorder %v44, 1
    %vm49 = vcmp.eq.s32.totalorder %v45, 1
    %vm50 = vcmp.eq.s32.totalorder %v46, 1
    %v51 = vsel %vm47, %v39, 0.0
    %v52 = vsel %vm48, %v40, 0.0
    %v53 = vsel %vm49, %v41, 0.0
    %v54 = vsel %vm50, %v42, 0.0
    %v55 = vld [vmem:[%s1] sm:$0xff]
    %v56 = vld [vmem:[%s1 + $0x8] sm:$0xff]
    %v57 = vld [vmem:[%s1 + $0x10] sm:$0xff]
    %v58 = vld [vmem:[%s1 + $0x18] sm:$0xff]
    %vm59 = vcmp.le.s32.totalorder %v55, 3
    %vm60 = vcmp.le.s32.totalorder %v56, 3
    %vm61 = vcmp.le.s32.totalorder %v57, 3
    %vm62 = vcmp.le.s32.totalorder %v58, 3
    %vm63 = vmand %vm47, %vm59
    %vm64 = vmand %vm48, %vm60
    %vm65 = vmand %vm49, %vm61
    %vm66 = vmand %vm50, %vm62
    %v67 = vsel %vm63, 1, 0
    %v68 = vsel %vm64, 1, 0
    %v69 = vsel %vm65, 1, 0
    %v70 = vsel %vm66, 1, 0
    %v71 = vcvt.s32.f32 %v67
    %v72 = vcvt.s32.f32 %v68
    %v73 = vcvt.s32.f32 %v69
    %v74 = vcvt.s32.f32 %v70
    %vm75 = vcmp.gt.s32.totalorder %v55, 3
    %vm76 = vcmp.gt.s32.totalorder %v56, 3
    %vm77 = vcmp.gt.s32.totalorder %v57, 3
    %vm78 = vcmp.gt.s32.totalorder %v58, 3
    %vm79 = vmand %vm47, %vm75
    %vm80 = vmand %vm48, %vm76
    %vm81 = vmand %vm49, %vm77
    %vm82 = vmand %vm50, %vm78
    %v83 = vsel %vm79, 1, 0
    %v84 = vsel %vm80, 1, 0
    %v85 = vsel %vm81, 1, 0
    %v86 = vsel %vm82, 1, 0
    %v87 = vcvt.s32.f32 %v83
    %v88 = vcvt.s32.f32 %v84
    %v89 = vcvt.s32.f32 %v85
    %v90 = vcvt.s32.f32 %v86
    %v91 = vlaneseq
    %v92 = vand.u32 %v91, 127
    %vm93 = vcmp.lt.s32.totalorder %v92, 0
    %v94 = vsub.s32 0, %v92
    %v95 = vsel %vm93, %v94, %v92
    %v96 = vshrl.u32 %v95, 2
    %v97 = vand.u32 %v95, 3
    %v98 = vsub.s32 0, %v97
    %v99 = vsel %vm93, %v98, %v97
    %vm100 = vcmp.ne.s32.totalorder %v99, 0
    %vm101 = vcmp.lt.s32.totalorder %v99, 0
    %vm102 = vmand %vm101, %vm100
    %v103 = vadd.s32 %v99, 4
    %v104 = vsel %vm102, %v103, %v99
    %109 = vrot.lane.b32.xlu0 %v51, 97
    %v110 = vpop.permute.xlu0 %109
    %111 = vrot.lane.b32.xlu0 %v52, 97
    %v112 = vpop.permute.xlu0 %111
    %113 = vrot.lane.b32.xlu0 %v53, 97
    %v114 = vpop.permute.xlu0 %113
    %115 = vrot.lane.b32.xlu0 %v54, 97
    %v116 = vpop.permute.xlu0 %115
    %121 = vrot.lane.b32.xlu0 %v51, 1
    %v122 = vpop.permute.xlu0 %121
    %123 = vrot.lane.b32.xlu0 %v52, 1
    %v124 = vpop.permute.xlu0 %123
    %125 = vrot.lane.b32.xlu0 %v53, 1
    %v126 = vpop.permute.xlu0 %125
    %127 = vrot.lane.b32.xlu0 %v54, 1
    %v128 = vpop.permute.xlu0 %127
    %vm133 = vcmask 7168
    %v134 = vsel %vm133, %v110, %v122
    %v135 = vsel %vm133, %v112, %v124
    %v136 = vsel %vm133, %v114, %v126
    %v137 = vsel %vm133, %v116, %v128
    %138 = vrot.lane.b32.xlu0 %v51, 125
    %v139 = vpop.permute.xlu0 %138
    %140 = vrot.lane.b32.xlu0 %v52, 125
    %v141 = vpop.permute.xlu0 %140
    %142 = vrot.lane.b32.xlu0 %v53, 125
    %v143 = vpop.permute.xlu0 %142
    %144 = vrot.lane.b32.xlu0 %v54, 125
    %v145 = vpop.permute.xlu0 %144
    %150 = vrot.lane.b32.xlu0 %v51, 29
    %v151 = vpop.permute.xlu0 %150
    %152 = vrot.lane.b32.xlu0 %v52, 29
    %v153 = vpop.permute.xlu0 %152
    %154 = vrot.lane.b32.xlu0 %v53, 29
    %v155 = vpop.permute.xlu0 %154
    %156 = vrot.lane.b32.xlu0 %v54, 29
    %v157 = vpop.permute.xlu0 %156
    %vm162 = vcmask 236544
    %v163 = vsel %vm162, %v139, %v151
    %v164 = vsel %vm162, %v141, %v153
    %v165 = vsel %vm162, %v143, %v155
    %v166 = vsel %vm162, %v145, %v157
    %vm167 = vcmp.ge.s32.totalorder %v104, 1
    %v168 = vsel %vm167, 1, 0
    %vm169 = vcmp.eq.s32.totalorder %v168, 1
    %v170 = vsel %vm169, %v134, %v163
    %v171 = vsel %vm169, %v135, %v164
    %v172 = vsel %vm169, %v136, %v165
    %v173 = vsel %vm169, %v137, %v166
    %v174 = vmax.f32 %v51, %v170
    %v175 = vmax.f32 %v52, %v171
    %v176 = vmax.f32 %v53, %v172
    %v177 = vmax.f32 %v54, %v173
    %182 = vrot.lane.b32.xlu0 %v174, 98
    %v183 = vpop.permute.xlu0 %182
    %184 = vrot.lane.b32.xlu0 %v175, 98
    %v185 = vpop.permute.xlu0 %184
    %186 = vrot.lane.b32.xlu0 %v176, 98
    %v187 = vpop.permute.xlu0 %186
    %188 = vrot.lane.b32.xlu0 %v177, 98
    %v189 = vpop.permute.xlu0 %188
    %194 = vrot.lane.b32.xlu0 %v174, 2
    %v195 = vpop.permute.xlu0 %194
    %196 = vrot.lane.b32.xlu0 %v175, 2
    %v197 = vpop.permute.xlu0 %196
    %198 = vrot.lane.b32.xlu0 %v176, 2
    %v199 = vpop.permute.xlu0 %198
    %200 = vrot.lane.b32.xlu0 %v177, 2
    %v201 = vpop.permute.xlu0 %200
    %vm206 = vcmask 15360
    %v207 = vsel %vm206, %v183, %v195
    %v208 = vsel %vm206, %v185, %v197
    %v209 = vsel %vm206, %v187, %v199
    %v210 = vsel %vm206, %v189, %v201
    %211 = vrot.lane.b32.xlu0 %v174, 126
    %v212 = vpop.permute.xlu0 %211
    %213 = vrot.lane.b32.xlu0 %v175, 126
    %v214 = vpop.permute.xlu0 %213
    %215 = vrot.lane.b32.xlu0 %v176, 126
    %v216 = vpop.permute.xlu0 %215
    %217 = vrot.lane.b32.xlu0 %v177, 126
    %v218 = vpop.permute.xlu0 %217
    %223 = vrot.lane.b32.xlu0 %v174, 30
    %v224 = vpop.permute.xlu0 %223
    %225 = vrot.lane.b32.xlu0 %v175, 30
    %v226 = vpop.permute.xlu0 %225
    %227 = vrot.lane.b32.xlu0 %v176, 30
    %v228 = vpop.permute.xlu0 %227
    %229 = vrot.lane.b32.xlu0 %v177, 30
    %v230 = vpop.permute.xlu0 %229
    %vm235 = vcmask 244736
    %v236 = vsel %vm235, %v212, %v224
    %v237 = vsel %vm235, %v214, %v226
    %v238 = vsel %vm235, %v216, %v228
    %v239 = vsel %vm235, %v218, %v230
    %vm240 = vcmp.ge.s32.totalorder %v104, 2
    %v241 = vsel %vm240, 1, 0
    %vm242 = vcmp.eq.s32.totalorder %v241, 1
    %v243 = vsel %vm242, %v207, %v236
    %v244 = vsel %vm242, %v208, %v237
    %v245 = vsel %vm242, %v209, %v238
    %v246 = vsel %vm242, %v210, %v239
    %v247 = vmax.f32 %v174, %v243
    %v248 = vmax.f32 %v175, %v244
    %v249 = vmax.f32 %v176, %v245
    %v250 = vmax.f32 %v177, %v246
    %v251 = vsub.f32 %v51, %v247
    %v252 = vsub.f32 %v52, %v248
    %v253 = vsub.f32 %v53, %v249
    %v254 = vsub.f32 %v54, %v250
    %v255 = vmul.f32 %v251, 1.442695
    %v256 = vpow.pop %v255
    %v257 = vmul.f32 %v252, 1.442695
    %v258 = vpow.pop %v257
    %v259 = vmul.f32 %v253, 1.442695
    %v260 = vpow.pop %v259
    %v261 = vmul.f32 %v254, 1.442695
    %v262 = vpow.pop %v261
    %v263 = vld [vmem:[%s4] sm:$0xff]
    %v264 = vld [vmem:[%s4 + $0x8] sm:$0xff]
    %v265 = vld [vmem:[%s4 + $0x10] sm:$0xff]
    %v266 = vld [vmem:[%s4 + $0x18] sm:$0xff]
    %vm267 = vcmask 261120
    %v269 = vsel %vm267, %v256, 0
    %v272 = vsel %vm267, %v258, 0
    %v275 = vsel %vm267, %v260, 0
    %v278 = vsel %vm267, %v262, 0
    %280 = vmatprep.subr.mxu0 0.0
    %v281 = vand.u32 %v263, 4294901760
    %282 = vmatpush1.msra.mxu0 %v281
    %283 = vmatprep.subr.mxu0 0.0
    %v284 = vand.u32 %v264, 4294901760
    %285 = vmatpush1.msra.mxu0 %v284
    %286 = vmatprep.subr.mxu0 0.0
    %v287 = vand.u32 %v265, 4294901760
    %288 = vmatpush1.msra.mxu0 %v287
    %289 = vmatprep.subr.mxu0 0.0
    %v290 = vand.u32 %v266, 4294901760
    %291 = vmatpush1.msra.mxu0 %v290
    %292 = vmatprep.subr.mxu0 0.0
    %293 = vmatpush1.msra.mxu0 0.0
    %294 = vmatprep.subr.mxu0 0.0
    %295 = vmatpush1.msra.mxu0 0.0
    %296 = vmatprep.subr.mxu0 0.0
    %297 = vmatpush1.msra.mxu0 0.0
    %298 = vmatprep.subr.mxu0 0.0
    %299 = vmatpush1.msra.mxu0 0.0
    %300 = vmatprep.subr.mxu0 0.0
    %301 = vmatpush1.msra.mxu0 0.0
    %302 = vmatprep.subr.mxu0 0.0
    %303 = vmatpush1.msra.mxu0 0.0
    %304 = vmatprep.subr.mxu0 0.0
    %305 = vmatpush1.msra.mxu0 0.0
    %306 = vmatprep.subr.mxu0 0.0
    %307 = vmatpush1.msra.mxu0 0.0
    %308 = vmatprep.subr.mxu0 0.0
    %309 = vmatpush1.msra.mxu0 0.0
    %310 = vmatprep.subr.mxu0 0.0
    %311 = vmatpush1.msra.mxu0 0.0
    %312 = vmatprep.subr.mxu0 0.0
    %313 = vmatpush1.msra.mxu0 0.0
    %314 = vmatprep.subr.mxu0 0.0
    %315 = vmatpush1.msra.mxu0 0.0
    %316 = vmatprep.subr.mxu0 0.0
    %317 = vmatpush1.msra.mxu0 0.0
    %318 = vmatprep.subr.mxu0 0.0
    %319 = vmatpush1.msra.mxu0 0.0
    %320 = vmatprep.subr.mxu0 0.0
    %321 = vmatpush1.msra.mxu0 0.0
    %322 = vmatprep.subr.mxu0 0.0
    %323 = vmatpush1.msra.mxu0 0.0
    %324 = vmatprep.subr.mxu0 0.0
    %325 = vmatpush1.msra.mxu0 0.0
    %326 = vmatprep.subr.mxu0 0.0
    %327 = vmatpush1.msra.mxu0 0.0
    %328 = vmatprep.subr.mxu0 0.0
    %329 = vmatpush1.msra.mxu0 0.0
    %330 = vmatprep.subr.mxu0 0.0
    %331 = vmatpush1.msra.mxu0 0.0
    %332 = vmatprep.subr.mxu0 0.0
    %333 = vmatpush1.msra.mxu0 0.0
    %334 = vmatprep.subr.mxu0 0.0
    %335 = vmatpush1.msra.mxu0 0.0
    %336 = vmatprep.subr.mxu0 0.0
    %337 = vmatpush1.msra.mxu0 0.0
    %338 = vmatprep.subr.mxu0 0.0
    %339 = vmatpush1.msra.mxu0 0.0
    %340 = vmatprep.subr.mxu0 0.0
    %341 = vmatpush1.msra.mxu0 0.0
    %342 = vmatprep.subr.mxu0 0.0
    %343 = vmatpush1.msra.mxu0 0.0
    %344 = vmatprep.subr.mxu0 0.0
    %345 = vmatpush1.msra.mxu0 0.0
    %346 = vmatprep.subr.mxu0 0.0
    %347 = vmatpush1.msra.mxu0 0.0
    %348 = vmatprep.mubr.f32.mxu0 0.0
    %v349 = vand.u32 %v269, 4294901760
    %v350 = vsub.f32 %v269, %v349
    %v351 = vand.u32 %v350, 4294901760
    %v352 = vsub.f32 %v350, %v351
    %v353 = vand.u32 %v352, 4294901760
    %354 = vmatmul.mubr.f32.gmra.mrb[0].mxu0 %v353
    %v355 = vpop.f32.mrb[0].mxu0
    %v356 = vadd.f32 0.0, %v355
    %v357 = vpop.f32.mrb[0].mxu0
    %358 = vmatprep.mubr.f32.mxu0 0.0
    %v359 = vand.u32 %v272, 4294901760
    %v360 = vsub.f32 %v272, %v359
    %v361 = vand.u32 %v360, 4294901760
    %v362 = vsub.f32 %v360, %v361
    %v363 = vand.u32 %v362, 4294901760
    %364 = vmatmul.mubr.f32.gmra.mrb[0].mxu0 %v363
    %v365 = vpop.f32.mrb[0].mxu0
    %v366 = vadd.f32 0.0, %v365
    %v367 = vpop.f32.mrb[0].mxu0
    %368 = vmatprep.mubr.f32.mxu0 0.0
    %v369 = vand.u32 %v275, 4294901760
    %v370 = vsub.f32 %v275, %v369
    %v371 = vand.u32 %v370, 4294901760
    %v372 = vsub.f32 %v370, %v371
    %v373 = vand.u32 %v372, 4294901760
    %374 = vmatmul.mubr.f32.gmra.mrb[0].mxu0 %v373
    %v375 = vpop.f32.mrb[0].mxu0
    %v376 = vadd.f32 0.0, %v375
    %v377 = vpop.f32.mrb[0].mxu0
    %378 = vmatprep.mubr.f32.mxu0 0.0
    %v379 = vand.u32 %v278, 4294901760
    %v380 = vsub.f32 %v278, %v379
    %v381 = vand.u32 %v380, 4294901760
    %v382 = vsub.f32 %v380, %v381
    %v383 = vand.u32 %v382, 4294901760
    %384 = vmatmul.mubr.f32.gmra.mrb[0].mxu0 %v383
    %v385 = vpop.f32.mrb[0].mxu0
    %v386 = vadd.f32 0.0, %v385
    %v387 = vpop.f32.mrb[0].mxu0
    %388 = vdwg.mxu0
    %389 = vmatprep.subr.mxu0 0.0
    %v390 = vand.u32 %v263, 4294901760
    %v391 = vsub.f32 %v263, %v390
    %v392 = vand.u32 %v391, 4294901760
    %v393 = vsub.f32 %v391, %v392
    %v394 = vand.u32 %v393, 4294901760
    %395 = vmatpush1.msra.mxu0 %v394
    %396 = vmatprep.subr.mxu0 0.0
    %v397 = vand.u32 %v264, 4294901760
    %v398 = vsub.f32 %v264, %v397
    %v399 = vand.u32 %v398, 4294901760
    %v400 = vsub.f32 %v398, %v399
    %v401 = vand.u32 %v400, 4294901760
    %402 = vmatpush1.msra.mxu0 %v401
    %403 = vmatprep.subr.mxu0 0.0
    %v404 = vand.u32 %v265, 4294901760
    %v405 = vsub.f32 %v265, %v404
    %v406 = vand.u32 %v405, 4294901760
    %v407 = vsub.f32 %v405, %v406
    %v408 = vand.u32 %v407, 4294901760
    %409 = vmatpush1.msra.mxu0 %v408
    %410 = vmatprep.subr.mxu0 0.0
    %v411 = vand.u32 %v266, 4294901760
    %v412 = vsub.f32 %v266, %v411
    %v413 = vand.u32 %v412, 4294901760
    %v414 = vsub.f32 %v412, %v413
    %v415 = vand.u32 %v414, 4294901760
    %416 = vmatpush1.msra.mxu0 %v415
    %417 = vmatprep.subr.mxu0 0.0
    %418 = vmatpush1.msra.mxu0 0.0
    %419 = vmatprep.subr.mxu0 0.0
    %420 = vmatpush1.msra.mxu0 0.0
    %421 = vmatprep.subr.mxu0 0.0
    %422 = vmatpush1.msra.mxu0 0.0
    %423 = vmatprep.subr.mxu0 0.0
    %424 = vmatpush1.msra.mxu0 0.0
    %425 = vmatprep.subr.mxu0 0.0
    %426 = vmatpush1.msra.mxu0 0.0
    %427 = vmatprep.subr.mxu0 0.0
    %428 = vmatpush1.msra.mxu0 0.0
    %429 = vmatprep.subr.mxu0 0.0
    %430 = vmatpush1.msra.mxu0 0.0
    %431 = vmatprep.subr.mxu0 0.0
    %432 = vmatpush1.msra.mxu0 0.0
    %433 = vmatprep.subr.mxu0 0.0
    %434 = vmatpush1.msra.mxu0 0.0
    %435 = vmatprep.subr.mxu0 0.0
    %436 = vmatpush1.msra.mxu0 0.0
    %437 = vmatprep.subr.mxu0 0.0
    %438 = vmatpush1.msra.mxu0 0.0
    %439 = vmatprep.subr.mxu0 0.0
    %440 = vmatpush1.msra.mxu0 0.0
    %441 = vmatprep.subr.mxu0 0.0
    %442 = vmatpush1.msra.mxu0 0.0
    %443 = vmatprep.subr.mxu0 0.0
    %444 = vmatpush1.msra.mxu0 0.0
    %445 = vmatprep.subr.mxu0 0.0
    %446 = vmatpush1.msra.mxu0 0.0
    %447 = vmatprep.subr.mxu0 0.0
    %448 = vmatpush1.msra.mxu0 0.0
    %449 = vmatprep.subr.mxu0 0.0
    %450 = vmatpush1.msra.mxu0 0.0
    %451 = vmatprep.subr.mxu0 0.0
    %452 = vmatpush1.msra.mxu0 0.0
    %453 = vmatprep.subr.mxu0 0.0
    %454 = vmatpush1.msra.mxu0 0.0
    %455 = vmatprep.subr.mxu0 0.0
    %456 = vmatpush1.msra.mxu0 0.0
    %457 = vmatprep.subr.mxu0 0.0
    %458 = vmatpush1.msra.mxu0 0.0
    %459 = vmatprep.subr.mxu0 0.0
    %460 = vmatpush1.msra.mxu0 0.0
    %461 = vmatprep.subr.mxu0 0.0
    %462 = vmatpush1.msra.mxu0 0.0
    %463 = vmatprep.subr.mxu0 0.0
    %464 = vmatpush1.msra.mxu0 0.0
    %465 = vmatprep.subr.mxu0 0.0
    %466 = vmatpush1.msra.mxu0 0.0
    %467 = vmatprep.subr.mxu0 0.0
    %468 = vmatpush1.msra.mxu0 0.0
    %469 = vmatprep.subr.mxu0 0.0
    %470 = vmatpush1.msra.mxu0 0.0
    %471 = vmatprep.subr.mxu0 0.0
    %472 = vmatpush1.msra.mxu0 0.0
    %473 = vmatprep.mubr.f32.mxu0 0.0
    %v474 = vand.u32 %v269, 4294901760
    %475 = vmatmul.mubr.f32.gmra.mrb[0].mxu0 %v474
    %v476 = vpop.f32.mrb[0].mxu0
    %v477 = vadd.f32 %v356, %v476
    %v478 = vpop.f32.mrb[0].mxu0
    %479 = vmatprep.mubr.f32.mxu0 0.0
    %v480 = vand.u32 %v272, 4294901760
    %481 = vmatmul.mubr.f32.gmra.mrb[0].mxu0 %v480
    %v482 = vpop.f32.mrb[0].mxu0
    %v483 = vadd.f32 %v366, %v482
    %v484 = vpop.f32.mrb[0].mxu0
    %485 = vmatprep.mubr.f32.mxu0 0.0
    %v486 = vand.u32 %v275, 4294901760
    %487 = vmatmul.mubr.f32.gmra.mrb[0].mxu0 %v486
    %v488 = vpop.f32.mrb[0].mxu0
    %v489 = vadd.f32 %v376, %v488
    %v490 = vpop.f32.mrb[0].mxu0
    %491 = vmatprep.mubr.f32.mxu0 0.0
    %v492 = vand.u32 %v278, 4294901760
    %493 = vmatmul.mubr.f32.gmra.mrb[0].mxu0 %v492
    %v494 = vpop.f32.mrb[0].mxu0
    %v495 = vadd.f32 %v386, %v494
    %v496 = vpop.f32.mrb[0].mxu0
    %497 = vdwg.mxu0
    %498 = vmatprep.subr.mxu0 0.0
    %v499 = vand.u32 %v263, 4294901760
    %v500 = vsub.f32 %v263, %v499
    %501 = vmatpush1.msra.mxu0 %v500
    %502 = vmatprep.subr.mxu0 0.0
    %v503 = vand.u32 %v264, 4294901760
    %v504 = vsub.f32 %v264, %v503
    %505 = vmatpush1.msra.mxu0 %v504
    %506 = vmatprep.subr.mxu0 0.0
    %v507 = vand.u32 %v265, 4294901760
    %v508 = vsub.f32 %v265, %v507
    %509 = vmatpush1.msra.mxu0 %v508
    %510 = vmatprep.subr.mxu0 0.0
    %v511 = vand.u32 %v266, 4294901760
    %v512 = vsub.f32 %v266, %v511
    %513 = vmatpush1.msra.mxu0 %v512
    %514 = vmatprep.subr.mxu0 0.0
    %515 = vmatpush1.msra.mxu0 0.0
    %516 = vmatprep.subr.mxu0 0.0
    %517 = vmatpush1.msra.mxu0 0.0
    %518 = vmatprep.subr.mxu0 0.0
    %519 = vmatpush1.msra.mxu0 0.0
    %520 = vmatprep.subr.mxu0 0.0
    %521 = vmatpush1.msra.mxu0 0.0
    %522 = vmatprep.subr.mxu0 0.0
    %523 = vmatpush1.msra.mxu0 0.0
    %524 = vmatprep.subr.mxu0 0.0
    %525 = vmatpush1.msra.mxu0 0.0
    %526 = vmatprep.subr.mxu0 0.0
    %527 = vmatpush1.msra.mxu0 0.0
    %528 = vmatprep.subr.mxu0 0.0
    %529 = vmatpush1.msra.mxu0 0.0
    %530 = vmatprep.subr.mxu0 0.0
    %531 = vmatpush1.msra.mxu0 0.0
    %532 = vmatprep.subr.mxu0 0.0
    %533 = vmatpush1.msra.mxu0 0.0
    %534 = vmatprep.subr.mxu0 0.0
    %535 = vmatpush1.msra.mxu0 0.0
    %536 = vmatprep.subr.mxu0 0.0
    %537 = vmatpush1.msra.mxu0 0.0
    %538 = vmatprep.subr.mxu0 0.0
    %539 = vmatpush1.msra.mxu0 0.0
    %540 = vmatprep.subr.mxu0 0.0
    %541 = vmatpush1.msra.mxu0 0.0
    %542 = vmatprep.subr.mxu0 0.0
    %543 = vmatpush1.msra.mxu0 0.0
    %544 = vmatprep.subr.mxu0 0.0
    %545 = vmatpush1.msra.mxu0 0.0
    %546 = vmatprep.subr.mxu0 0.0
    %547 = vmatpush1.msra.mxu0 0.0
    %548 = vmatprep.subr.mxu0 0.0
    %549 = vmatpush1.msra.mxu0 0.0
    %550 = vmatprep.subr.mxu0 0.0
    %551 = vmatpush1.msra.mxu0 0.0
    %552 = vmatprep.subr.mxu0 0.0
    %553 = vmatpush1.msra.mxu0 0.0
    %554 = vmatprep.subr.mxu0 0.0
    %555 = vmatpush1.msra.mxu0 0.0
    %556 = vmatprep.subr.mxu0 0.0
    %557 = vmatpush1.msra.mxu0 0.0
    %558 = vmatprep.subr.mxu0 0.0
    %559 = vmatpush1.msra.mxu0 0.0
    %560 = vmatprep.subr.mxu0 0.0
    %561 = vmatpush1.msra.mxu0 0.0
    %562 = vmatprep.subr.mxu0 0.0
    %563 = vmatpush1.msra.mxu0 0.0
    %564 = vmatprep.subr.mxu0 0.0
    %565 = vmatpush1.msra.mxu0 0.0
    %566 = vmatprep.subr.mxu0 0.0
    %567 = vmatpush1.msra.mxu0 0.0
    %568 = vmatprep.subr.mxu0 0.0
    %569 = vmatpush1.msra.mxu0 0.0
    %570 = vmatprep.mubr.f32.mxu0 0.0
    %v571 = vand.u32 %v269, 4294901760
    %v572 = vsub.f32 %v269, %v571
    %573 = vmatmul.mubr.f32.gmra.mrb[0].mxu0 %v572
    %v574 = vpop.f32.mrb[0].mxu0
    %v575 = vadd.f32 %v477, %v574
    %v576 = vpop.f32.mrb[0].mxu0
    %577 = vmatprep.mubr.f32.mxu0 0.0
    %v578 = vand.u32 %v272, 4294901760
    %v579 = vsub.f32 %v272, %v578
    %580 = vmatmul.mubr.f32.gmra.mrb[0].mxu0 %v579
    %v581 = vpop.f32.mrb[0].mxu0
    %v582 = vadd.f32 %v483, %v581
    %v583 = vpop.f32.mrb[0].mxu0
    %584 = vmatprep.mubr.f32.mxu0 0.0
    %v585 = vand.u32 %v275, 4294901760
    %v586 = vsub.f32 %v275, %v585
    %587 = vmatmul.mubr.f32.gmra.mrb[0].mxu0 %v586
    %v588 = vpop.f32.mrb[0].mxu0
    %v589 = vadd.f32 %v489, %v588
    %v590 = vpop.f32.mrb[0].mxu0
    %591 = vmatprep.mubr.f32.mxu0 0.0
    %v592 = vand.u32 %v278, 4294901760
    %v593 = vsub.f32 %v278, %v592
    %594 = vmatmul.mubr.f32.gmra.mrb[0].mxu0 %v593
    %v595 = vpop.f32.mrb[0].mxu0
    %v596 = vadd.f32 %v495, %v595
    %v597 = vpop.f32.mrb[0].mxu0
    %598 = vdwg.mxu0
    %599 = vmatprep.subr.mxu0 0.0
    %v600 = vand.u32 %v263, 4294901760
    %601 = vmatpush1.msra.mxu0 %v600
    %602 = vmatprep.subr.mxu0 0.0
    %v603 = vand.u32 %v264, 4294901760
    %604 = vmatpush1.msra.mxu0 %v603
    %605 = vmatprep.subr.mxu0 0.0
    %v606 = vand.u32 %v265, 4294901760
    %607 = vmatpush1.msra.mxu0 %v606
    %608 = vmatprep.subr.mxu0 0.0
    %v609 = vand.u32 %v266, 4294901760
    %610 = vmatpush1.msra.mxu0 %v609
    %611 = vmatprep.subr.mxu0 0.0
    %612 = vmatpush1.msra.mxu0 0.0
    %613 = vmatprep.subr.mxu0 0.0
    %614 = vmatpush1.msra.mxu0 0.0
    %615 = vmatprep.subr.mxu0 0.0
    %616 = vmatpush1.msra.mxu0 0.0
    %617 = vmatprep.subr.mxu0 0.0
    %618 = vmatpush1.msra.mxu0 0.0
    %619 = vmatprep.subr.mxu0 0.0
    %620 = vmatpush1.msra.mxu0 0.0
    %621 = vmatprep.subr.mxu0 0.0
    %622 = vmatpush1.msra.mxu0 0.0
    %623 = vmatprep.subr.mxu0 0.0
    %624 = vmatpush1.msra.mxu0 0.0
    %625 = vmatprep.subr.mxu0 0.0
    %626 = vmatpush1.msra.mxu0 0.0
    %627 = vmatprep.subr.mxu0 0.0
    %628 = vmatpush1.msra.mxu0 0.0
    %629 = vmatprep.subr.mxu0 0.0
    %630 = vmatpush1.msra.mxu0 0.0
    %631 = vmatprep.subr.mxu0 0.0
    %632 = vmatpush1.msra.mxu0 0.0
    %633 = vmatprep.subr.mxu0 0.0
    %634 = vmatpush1.msra.mxu0 0.0
    %635 = vmatprep.subr.mxu0 0.0
    %636 = vmatpush1.msra.mxu0 0.0
    %637 = vmatprep.subr.mxu0 0.0
    %638 = vmatpush1.msra.mxu0 0.0
    %639 = vmatprep.subr.mxu0 0.0
    %640 = vmatpush1.msra.mxu0 0.0
    %641 = vmatprep.subr.mxu0 0.0
    %642 = vmatpush1.msra.mxu0 0.0
    %643 = vmatprep.subr.mxu0 0.0
    %644 = vmatpush1.msra.mxu0 0.0
    %645 = vmatprep.subr.mxu0 0.0
    %646 = vmatpush1.msra.mxu0 0.0
    %647 = vmatprep.subr.mxu0 0.0
    %648 = vmatpush1.msra.mxu0 0.0
    %649 = vmatprep.subr.mxu0 0.0
    %650 = vmatpush1.msra.mxu0 0.0
    %651 = vmatprep.subr.mxu0 0.0
    %652 = vmatpush1.msra.mxu0 0.0
    %653 = vmatprep.subr.mxu0 0.0
    %654 = vmatpush1.msra.mxu0 0.0
    %655 = vmatprep.subr.mxu0 0.0
    %656 = vmatpush1.msra.mxu0 0.0
    %657 = vmatprep.subr.mxu0 0.0
    %658 = vmatpush1.msra.mxu0 0.0
    %659 = vmatprep.subr.mxu0 0.0
    %660 = vmatpush1.msra.mxu0 0.0
    %661 = vmatprep.subr.mxu0 0.0
    %662 = vmatpush1.msra.mxu0 0.0
    %663 = vmatprep.subr.mxu0 0.0
    %664 = vmatpush1.msra.mxu0 0.0
    %665 = vmatprep.subr.mxu0 0.0
    %666 = vmatpush1.msra.mxu0 0.0
    %667 = vmatprep.mubr.f32.mxu0 0.0
    %v668 = vand.u32 %v269, 4294901760
    %v669 = vsub.f32 %v269, %v668
    %v670 = vand.u32 %v669, 4294901760
    %671 = vmatmul.mubr.f32.gmra.mrb[0].mxu0 %v670
    %v672 = vpop.f32.mrb[0].mxu0
    %v673 = vadd.f32 %v575, %v672
    %v674 = vpop.f32.mrb[0].mxu0
    %675 = vmatprep.mubr.f32.mxu0 0.0
    %v676 = vand.u32 %v272, 4294901760
    %v677 = vsub.f32 %v272, %v676
    %v678 = vand.u32 %v677, 4294901760
    %679 = vmatmul.mubr.f32.gmra.mrb[0].mxu0 %v678
    %v680 = vpop.f32.mrb[0].mxu0
    %v681 = vadd.f32 %v582, %v680
    %v682 = vpop.f32.mrb[0].mxu0
    %683 = vmatprep.mubr.f32.mxu0 0.0
    %v684 = vand.u32 %v275, 4294901760
    %v685 = vsub.f32 %v275, %v684
    %v686 = vand.u32 %v685, 4294901760
    %687 = vmatmul.mubr.f32.gmra.mrb[0].mxu0 %v686
    %v688 = vpop.f32.mrb[0].mxu0
    %v689 = vadd.f32 %v589, %v688
    %v690 = vpop.f32.mrb[0].mxu0
    %691 = vmatprep.mubr.f32.mxu0 0.0
    %v692 = vand.u32 %v278, 4294901760
    %v693 = vsub.f32 %v278, %v692
    %v694 = vand.u32 %v693, 4294901760
    %695 = vmatmul.mubr.f32.gmra.mrb[0].mxu0 %v694
    %v696 = vpop.f32.mrb[0].mxu0
    %v697 = vadd.f32 %v596, %v696
    %v698 = vpop.f32.mrb[0].mxu0
    %699 = vdwg.mxu0
    %700 = vmatprep.subr.mxu0 0.0
    %v701 = vand.u32 %v263, 4294901760
    %v702 = vsub.f32 %v263, %v701
    %v703 = vand.u32 %v702, 4294901760
    %704 = vmatpush1.msra.mxu0 %v703
    %705 = vmatprep.subr.mxu0 0.0
    %v706 = vand.u32 %v264, 4294901760
    %v707 = vsub.f32 %v264, %v706
    %v708 = vand.u32 %v707, 4294901760
    %709 = vmatpush1.msra.mxu0 %v708
    %710 = vmatprep.subr.mxu0 0.0
    %v711 = vand.u32 %v265, 4294901760
    %v712 = vsub.f32 %v265, %v711
    %v713 = vand.u32 %v712, 4294901760
    %714 = vmatpush1.msra.mxu0 %v713
    %715 = vmatprep.subr.mxu0 0.0
    %v716 = vand.u32 %v266, 4294901760
    %v717 = vsub.f32 %v266, %v716
    %v718 = vand.u32 %v717, 4294901760
    %719 = vmatpush1.msra.mxu0 %v718
    %720 = vmatprep.subr.mxu0 0.0
    %721 = vmatpush1.msra.mxu0 0.0
    %722 = vmatprep.subr.mxu0 0.0
    %723 = vmatpush1.msra.mxu0 0.0
    %724 = vmatprep.subr.mxu0 0.0
    %725 = vmatpush1.msra.mxu0 0.0
    %726 = vmatprep.subr.mxu0 0.0
    %727 = vmatpush1.msra.mxu0 0.0
    %728 = vmatprep.subr.mxu0 0.0
    %729 = vmatpush1.msra.mxu0 0.0
    %730 = vmatprep.subr.mxu0 0.0
    %731 = vmatpush1.msra.mxu0 0.0
    %732 = vmatprep.subr.mxu0 0.0
    %733 = vmatpush1.msra.mxu0 0.0
    %734 = vmatprep.subr.mxu0 0.0
    %735 = vmatpush1.msra.mxu0 0.0
    %736 = vmatprep.subr.mxu0 0.0
    %737 = vmatpush1.msra.mxu0 0.0
    %738 = vmatprep.subr.mxu0 0.0
    %739 = vmatpush1.msra.mxu0 0.0
    %740 = vmatprep.subr.mxu0 0.0
    %741 = vmatpush1.msra.mxu0 0.0
    %742 = vmatprep.subr.mxu0 0.0
    %743 = vmatpush1.msra.mxu0 0.0
    %744 = vmatprep.subr.mxu0 0.0
    %745 = vmatpush1.msra.mxu0 0.0
    %746 = vmatprep.subr.mxu0 0.0
    %747 = vmatpush1.msra.mxu0 0.0
    %748 = vmatprep.subr.mxu0 0.0
    %749 = vmatpush1.msra.mxu0 0.0
    %750 = vmatprep.subr.mxu0 0.0
    %751 = vmatpush1.msra.mxu0 0.0
    %752 = vmatprep.subr.mxu0 0.0
    %753 = vmatpush1.msra.mxu0 0.0
    %754 = vmatprep.subr.mxu0 0.0
    %755 = vmatpush1.msra.mxu0 0.0
    %756 = vmatprep.subr.mxu0 0.0
    %757 = vmatpush1.msra.mxu0 0.0
    %758 = vmatprep.subr.mxu0 0.0
    %759 = vmatpush1.msra.mxu0 0.0
    %760 = vmatprep.subr.mxu0 0.0
    %761 = vmatpush1.msra.mxu0 0.0
    %762 = vmatprep.subr.mxu0 0.0
    %763 = vmatpush1.msra.mxu0 0.0
    %764 = vmatprep.subr.mxu0 0.0
    %765 = vmatpush1.msra.mxu0 0.0
    %766 = vmatprep.subr.mxu0 0.0
    %767 = vmatpush1.msra.mxu0 0.0
    %768 = vmatprep.subr.mxu0 0.0
    %769 = vmatpush1.msra.mxu0 0.0
    %770 = vmatprep.subr.mxu0 0.0
    %771 = vmatpush1.msra.mxu0 0.0
    %772 = vmatprep.subr.mxu0 0.0
    %773 = vmatpush1.msra.mxu0 0.0
    %774 = vmatprep.subr.mxu0 0.0
    %775 = vmatpush1.msra.mxu0 0.0
    %776 = vmatprep.mubr.f32.mxu0 0.0
    %v777 = vand.u32 %v269, 4294901760
    %778 = vmatmul.mubr.f32.gmra.mrb[0].mxu0 %v777
    %v779 = vpop.f32.mrb[0].mxu0
    %v780 = vadd.f32 %v673, %v779
    %v781 = vpop.f32.mrb[0].mxu0
    %782 = vmatprep.mubr.f32.mxu0 0.0
    %v783 = vand.u32 %v272, 4294901760
    %784 = vmatmul.mubr.f32.gmra.mrb[0].mxu0 %v783
    %v785 = vpop.f32.mrb[0].mxu0
    %v786 = vadd.f32 %v681, %v785
    %v787 = vpop.f32.mrb[0].mxu0
    %788 = vmatprep.mubr.f32.mxu0 0.0
    %v789 = vand.u32 %v275, 4294901760
    %790 = vmatmul.mubr.f32.gmra.mrb[0].mxu0 %v789
    %v791 = vpop.f32.mrb[0].mxu0
    %v792 = vadd.f32 %v689, %v791
    %v793 = vpop.f32.mrb[0].mxu0
    %794 = vmatprep.mubr.f32.mxu0 0.0
    %v795 = vand.u32 %v278, 4294901760
    %796 = vmatmul.mubr.f32.gmra.mrb[0].mxu0 %v795
    %v797 = vpop.f32.mrb[0].mxu0
    %v798 = vadd.f32 %v697, %v797
    %v799 = vpop.f32.mrb[0].mxu0
    %800 = vdwg.mxu0
    %801 = vmatprep.subr.mxu0 0.0
    %v802 = vand.u32 %v263, 4294901760
    %803 = vmatpush1.msra.mxu0 %v802
    %804 = vmatprep.subr.mxu0 0.0
    %v805 = vand.u32 %v264, 4294901760
    %806 = vmatpush1.msra.mxu0 %v805
    %807 = vmatprep.subr.mxu0 0.0
    %v808 = vand.u32 %v265, 4294901760
    %809 = vmatpush1.msra.mxu0 %v808
    %810 = vmatprep.subr.mxu0 0.0
    %v811 = vand.u32 %v266, 4294901760
    %812 = vmatpush1.msra.mxu0 %v811
    %813 = vmatprep.subr.mxu0 0.0
    %814 = vmatpush1.msra.mxu0 0.0
    %815 = vmatprep.subr.mxu0 0.0
    %816 = vmatpush1.msra.mxu0 0.0
    %817 = vmatprep.subr.mxu0 0.0
    %818 = vmatpush1.msra.mxu0 0.0
    %819 = vmatprep.subr.mxu0 0.0
    %820 = vmatpush1.msra.mxu0 0.0
    %821 = vmatprep.subr.mxu0 0.0
    %822 = vmatpush1.msra.mxu0 0.0
    %823 = vmatprep.subr.mxu0 0.0
    %824 = vmatpush1.msra.mxu0 0.0
    %825 = vmatprep.subr.mxu0 0.0
    %826 = vmatpush1.msra.mxu0 0.0
    %827 = vmatprep.subr.mxu0 0.0
    %828 = vmatpush1.msra.mxu0 0.0
    %829 = vmatprep.subr.mxu0 0.0
    %830 = vmatpush1.msra.mxu0 0.0
    %831 = vmatprep.subr.mxu0 0.0
    %832 = vmatpush1.msra.mxu0 0.0
    %833 = vmatprep.subr.mxu0 0.0
    %834 = vmatpush1.msra.mxu0 0.0
    %835 = vmatprep.subr.mxu0 0.0
    %836 = vmatpush1.msra.mxu0 0.0
    %837 = vmatprep.subr.mxu0 0.0
    %838 = vmatpush1.msra.mxu0 0.0
    %839 = vmatprep.subr.mxu0 0.0
    %840 = vmatpush1.msra.mxu0 0.0
    %841 = vmatprep.subr.mxu0 0.0
    %842 = vmatpush1.msra.mxu0 0.0
    %843 = vmatprep.subr.mxu0 0.0
    %844 = vmatpush1.msra.mxu0 0.0
    %845 = vmatprep.subr.mxu0 0.0
    %846 = vmatpush1.msra.mxu0 0.0
    %847 = vmatprep.subr.mxu0 0.0
    %848 = vmatpush1.msra.mxu0 0.0
    %849 = vmatprep.subr.mxu0 0.0
    %850 = vmatpush1.msra.mxu0 0.0
    %851 = vmatprep.subr.mxu0 0.0
    %852 = vmatpush1.msra.mxu0 0.0
    %853 = vmatprep.subr.mxu0 0.0
    %854 = vmatpush1.msra.mxu0 0.0
    %855 = vmatprep.subr.mxu0 0.0
    %856 = vmatpush1.msra.mxu0 0.0
    %857 = vmatprep.subr.mxu0 0.0
    %858 = vmatpush1.msra.mxu0 0.0
    %859 = vmatprep.subr.mxu0 0.0
    %860 = vmatpush1.msra.mxu0 0.0
    %861 = vmatprep.subr.mxu0 0.0
    %862 = vmatpush1.msra.mxu0 0.0
    %863 = vmatprep.subr.mxu0 0.0
    %864 = vmatpush1.msra.mxu0 0.0
    %865 = vmatprep.subr.mxu0 0.0
    %866 = vmatpush1.msra.mxu0 0.0
    %867 = vmatprep.subr.mxu0 0.0
    %868 = vmatpush1.msra.mxu0 0.0
    %869 = vmatprep.mubr.f32.mxu0 0.0
    %v870 = vand.u32 %v269, 4294901760
    %871 = vmatmul.mubr.f32.gmra.mrb[0].mxu0 %v870
    %v872 = vpop.f32.mrb[0].mxu0
    %v873 = vadd.f32 %v780, %v872
    %v874 = vpop.f32.mrb[0].mxu0
    %875 = vmatprep.mubr.f32.mxu0 0.0
    %v876 = vand.u32 %v272, 4294901760
    %877 = vmatmul.mubr.f32.gmra.mrb[0].mxu0 %v876
    %v878 = vpop.f32.mrb[0].mxu0
    %v879 = vadd.f32 %v786, %v878
    %v880 = vpop.f32.mrb[0].mxu0
    %881 = vmatprep.mubr.f32.mxu0 0.0
    %v882 = vand.u32 %v275, 4294901760
    %883 = vmatmul.mubr.f32.gmra.mrb[0].mxu0 %v882
    %v884 = vpop.f32.mrb[0].mxu0
    %v885 = vadd.f32 %v792, %v884
    %v886 = vpop.f32.mrb[0].mxu0
    %887 = vmatprep.mubr.f32.mxu0 0.0
    %v888 = vand.u32 %v278, 4294901760
    %889 = vmatmul.mubr.f32.gmra.mrb[0].mxu0 %v888
    %v890 = vpop.f32.mrb[0].mxu0
    %v891 = vadd.f32 %v798, %v890
    %v892 = vpop.f32.mrb[0].mxu0
    %893 = vdwg.mxu0
    %v894 = vlog2.pop %v873
    %v895 = vmul.f32 %v894, 0.6931472
    %v896 = vlog2.pop %v879
    %v897 = vmul.f32 %v896, 0.6931472
    %v898 = vlog2.pop %v885
    %v899 = vmul.f32 %v898, 0.6931472
    %v900 = vlog2.pop %v891
    %v901 = vmul.f32 %v900, 0.6931472
    %v902 = vld [vmem:[%s5] sm:$0xff]
    %vm903 = vcmask 64512
    %v905 = vsel %vm903, %v873, 0
    %v908 = vsel %vm903, %v879, 0
    %v911 = vsel %vm903, %v885, 0
    %v914 = vsel %vm903, %v891, 0
    %916 = vmatprep.subr.mxu0 0.0
    %v917 = vand.u32 %v902, 4294901760
    %918 = vmatpush1.msra.mxu0 %v917
    %919 = vmatprep.subr.mxu0 0.0
    %920 = vmatpush1.msra.mxu0 0.0
    %921 = vmatprep.subr.mxu0 0.0
    %922 = vmatpush1.msra.mxu0 0.0
    %923 = vmatprep.subr.mxu0 0.0
    %924 = vmatpush1.msra.mxu0 0.0
    %925 = vmatprep.subr.mxu0 0.0
    %926 = vmatpush1.msra.mxu0 0.0
    %927 = vmatprep.subr.mxu0 0.0
    %928 = vmatpush1.msra.mxu0 0.0
    %929 = vmatprep.subr.mxu0 0.0
    %930 = vmatpush1.msra.mxu0 0.0
    %931 = vmatprep.subr.mxu0 0.0
    %932 = vmatpush1.msra.mxu0 0.0
    %933 = vmatprep.subr.mxu0 0.0
    %934 = vmatpush1.msra.mxu0 0.0
    %935 = vmatprep.subr.mxu0 0.0
    %936 = vmatpush1.msra.mxu0 0.0
    %937 = vmatprep.subr.mxu0 0.0
    %938 = vmatpush1.msra.mxu0 0.0
    %939 = vmatprep.subr.mxu0 0.0
    %940 = vmatpush1.msra.mxu0 0.0
    %941 = vmatprep.subr.mxu0 0.0
    %942 = vmatpush1.msra.mxu0 0.0
    %943 = vmatprep.subr.mxu0 0.0
    %944 = vmatpush1.msra.mxu0 0.0
    %945 = vmatprep.subr.mxu0 0.0
    %946 = vmatpush1.msra.mxu0 0.0
    %947 = vmatprep.subr.mxu0 0.0
    %948 = vmatpush1.msra.mxu0 0.0
    %949 = vmatprep.subr.mxu0 0.0
    %950 = vmatpush1.msra.mxu0 0.0
    %951 = vmatprep.subr.mxu0 0.0
    %952 = vmatpush1.msra.mxu0 0.0
    %953 = vmatprep.subr.mxu0 0.0
    %954 = vmatpush1.msra.mxu0 0.0
    %955 = vmatprep.subr.mxu0 0.0
    %956 = vmatpush1.msra.mxu0 0.0
    %957 = vmatprep.subr.mxu0 0.0
    %958 = vmatpush1.msra.mxu0 0.0
    %959 = vmatprep.subr.mxu0 0.0
    %960 = vmatpush1.msra.mxu0 0.0
    %961 = vmatprep.subr.mxu0 0.0
    %962 = vmatpush1.msra.mxu0 0.0
    %963 = vmatprep.subr.mxu0 0.0
    %964 = vmatpush1.msra.mxu0 0.0
    %965 = vmatprep.subr.mxu0 0.0
    %966 = vmatpush1.msra.mxu0 0.0
    %967 = vmatprep.subr.mxu0 0.0
    %968 = vmatpush1.msra.mxu0 0.0
    %969 = vmatprep.subr.mxu0 0.0
    %970 = vmatpush1.msra.mxu0 0.0
    %971 = vmatprep.subr.mxu0 0.0
    %972 = vmatpush1.msra.mxu0 0.0
    %973 = vmatprep.subr.mxu0 0.0
    %974 = vmatpush1.msra.mxu0 0.0
    %975 = vmatprep.subr.mxu0 0.0
    %976 = vmatpush1.msra.mxu0 0.0
    %977 = vmatprep.subr.mxu0 0.0
    %978 = vmatpush1.msra.mxu0 0.0
    %979 = vmatprep.subr.mxu0 0.0
    %980 = vmatpush1.msra.mxu0 0.0
    %981 = vmatprep.mubr.f32.mxu0 0.0
    %v982 = vand.u32 %v905, 4294901760
    %v983 = vsub.f32 %v905, %v982
    %v984 = vand.u32 %v983, 4294901760
    %v985 = vsub.f32 %v983, %v984
    %v986 = vand.u32 %v985, 4294901760
    %987 = vmatmul.mubr.f32.gmra.mrb[0].mxu0 %v986
    %v988 = vpop.f32.mrb[0].mxu0
    %v989 = vadd.f32 0.0, %v988
    %v990 = vpop.f32.mrb[0].mxu0
    %991 = vmatprep.mubr.f32.mxu0 0.0
    %v992 = vand.u32 %v908, 4294901760
    %v993 = vsub.f32 %v908, %v992
    %v994 = vand.u32 %v993, 4294901760
    %v995 = vsub.f32 %v993, %v994
    %v996 = vand.u32 %v995, 4294901760
    %997 = vmatmul.mubr.f32.gmra.mrb[0].mxu0 %v996
    %v998 = vpop.f32.mrb[0].mxu0
    %v999 = vadd.f32 0.0, %v998
    %v1000 = vpop.f32.mrb[0].mxu0
    %1001 = vmatprep.mubr.f32.mxu0 0.0
    %v1002 = vand.u32 %v911, 4294901760
    %v1003 = vsub.f32 %v911, %v1002
    %v1004 = vand.u32 %v1003, 4294901760
    %v1005 = vsub.f32 %v1003, %v1004
    %v1006 = vand.u32 %v1005, 4294901760
    %1007 = vmatmul.mubr.f32.gmra.mrb[0].mxu0 %v1006
    %v1008 = vpop.f32.mrb[0].mxu0
    %v1009 = vadd.f32 0.0, %v1008
    %v1010 = vpop.f32.mrb[0].mxu0
    %1011 = vmatprep.mubr.f32.mxu0 0.0
    %v1012 = vand.u32 %v914, 4294901760
    %v1013 = vsub.f32 %v914, %v1012
    %v1014 = vand.u32 %v1013, 4294901760
    %v1015 = vsub.f32 %v1013, %v1014
    %v1016 = vand.u32 %v1015, 4294901760
    %1017 = vmatmul.mubr.f32.gmra.mrb[0].mxu0 %v1016
    %v1018 = vpop.f32.mrb[0].mxu0
    %v1019 = vadd.f32 0.0, %v1018
    %v1020 = vpop.f32.mrb[0].mxu0
    %1021 = vdwg.mxu0
    %1022 = vmatprep.subr.mxu0 0.0
    %v1023 = vand.u32 %v902, 4294901760
    %v1024 = vsub.f32 %v902, %v1023
    %v1025 = vand.u32 %v1024, 4294901760
    %v1026 = vsub.f32 %v1024, %v1025
    %v1027 = vand.u32 %v1026, 4294901760
    %1028 = vmatpush1.msra.mxu0 %v1027
    %1029 = vmatprep.subr.mxu0 0.0
    %1030 = vmatpush1.msra.mxu0 0.0
    %1031 = vmatprep.subr.mxu0 0.0
    %1032 = vmatpush1.msra.mxu0 0.0
    %1033 = vmatprep.subr.mxu0 0.0
    %1034 = vmatpush1.msra.mxu0 0.0
    %1035 = vmatprep.subr.mxu0 0.0
    %1036 = vmatpush1.msra.mxu0 0.0
    %1037 = vmatprep.subr.mxu0 0.0
    %1038 = vmatpush1.msra.mxu0 0.0
    %1039 = vmatprep.subr.mxu0 0.0
    %1040 = vmatpush1.msra.mxu0 0.0
    %1041 = vmatprep.subr.mxu0 0.0
    %1042 = vmatpush1.msra.mxu0 0.0
    %1043 = vmatprep.subr.mxu0 0.0
    %1044 = vmatpush1.msra.mxu0 0.0
    %1045 = vmatprep.subr.mxu0 0.0
    %1046 = vmatpush1.msra.mxu0 0.0
    %1047 = vmatprep.subr.mxu0 0.0
    %1048 = vmatpush1.msra.mxu0 0.0
    %1049 = vmatprep.subr.mxu0 0.0
    %1050 = vmatpush1.msra.mxu0 0.0
    %1051 = vmatprep.subr.mxu0 0.0
    %1052 = vmatpush1.msra.mxu0 0.0
    %1053 = vmatprep.subr.mxu0 0.0
    %1054 = vmatpush1.msra.mxu0 0.0
    %1055 = vmatprep.subr.mxu0 0.0
    %1056 = vmatpush1.msra.mxu0 0.0
    %1057 = vmatprep.subr.mxu0 0.0
    %1058 = vmatpush1.msra.mxu0 0.0
    %1059 = vmatprep.subr.mxu0 0.0
    %1060 = vmatpush1.msra.mxu0 0.0
    %1061 = vmatprep.subr.mxu0 0.0
    %1062 = vmatpush1.msra.mxu0 0.0
    %1063 = vmatprep.subr.mxu0 0.0
    %1064 = vmatpush1.msra.mxu0 0.0
    %1065 = vmatprep.subr.mxu0 0.0
    %1066 = vmatpush1.msra.mxu0 0.0
    %1067 = vmatprep.subr.mxu0 0.0
    %1068 = vmatpush1.msra.mxu0 0.0
    %1069 = vmatprep.subr.mxu0 0.0
    %1070 = vmatpush1.msra.mxu0 0.0
    %1071 = vmatprep.subr.mxu0 0.0
    %1072 = vmatpush1.msra.mxu0 0.0
    %1073 = vmatprep.subr.mxu0 0.0
    %1074 = vmatpush1.msra.mxu0 0.0
    %1075 = vmatprep.subr.mxu0 0.0
    %1076 = vmatpush1.msra.mxu0 0.0
    %1077 = vmatprep.subr.mxu0 0.0
    %1078 = vmatpush1.msra.mxu0 0.0
    %1079 = vmatprep.subr.mxu0 0.0
    %1080 = vmatpush1.msra.mxu0 0.0
    %1081 = vmatprep.subr.mxu0 0.0
    %1082 = vmatpush1.msra.mxu0 0.0
    %1083 = vmatprep.subr.mxu0 0.0
    %1084 = vmatpush1.msra.mxu0 0.0
    %1085 = vmatprep.subr.mxu0 0.0
    %1086 = vmatpush1.msra.mxu0 0.0
    %1087 = vmatprep.subr.mxu0 0.0
    %1088 = vmatpush1.msra.mxu0 0.0
    %1089 = vmatprep.subr.mxu0 0.0
    %1090 = vmatpush1.msra.mxu0 0.0
    %1091 = vmatprep.mubr.f32.mxu0 0.0
    %v1092 = vand.u32 %v905, 4294901760
    %1093 = vmatmul.mubr.f32.gmra.mrb[0].mxu0 %v1092
    %v1094 = vpop.f32.mrb[0].mxu0
    %v1095 = vadd.f32 %v989, %v1094
    %v1096 = vpop.f32.mrb[0].mxu0
    %1097 = vmatprep.mubr.f32.mxu0 0.0
    %v1098 = vand.u32 %v908, 4294901760
    %1099 = vmatmul.mubr.f32.gmra.mrb[0].mxu0 %v1098
    %v1100 = vpop.f32.mrb[0].mxu0
    %v1101 = vadd.f32 %v999, %v1100
    %v1102 = vpop.f32.mrb[0].mxu0
    %1103 = vmatprep.mubr.f32.mxu0 0.0
    %v1104 = vand.u32 %v911, 4294901760
    %1105 = vmatmul.mubr.f32.gmra.mrb[0].mxu0 %v1104
    %v1106 = vpop.f32.mrb[0].mxu0
    %v1107 = vadd.f32 %v1009, %v1106
    %v1108 = vpop.f32.mrb[0].mxu0
    %1109 = vmatprep.mubr.f32.mxu0 0.0
    %v1110 = vand.u32 %v914, 4294901760
    %1111 = vmatmul.mubr.f32.gmra.mrb[0].mxu0 %v1110
    %v1112 = vpop.f32.mrb[0].mxu0
    %v1113 = vadd.f32 %v1019, %v1112
    %v1114 = vpop.f32.mrb[0].mxu0
    %1115 = vdwg.mxu0
    %1116 = vmatprep.subr.mxu0 0.0
    %v1117 = vand.u32 %v902, 4294901760
    %v1118 = vsub.f32 %v902, %v1117
    %1119 = vmatpush1.msra.mxu0 %v1118
    %1120 = vmatprep.subr.mxu0 0.0
    %1121 = vmatpush1.msra.mxu0 0.0
    %1122 = vmatprep.subr.mxu0 0.0
    %1123 = vmatpush1.msra.mxu0 0.0
    %1124 = vmatprep.subr.mxu0 0.0
    %1125 = vmatpush1.msra.mxu0 0.0
    %1126 = vmatprep.subr.mxu0 0.0
    %1127 = vmatpush1.msra.mxu0 0.0
    %1128 = vmatprep.subr.mxu0 0.0
    %1129 = vmatpush1.msra.mxu0 0.0
    %1130 = vmatprep.subr.mxu0 0.0
    %1131 = vmatpush1.msra.mxu0 0.0
    %1132 = vmatprep.subr.mxu0 0.0
    %1133 = vmatpush1.msra.mxu0 0.0
    %1134 = vmatprep.subr.mxu0 0.0
    %1135 = vmatpush1.msra.mxu0 0.0
    %1136 = vmatprep.subr.mxu0 0.0
    %1137 = vmatpush1.msra.mxu0 0.0
    %1138 = vmatprep.subr.mxu0 0.0
    %1139 = vmatpush1.msra.mxu0 0.0
    %1140 = vmatprep.subr.mxu0 0.0
    %1141 = vmatpush1.msra.mxu0 0.0
    %1142 = vmatprep.subr.mxu0 0.0
    %1143 = vmatpush1.msra.mxu0 0.0
    %1144 = vmatprep.subr.mxu0 0.0
    %1145 = vmatpush1.msra.mxu0 0.0
    %1146 = vmatprep.subr.mxu0 0.0
    %1147 = vmatpush1.msra.mxu0 0.0
    %1148 = vmatprep.subr.mxu0 0.0
    %1149 = vmatpush1.msra.mxu0 0.0
    %1150 = vmatprep.subr.mxu0 0.0
    %1151 = vmatpush1.msra.mxu0 0.0
    %1152 = vmatprep.subr.mxu0 0.0
    %1153 = vmatpush1.msra.mxu0 0.0
    %1154 = vmatprep.subr.mxu0 0.0
    %1155 = vmatpush1.msra.mxu0 0.0
    %1156 = vmatprep.subr.mxu0 0.0
    %1157 = vmatpush1.msra.mxu0 0.0
    %1158 = vmatprep.subr.mxu0 0.0
    %1159 = vmatpush1.msra.mxu0 0.0
    %1160 = vmatprep.subr.mxu0 0.0
    %1161 = vmatpush1.msra.mxu0 0.0
    %1162 = vmatprep.subr.mxu0 0.0
    %1163 = vmatpush1.msra.mxu0 0.0
    %1164 = vmatprep.subr.mxu0 0.0
    %1165 = vmatpush1.msra.mxu0 0.0
    %1166 = vmatprep.subr.mxu0 0.0
    %1167 = vmatpush1.msra.mxu0 0.0
    %1168 = vmatprep.subr.mxu0 0.0
    %1169 = vmatpush1.msra.mxu0 0.0
    %1170 = vmatprep.subr.mxu0 0.0
    %1171 = vmatpush1.msra.mxu0 0.0
    %1172 = vmatprep.subr.mxu0 0.0
    %1173 = vmatpush1.msra.mxu0 0.0
    %1174 = vmatprep.subr.mxu0 0.0
    %1175 = vmatpush1.msra.mxu0 0.0
    %1176 = vmatprep.subr.mxu0 0.0
    %1177 = vmatpush1.msra.mxu0 0.0
    %1178 = vmatprep.subr.mxu0 0.0
    %1179 = vmatpush1.msra.mxu0 0.0
    %1180 = vmatprep.subr.mxu0 0.0
    %1181 = vmatpush1.msra.mxu0 0.0
    %1182 = vmatprep.mubr.f32.mxu0 0.0
    %v1183 = vand.u32 %v905, 4294901760
    %v1184 = vsub.f32 %v905, %v1183
    %1185 = vmatmul.mubr.f32.gmra.mrb[0].mxu0 %v1184
    %v1186 = vpop.f32.mrb[0].mxu0
    %v1187 = vadd.f32 %v1095, %v1186
    %v1188 = vpop.f32.mrb[0].mxu0
    %1189 = vmatprep.mubr.f32.mxu0 0.0
    %v1190 = vand.u32 %v908, 4294901760
    %v1191 = vsub.f32 %v908, %v1190
    %1192 = vmatmul.mubr.f32.gmra.mrb[0].mxu0 %v1191
    %v1193 = vpop.f32.mrb[0].mxu0
    %v1194 = vadd.f32 %v1101, %v1193
    %v1195 = vpop.f32.mrb[0].mxu0
    %1196 = vmatprep.mubr.f32.mxu0 0.0
    %v1197 = vand.u32 %v911, 4294901760
    %v1198 = vsub.f32 %v911, %v1197
    %1199 = vmatmul.mubr.f32.gmra.mrb[0].mxu0 %v1198
    %v1200 = vpop.f32.mrb[0].mxu0
    %v1201 = vadd.f32 %v1107, %v1200
    %v1202 = vpop.f32.mrb[0].mxu0
    %1203 = vmatprep.mubr.f32.mxu0 0.0
    %v1204 = vand.u32 %v914, 4294901760
    %v1205 = vsub.f32 %v914, %v1204
    %1206 = vmatmul.mubr.f32.gmra.mrb[0].mxu0 %v1205
    %v1207 = vpop.f32.mrb[0].mxu0
    %v1208 = vadd.f32 %v1113, %v1207
    %v1209 = vpop.f32.mrb[0].mxu0
    %1210 = vdwg.mxu0
    %1211 = vmatprep.subr.mxu0 0.0
    %v1212 = vand.u32 %v902, 4294901760
    %1213 = vmatpush1.msra.mxu0 %v1212
    %1214 = vmatprep.subr.mxu0 0.0
    %1215 = vmatpush1.msra.mxu0 0.0
    %1216 = vmatprep.subr.mxu0 0.0
    %1217 = vmatpush1.msra.mxu0 0.0
    %1218 = vmatprep.subr.mxu0 0.0
    %1219 = vmatpush1.msra.mxu0 0.0
    %1220 = vmatprep.subr.mxu0 0.0
    %1221 = vmatpush1.msra.mxu0 0.0
    %1222 = vmatprep.subr.mxu0 0.0
    %1223 = vmatpush1.msra.mxu0 0.0
    %1224 = vmatprep.subr.mxu0 0.0
    %1225 = vmatpush1.msra.mxu0 0.0
    %1226 = vmatprep.subr.mxu0 0.0
    %1227 = vmatpush1.msra.mxu0 0.0
    %1228 = vmatprep.subr.mxu0 0.0
    %1229 = vmatpush1.msra.mxu0 0.0
    %1230 = vmatprep.subr.mxu0 0.0
    %1231 = vmatpush1.msra.mxu0 0.0
    %1232 = vmatprep.subr.mxu0 0.0
    %1233 = vmatpush1.msra.mxu0 0.0
    %1234 = vmatprep.subr.mxu0 0.0
    %1235 = vmatpush1.msra.mxu0 0.0
    %1236 = vmatprep.subr.mxu0 0.0
    %1237 = vmatpush1.msra.mxu0 0.0
    %1238 = vmatprep.subr.mxu0 0.0
    %1239 = vmatpush1.msra.mxu0 0.0
    %1240 = vmatprep.subr.mxu0 0.0
    %1241 = vmatpush1.msra.mxu0 0.0
    %1242 = vmatprep.subr.mxu0 0.0
    %1243 = vmatpush1.msra.mxu0 0.0
    %1244 = vmatprep.subr.mxu0 0.0
    %1245 = vmatpush1.msra.mxu0 0.0
    %1246 = vmatprep.subr.mxu0 0.0
    %1247 = vmatpush1.msra.mxu0 0.0
    %1248 = vmatprep.subr.mxu0 0.0
    %1249 = vmatpush1.msra.mxu0 0.0
    %1250 = vmatprep.subr.mxu0 0.0
    %1251 = vmatpush1.msra.mxu0 0.0
    %1252 = vmatprep.subr.mxu0 0.0
    %1253 = vmatpush1.msra.mxu0 0.0
    %1254 = vmatprep.subr.mxu0 0.0
    %1255 = vmatpush1.msra.mxu0 0.0
    %1256 = vmatprep.subr.mxu0 0.0
    %1257 = vmatpush1.msra.mxu0 0.0
    %1258 = vmatprep.subr.mxu0 0.0
    %1259 = vmatpush1.msra.mxu0 0.0
    %1260 = vmatprep.subr.mxu0 0.0
    %1261 = vmatpush1.msra.mxu0 0.0
    %1262 = vmatprep.subr.mxu0 0.0
    %1263 = vmatpush1.msra.mxu0 0.0
    %1264 = vmatprep.subr.mxu0 0.0
    %1265 = vmatpush1.msra.mxu0 0.0
    %1266 = vmatprep.subr.mxu0 0.0
    %1267 = vmatpush1.msra.mxu0 0.0
    %1268 = vmatprep.subr.mxu0 0.0
    %1269 = vmatpush1.msra.mxu0 0.0
    %1270 = vmatprep.subr.mxu0 0.0
    %1271 = vmatpush1.msra.mxu0 0.0
    %1272 = vmatprep.subr.mxu0 0.0
    %1273 = vmatpush1.msra.mxu0 0.0
    %1274 = vmatprep.subr.mxu0 0.0
    %1275 = vmatpush1.msra.mxu0 0.0
    %1276 = vmatprep.mubr.f32.mxu0 0.0
    %v1277 = vand.u32 %v905, 4294901760
    %v1278 = vsub.f32 %v905, %v1277
    %v1279 = vand.u32 %v1278, 4294901760
    %1280 = vmatmul.mubr.f32.gmra.mrb[0].mxu0 %v1279
    %v1281 = vpop.f32.mrb[0].mxu0
    %v1282 = vadd.f32 %v1187, %v1281
    %v1283 = vpop.f32.mrb[0].mxu0
    %1284 = vmatprep.mubr.f32.mxu0 0.0
    %v1285 = vand.u32 %v908, 4294901760
    %v1286 = vsub.f32 %v908, %v1285
    %v1287 = vand.u32 %v1286, 4294901760
    %1288 = vmatmul.mubr.f32.gmra.mrb[0].mxu0 %v1287
    %v1289 = vpop.f32.mrb[0].mxu0
    %v1290 = vadd.f32 %v1194, %v1289
    %v1291 = vpop.f32.mrb[0].mxu0
    %1292 = vmatprep.mubr.f32.mxu0 0.0
    %v1293 = vand.u32 %v911, 4294901760
    %v1294 = vsub.f32 %v911, %v1293
    %v1295 = vand.u32 %v1294, 4294901760
    %1296 = vmatmul.mubr.f32.gmra.mrb[0].mxu0 %v1295
    %v1297 = vpop.f32.mrb[0].mxu0
    %v1298 = vadd.f32 %v1201, %v1297
    %v1299 = vpop.f32.mrb[0].mxu0
    %1300 = vmatprep.mubr.f32.mxu0 0.0
    %v1301 = vand.u32 %v914, 4294901760
    %v1302 = vsub.f32 %v914, %v1301
    %v1303 = vand.u32 %v1302, 4294901760
    %1304 = vmatmul.mubr.f32.gmra.mrb[0].mxu0 %v1303
    %v1305 = vpop.f32.mrb[0].mxu0
    %v1306 = vadd.f32 %v1208, %v1305
    %v1307 = vpop.f32.mrb[0].mxu0
    %1308 = vdwg.mxu0
    %1309 = vmatprep.subr.mxu0 0.0
    %v1310 = vand.u32 %v902, 4294901760
    %v1311 = vsub.f32 %v902, %v1310
    %v1312 = vand.u32 %v1311, 4294901760
    %1313 = vmatpush1.msra.mxu0 %v1312
    %1314 = vmatprep.subr.mxu0 0.0
    %1315 = vmatpush1.msra.mxu0 0.0
    %1316 = vmatprep.subr.mxu0 0.0
    %1317 = vmatpush1.msra.mxu0 0.0
    %1318 = vmatprep.subr.mxu0 0.0
    %1319 = vmatpush1.msra.mxu0 0.0
    %1320 = vmatprep.subr.mxu0 0.0
    %1321 = vmatpush1.msra.mxu0 0.0
    %1322 = vmatprep.subr.mxu0 0.0
    %1323 = vmatpush1.msra.mxu0 0.0
    %1324 = vmatprep.subr.mxu0 0.0
    %1325 = vmatpush1.msra.mxu0 0.0
    %1326 = vmatprep.subr.mxu0 0.0
    %1327 = vmatpush1.msra.mxu0 0.0
    %1328 = vmatprep.subr.mxu0 0.0
    %1329 = vmatpush1.msra.mxu0 0.0
    %1330 = vmatprep.subr.mxu0 0.0
    %1331 = vmatpush1.msra.mxu0 0.0
    %1332 = vmatprep.subr.mxu0 0.0
    %1333 = vmatpush1.msra.mxu0 0.0
    %1334 = vmatprep.subr.mxu0 0.0
    %1335 = vmatpush1.msra.mxu0 0.0
    %1336 = vmatprep.subr.mxu0 0.0
    %1337 = vmatpush1.msra.mxu0 0.0
    %1338 = vmatprep.subr.mxu0 0.0
    %1339 = vmatpush1.msra.mxu0 0.0
    %1340 = vmatprep.subr.mxu0 0.0
    %1341 = vmatpush1.msra.mxu0 0.0
    %1342 = vmatprep.subr.mxu0 0.0
    %1343 = vmatpush1.msra.mxu0 0.0
    %1344 = vmatprep.subr.mxu0 0.0
    %1345 = vmatpush1.msra.mxu0 0.0
    %1346 = vmatprep.subr.mxu0 0.0
    %1347 = vmatpush1.msra.mxu0 0.0
    %1348 = vmatprep.subr.mxu0 0.0
    %1349 = vmatpush1.msra.mxu0 0.0
    %1350 = vmatprep.subr.mxu0 0.0
    %1351 = vmatpush1.msra.mxu0 0.0
    %1352 = vmatprep.subr.mxu0 0.0
    %1353 = vmatpush1.msra.mxu0 0.0
    %1354 = vmatprep.subr.mxu0 0.0
    %1355 = vmatpush1.msra.mxu0 0.0
    %1356 = vmatprep.subr.mxu0 0.0
    %1357 = vmatpush1.msra.mxu0 0.0
    %1358 = vmatprep.subr.mxu0 0.0
    %1359 = vmatpush1.msra.mxu0 0.0
    %1360 = vmatprep.subr.mxu0 0.0
    %1361 = vmatpush1.msra.mxu0 0.0
    %1362 = vmatprep.subr.mxu0 0.0
    %1363 = vmatpush1.msra.mxu0 0.0
    %1364 = vmatprep.subr.mxu0 0.0
    %1365 = vmatpush1.msra.mxu0 0.0
    %1366 = vmatprep.subr.mxu0 0.0
    %1367 = vmatpush1.msra.mxu0 0.0
    %1368 = vmatprep.subr.mxu0 0.0
    %1369 = vmatpush1.msra.mxu0 0.0
    %1370 = vmatprep.subr.mxu0 0.0
    %1371 = vmatpush1.msra.mxu0 0.0
    %1372 = vmatprep.subr.mxu0 0.0
    %1373 = vmatpush1.msra.mxu0 0.0
    %1374 = vmatprep.subr.mxu0 0.0
    %1375 = vmatpush1.msra.mxu0 0.0
    %1376 = vmatprep.mubr.f32.mxu0 0.0
    %v1377 = vand.u32 %v905, 4294901760
    %1378 = vmatmul.mubr.f32.gmra.mrb[0].mxu0 %v1377
    %v1379 = vpop.f32.mrb[0].mxu0
    %v1380 = vadd.f32 %v1282, %v1379
    %v1381 = vpop.f32.mrb[0].mxu0
    %1382 = vmatprep.mubr.f32.mxu0 0.0
    %v1383 = vand.u32 %v908, 4294901760
    %1384 = vmatmul.mubr.f32.gmra.mrb[0].mxu0 %v1383
    %v1385 = vpop.f32.mrb[0].mxu0
    %v1386 = vadd.f32 %v1290, %v1385
    %v1387 = vpop.f32.mrb[0].mxu0
    %1388 = vmatprep.mubr.f32.mxu0 0.0
    %v1389 = vand.u32 %v911, 4294901760
    %1390 = vmatmul.mubr.f32.gmra.mrb[0].mxu0 %v1389
    %v1391 = vpop.f32.mrb[0].mxu0
    %v1392 = vadd.f32 %v1298, %v1391
    %v1393 = vpop.f32.mrb[0].mxu0
    %1394 = vmatprep.mubr.f32.mxu0 0.0
    %v1395 = vand.u32 %v914, 4294901760
    %1396 = vmatmul.mubr.f32.gmra.mrb[0].mxu0 %v1395
    %v1397 = vpop.f32.mrb[0].mxu0
    %v1398 = vadd.f32 %v1306, %v1397
    %v1399 = vpop.f32.mrb[0].mxu0
    %1400 = vdwg.mxu0
    %1401 = vmatprep.subr.mxu0 0.0
    %v1402 = vand.u32 %v902, 4294901760
    %1403 = vmatpush1.msra.mxu0 %v1402
    %1404 = vmatprep.subr.mxu0 0.0
    %1405 = vmatpush1.msra.mxu0 0.0
    %1406 = vmatprep.subr.mxu0 0.0
    %1407 = vmatpush1.msra.mxu0 0.0
    %1408 = vmatprep.subr.mxu0 0.0
    %1409 = vmatpush1.msra.mxu0 0.0
    %1410 = vmatprep.subr.mxu0 0.0
    %1411 = vmatpush1.msra.mxu0 0.0
    %1412 = vmatprep.subr.mxu0 0.0
    %1413 = vmatpush1.msra.mxu0 0.0
    %1414 = vmatprep.subr.mxu0 0.0
    %1415 = vmatpush1.msra.mxu0 0.0
    %1416 = vmatprep.subr.mxu0 0.0
    %1417 = vmatpush1.msra.mxu0 0.0
    %1418 = vmatprep.subr.mxu0 0.0
    %1419 = vmatpush1.msra.mxu0 0.0
    %1420 = vmatprep.subr.mxu0 0.0
    %1421 = vmatpush1.msra.mxu0 0.0
    %1422 = vmatprep.subr.mxu0 0.0
    %1423 = vmatpush1.msra.mxu0 0.0
    %1424 = vmatprep.subr.mxu0 0.0
    %1425 = vmatpush1.msra.mxu0 0.0
    %1426 = vmatprep.subr.mxu0 0.0
    %1427 = vmatpush1.msra.mxu0 0.0
    %1428 = vmatprep.subr.mxu0 0.0
    %1429 = vmatpush1.msra.mxu0 0.0
    %1430 = vmatprep.subr.mxu0 0.0
    %1431 = vmatpush1.msra.mxu0 0.0
    %1432 = vmatprep.subr.mxu0 0.0
    %1433 = vmatpush1.msra.mxu0 0.0
    %1434 = vmatprep.subr.mxu0 0.0
    %1435 = vmatpush1.msra.mxu0 0.0
    %1436 = vmatprep.subr.mxu0 0.0
    %1437 = vmatpush1.msra.mxu0 0.0
    %1438 = vmatprep.subr.mxu0 0.0
    %1439 = vmatpush1.msra.mxu0 0.0
    %1440 = vmatprep.subr.mxu0 0.0
    %1441 = vmatpush1.msra.mxu0 0.0
    %1442 = vmatprep.subr.mxu0 0.0
    %1443 = vmatpush1.msra.mxu0 0.0
    %1444 = vmatprep.subr.mxu0 0.0
    %1445 = vmatpush1.msra.mxu0 0.0
    %1446 = vmatprep.subr.mxu0 0.0
    %1447 = vmatpush1.msra.mxu0 0.0
    %1448 = vmatprep.subr.mxu0 0.0
    %1449 = vmatpush1.msra.mxu0 0.0
    %1450 = vmatprep.subr.mxu0 0.0
    %1451 = vmatpush1.msra.mxu0 0.0
    %1452 = vmatprep.subr.mxu0 0.0
    %1453 = vmatpush1.msra.mxu0 0.0
    %1454 = vmatprep.subr.mxu0 0.0
    %1455 = vmatpush1.msra.mxu0 0.0
    %1456 = vmatprep.subr.mxu0 0.0
    %1457 = vmatpush1.msra.mxu0 0.0
    %1458 = vmatprep.subr.mxu0 0.0
    %1459 = vmatpush1.msra.mxu0 0.0
    %1460 = vmatprep.subr.mxu0 0.0
    %1461 = vmatpush1.msra.mxu0 0.0
    %1462 = vmatprep.subr.mxu0 0.0
    %1463 = vmatpush1.msra.mxu0 0.0
    %1464 = vmatprep.subr.mxu0 0.0
    %1465 = vmatpush1.msra.mxu0 0.0
    %1466 = vmatprep.mubr.f32.mxu0 0.0
    %v1467 = vand.u32 %v905, 4294901760
    %1468 = vmatmul.mubr.f32.gmra.mrb[0].mxu0 %v1467
    %v1469 = vpop.f32.mrb[0].mxu0
    %v1470 = vadd.f32 %v1380, %v1469
    %v1471 = vpop.f32.mrb[0].mxu0
    %1472 = vmatprep.mubr.f32.mxu0 0.0
    %v1473 = vand.u32 %v908, 4294901760
    %1474 = vmatmul.mubr.f32.gmra.mrb[0].mxu0 %v1473
    %v1475 = vpop.f32.mrb[0].mxu0
    %v1476 = vadd.f32 %v1386, %v1475
    %v1477 = vpop.f32.mrb[0].mxu0
    %1478 = vmatprep.mubr.f32.mxu0 0.0
    %v1479 = vand.u32 %v911, 4294901760
    %1480 = vmatmul.mubr.f32.gmra.mrb[0].mxu0 %v1479
    %v1481 = vpop.f32.mrb[0].mxu0
    %v1482 = vadd.f32 %v1392, %v1481
    %v1483 = vpop.f32.mrb[0].mxu0
    %1484 = vmatprep.mubr.f32.mxu0 0.0
    %v1485 = vand.u32 %v914, 4294901760
    %1486 = vmatmul.mubr.f32.gmra.mrb[0].mxu0 %v1485
    %v1487 = vpop.f32.mrb[0].mxu0
    %v1488 = vadd.f32 %v1398, %v1487
    %v1489 = vpop.f32.mrb[0].mxu0
    %1490 = vdwg.mxu0
    %v1491 = vmul.f32 %v1470, 1.000001
    %v1492 = vmul.f32 %v1476, 1.000001
    %v1493 = vmul.f32 %v1482, 1.000001
    %v1494 = vmul.f32 %v1488, 1.000001
    %v1495 = vsub.f32 %v1491, %v256
    %v1496 = vsub.f32 %v1492, %v258
    %v1497 = vsub.f32 %v1493, %v260
    %v1498 = vsub.f32 %v1494, %v262
    %v1499 = vlog2.pop %v1495
    %v1500 = vmul.f32 %v1499, 0.6931472
    %v1501 = vlog2.pop %v1496
    %v1502 = vmul.f32 %v1501, 0.6931472
    %v1503 = vlog2.pop %v1497
    %v1504 = vmul.f32 %v1503, 0.6931472
    %v1505 = vlog2.pop %v1498
    %v1506 = vmul.f32 %v1505, 0.6931472
    %v1507 = vld [vmem:[%s3] sm:$0x1]
    %v1509 = vlaneseq
    %v1510 = vshrl.u32 %v1509, 7
    %v1511 = vsub.s32 0, %v1510
    %v1512 = vrot.slane %v1507, %v1511
    %v1514 = vmul.f32 %v1500, %v1512
    %v1515 = vmul.f32 %v1502, %v1512
    %v1516 = vmul.f32 %v1504, %v1512
    %v1517 = vmul.f32 %v1506, %v1512
    %v1519 = vsel %vm267, %v1514, 0
    %v1522 = vsel %vm267, %v1515, 0
    %v1525 = vsel %vm267, %v1516, 0
    %v1528 = vsel %vm267, %v1517, 0
    %1530 = vmatprep.subr.mxu0 0.0
    %v1531 = vand.u32 %v263, 4294901760
    %1532 = vmatpush1.msra.mxu0 %v1531
    %1533 = vmatprep.subr.mxu0 0.0
    %v1534 = vand.u32 %v264, 4294901760
    %1535 = vmatpush1.msra.mxu0 %v1534
    %1536 = vmatprep.subr.mxu0 0.0
    %v1537 = vand.u32 %v265, 4294901760
    %1538 = vmatpush1.msra.mxu0 %v1537
    %1539 = vmatprep.subr.mxu0 0.0
    %v1540 = vand.u32 %v266, 4294901760
    %1541 = vmatpush1.msra.mxu0 %v1540
    %1542 = vmatprep.subr.mxu0 0.0
    %1543 = vmatpush1.msra.mxu0 0.0
    %1544 = vmatprep.subr.mxu0 0.0
    %1545 = vmatpush1.msra.mxu0 0.0
    %1546 = vmatprep.subr.mxu0 0.0
    %1547 = vmatpush1.msra.mxu0 0.0
    %1548 = vmatprep.subr.mxu0 0.0
    %1549 = vmatpush1.msra.mxu0 0.0
    %1550 = vmatprep.subr.mxu0 0.0
    %1551 = vmatpush1.msra.mxu0 0.0
    %1552 = vmatprep.subr.mxu0 0.0
    %1553 = vmatpush1.msra.mxu0 0.0
    %1554 = vmatprep.subr.mxu0 0.0
    %1555 = vmatpush1.msra.mxu0 0.0
    %1556 = vmatprep.subr.mxu0 0.0
    %1557 = vmatpush1.msra.mxu0 0.0
    %1558 = vmatprep.subr.mxu0 0.0
    %1559 = vmatpush1.msra.mxu0 0.0
    %1560 = vmatprep.subr.mxu0 0.0
    %1561 = vmatpush1.msra.mxu0 0.0
    %1562 = vmatprep.subr.mxu0 0.0
    %1563 = vmatpush1.msra.mxu0 0.0
    %1564 = vmatprep.subr.mxu0 0.0
    %1565 = vmatpush1.msra.mxu0 0.0
    %1566 = vmatprep.subr.mxu0 0.0
    %1567 = vmatpush1.msra.mxu0 0.0
    %1568 = vmatprep.subr.mxu0 0.0
    %1569 = vmatpush1.msra.mxu0 0.0
    %1570 = vmatprep.subr.mxu0 0.0
    %1571 = vmatpush1.msra.mxu0 0.0
    %1572 = vmatprep.subr.mxu0 0.0
    %1573 = vmatpush1.msra.mxu0 0.0
    %1574 = vmatprep.subr.mxu0 0.0
    %1575 = vmatpush1.msra.mxu0 0.0
    %1576 = vmatprep.subr.mxu0 0.0
    %1577 = vmatpush1.msra.mxu0 0.0
    %1578 = vmatprep.subr.mxu0 0.0
    %1579 = vmatpush1.msra.mxu0 0.0
    %1580 = vmatprep.subr.mxu0 0.0
    %1581 = vmatpush1.msra.mxu0 0.0
    %1582 = vmatprep.subr.mxu0 0.0
    %1583 = vmatpush1.msra.mxu0 0.0
    %1584 = vmatprep.subr.mxu0 0.0
    %1585 = vmatpush1.msra.mxu0 0.0
    %1586 = vmatprep.subr.mxu0 0.0
    %1587 = vmatpush1.msra.mxu0 0.0
    %1588 = vmatprep.subr.mxu0 0.0
    %1589 = vmatpush1.msra.mxu0 0.0
    %1590 = vmatprep.subr.mxu0 0.0
    %1591 = vmatpush1.msra.mxu0 0.0
    %1592 = vmatprep.subr.mxu0 0.0
    %1593 = vmatpush1.msra.mxu0 0.0
    %1594 = vmatprep.subr.mxu0 0.0
    %1595 = vmatpush1.msra.mxu0 0.0
    %1596 = vmatprep.subr.mxu0 0.0
    %1597 = vmatpush1.msra.mxu0 0.0
    %1598 = vmatprep.mubr.f32.mxu0 0.0
    %v1599 = vand.u32 %v1519, 4294901760
    %v1600 = vsub.f32 %v1519, %v1599
    %v1601 = vand.u32 %v1600, 4294901760
    %v1602 = vsub.f32 %v1600, %v1601
    %v1603 = vand.u32 %v1602, 4294901760
    %1604 = vmatmul.mubr.f32.gmra.mrb[0].mxu0 %v1603
    %v1605 = vpop.f32.mrb[0].mxu0
    %v1606 = vadd.f32 0.0, %v1605
    %v1607 = vpop.f32.mrb[0].mxu0
    %1608 = vmatprep.mubr.f32.mxu0 0.0
    %v1609 = vand.u32 %v1522, 4294901760
    %v1610 = vsub.f32 %v1522, %v1609
    %v1611 = vand.u32 %v1610, 4294901760
    %v1612 = vsub.f32 %v1610, %v1611
    %v1613 = vand.u32 %v1612, 4294901760
    %1614 = vmatmul.mubr.f32.gmra.mrb[0].mxu0 %v1613
    %v1615 = vpop.f32.mrb[0].mxu0
    %v1616 = vadd.f32 0.0, %v1615
    %v1617 = vpop.f32.mrb[0].mxu0
    %1618 = vmatprep.mubr.f32.mxu0 0.0
    %v1619 = vand.u32 %v1525, 4294901760
    %v1620 = vsub.f32 %v1525, %v1619
    %v1621 = vand.u32 %v1620, 4294901760
    %v1622 = vsub.f32 %v1620, %v1621
    %v1623 = vand.u32 %v1622, 4294901760
    %1624 = vmatmul.mubr.f32.gmra.mrb[0].mxu0 %v1623
    %v1625 = vpop.f32.mrb[0].mxu0
    %v1626 = vadd.f32 0.0, %v1625
    %v1627 = vpop.f32.mrb[0].mxu0
    %1628 = vmatprep.mubr.f32.mxu0 0.0
    %v1629 = vand.u32 %v1528, 4294901760
    %v1630 = vsub.f32 %v1528, %v1629
    %v1631 = vand.u32 %v1630, 4294901760
    %v1632 = vsub.f32 %v1630, %v1631
    %v1633 = vand.u32 %v1632, 4294901760
    %1634 = vmatmul.mubr.f32.gmra.mrb[0].mxu0 %v1633
    %v1635 = vpop.f32.mrb[0].mxu0
    %v1636 = vadd.f32 0.0, %v1635
    %v1637 = vpop.f32.mrb[0].mxu0
    %1638 = vdwg.mxu0
    %1639 = vmatprep.subr.mxu0 0.0
    %v1640 = vand.u32 %v263, 4294901760
    %v1641 = vsub.f32 %v263, %v1640
    %v1642 = vand.u32 %v1641, 4294901760
    %v1643 = vsub.f32 %v1641, %v1642
    %v1644 = vand.u32 %v1643, 4294901760
    %1645 = vmatpush1.msra.mxu0 %v1644
    %1646 = vmatprep.subr.mxu0 0.0
    %v1647 = vand.u32 %v264, 4294901760
    %v1648 = vsub.f32 %v264, %v1647
    %v1649 = vand.u32 %v1648, 4294901760
    %v1650 = vsub.f32 %v1648, %v1649
    %v1651 = vand.u32 %v1650, 4294901760
    %1652 = vmatpush1.msra.mxu0 %v1651
    %1653 = vmatprep.subr.mxu0 0.0
    %v1654 = vand.u32 %v265, 4294901760
    %v1655 = vsub.f32 %v265, %v1654
    %v1656 = vand.u32 %v1655, 4294901760
    %v1657 = vsub.f32 %v1655, %v1656
    %v1658 = vand.u32 %v1657, 4294901760
    %1659 = vmatpush1.msra.mxu0 %v1658
    %1660 = vmatprep.subr.mxu0 0.0
    %v1661 = vand.u32 %v266, 4294901760
    %v1662 = vsub.f32 %v266, %v1661
    %v1663 = vand.u32 %v1662, 4294901760
    %v1664 = vsub.f32 %v1662, %v1663
    %v1665 = vand.u32 %v1664, 4294901760
    %1666 = vmatpush1.msra.mxu0 %v1665
    %1667 = vmatprep.subr.mxu0 0.0
    %1668 = vmatpush1.msra.mxu0 0.0
    %1669 = vmatprep.subr.mxu0 0.0
    %1670 = vmatpush1.msra.mxu0 0.0
    %1671 = vmatprep.subr.mxu0 0.0
    %1672 = vmatpush1.msra.mxu0 0.0
    %1673 = vmatprep.subr.mxu0 0.0
    %1674 = vmatpush1.msra.mxu0 0.0
    %1675 = vmatprep.subr.mxu0 0.0
    %1676 = vmatpush1.msra.mxu0 0.0
    %1677 = vmatprep.subr.mxu0 0.0
    %1678 = vmatpush1.msra.mxu0 0.0
    %1679 = vmatprep.subr.mxu0 0.0
    %1680 = vmatpush1.msra.mxu0 0.0
    %1681 = vmatprep.subr.mxu0 0.0
    %1682 = vmatpush1.msra.mxu0 0.0
    %1683 = vmatprep.subr.mxu0 0.0
    %1684 = vmatpush1.msra.mxu0 0.0
    %1685 = vmatprep.subr.mxu0 0.0
    %1686 = vmatpush1.msra.mxu0 0.0
    %1687 = vmatprep.subr.mxu0 0.0
    %1688 = vmatpush1.msra.mxu0 0.0
    %1689 = vmatprep.subr.mxu0 0.0
    %1690 = vmatpush1.msra.mxu0 0.0
    %1691 = vmatprep.subr.mxu0 0.0
    %1692 = vmatpush1.msra.mxu0 0.0
    %1693 = vmatprep.subr.mxu0 0.0
    %1694 = vmatpush1.msra.mxu0 0.0
    %1695 = vmatprep.subr.mxu0 0.0
    %1696 = vmatpush1.msra.mxu0 0.0
    %1697 = vmatprep.subr.mxu0 0.0
    %1698 = vmatpush1.msra.mxu0 0.0
    %1699 = vmatprep.subr.mxu0 0.0
    %1700 = vmatpush1.msra.mxu0 0.0
    %1701 = vmatprep.subr.mxu0 0.0
    %1702 = vmatpush1.msra.mxu0 0.0
    %1703 = vmatprep.subr.mxu0 0.0
    %1704 = vmatpush1.msra.mxu0 0.0
    %1705 = vmatprep.subr.mxu0 0.0
    %1706 = vmatpush1.msra.mxu0 0.0
    %1707 = vmatprep.subr.mxu0 0.0
    %1708 = vmatpush1.msra.mxu0 0.0
    %1709 = vmatprep.subr.mxu0 0.0
    %1710 = vmatpush1.msra.mxu0 0.0
    %1711 = vmatprep.subr.mxu0 0.0
    %1712 = vmatpush1.msra.mxu0 0.0
    %1713 = vmatprep.subr.mxu0 0.0
    %1714 = vmatpush1.msra.mxu0 0.0
    %1715 = vmatprep.subr.mxu0 0.0
    %1716 = vmatpush1.msra.mxu0 0.0
    %1717 = vmatprep.subr.mxu0 0.0
    %1718 = vmatpush1.msra.mxu0 0.0
    %1719 = vmatprep.subr.mxu0 0.0
    %1720 = vmatpush1.msra.mxu0 0.0
    %1721 = vmatprep.subr.mxu0 0.0
    %1722 = vmatpush1.msra.mxu0 0.0
    %1723 = vmatprep.mubr.f32.mxu0 0.0
    %v1724 = vand.u32 %v1519, 4294901760
    %1725 = vmatmul.mubr.f32.gmra.mrb[0].mxu0 %v1724
    %v1726 = vpop.f32.mrb[0].mxu0
    %v1727 = vadd.f32 %v1606, %v1726
    %v1728 = vpop.f32.mrb[0].mxu0
    %1729 = vmatprep.mubr.f32.mxu0 0.0
    %v1730 = vand.u32 %v1522, 4294901760
    %1731 = vmatmul.mubr.f32.gmra.mrb[0].mxu0 %v1730
    %v1732 = vpop.f32.mrb[0].mxu0
    %v1733 = vadd.f32 %v1616, %v1732
    %v1734 = vpop.f32.mrb[0].mxu0
    %1735 = vmatprep.mubr.f32.mxu0 0.0
    %v1736 = vand.u32 %v1525, 4294901760
    %1737 = vmatmul.mubr.f32.gmra.mrb[0].mxu0 %v1736
    %v1738 = vpop.f32.mrb[0].mxu0
    %v1739 = vadd.f32 %v1626, %v1738
    %v1740 = vpop.f32.mrb[0].mxu0
    %1741 = vmatprep.mubr.f32.mxu0 0.0
    %v1742 = vand.u32 %v1528, 4294901760
    %1743 = vmatmul.mubr.f32.gmra.mrb[0].mxu0 %v1742
    %v1744 = vpop.f32.mrb[0].mxu0
    %v1745 = vadd.f32 %v1636, %v1744
    %v1746 = vpop.f32.mrb[0].mxu0
    %1747 = vdwg.mxu0
    %1748 = vmatprep.subr.mxu0 0.0
    %v1749 = vand.u32 %v263, 4294901760
    %v1750 = vsub.f32 %v263, %v1749
    %1751 = vmatpush1.msra.mxu0 %v1750
    %1752 = vmatprep.subr.mxu0 0.0
    %v1753 = vand.u32 %v264, 4294901760
    %v1754 = vsub.f32 %v264, %v1753
    %1755 = vmatpush1.msra.mxu0 %v1754
    %1756 = vmatprep.subr.mxu0 0.0
    %v1757 = vand.u32 %v265, 4294901760
    %v1758 = vsub.f32 %v265, %v1757
    %1759 = vmatpush1.msra.mxu0 %v1758
    %1760 = vmatprep.subr.mxu0 0.0
    %v1761 = vand.u32 %v266, 4294901760
    %v1762 = vsub.f32 %v266, %v1761
    %1763 = vmatpush1.msra.mxu0 %v1762
    %1764 = vmatprep.subr.mxu0 0.0
    %1765 = vmatpush1.msra.mxu0 0.0
    %1766 = vmatprep.subr.mxu0 0.0
    %1767 = vmatpush1.msra.mxu0 0.0
    %1768 = vmatprep.subr.mxu0 0.0
    %1769 = vmatpush1.msra.mxu0 0.0
    %1770 = vmatprep.subr.mxu0 0.0
    %1771 = vmatpush1.msra.mxu0 0.0
    %1772 = vmatprep.subr.mxu0 0.0
    %1773 = vmatpush1.msra.mxu0 0.0
    %1774 = vmatprep.subr.mxu0 0.0
    %1775 = vmatpush1.msra.mxu0 0.0
    %1776 = vmatprep.subr.mxu0 0.0
    %1777 = vmatpush1.msra.mxu0 0.0
    %1778 = vmatprep.subr.mxu0 0.0
    %1779 = vmatpush1.msra.mxu0 0.0
    %1780 = vmatprep.subr.mxu0 0.0
    %1781 = vmatpush1.msra.mxu0 0.0
    %1782 = vmatprep.subr.mxu0 0.0
    %1783 = vmatpush1.msra.mxu0 0.0
    %1784 = vmatprep.subr.mxu0 0.0
    %1785 = vmatpush1.msra.mxu0 0.0
    %1786 = vmatprep.subr.mxu0 0.0
    %1787 = vmatpush1.msra.mxu0 0.0
    %1788 = vmatprep.subr.mxu0 0.0
    %1789 = vmatpush1.msra.mxu0 0.0
    %1790 = vmatprep.subr.mxu0 0.0
    %1791 = vmatpush1.msra.mxu0 0.0
    %1792 = vmatprep.subr.mxu0 0.0
    %1793 = vmatpush1.msra.mxu0 0.0
    %1794 = vmatprep.subr.mxu0 0.0
    %1795 = vmatpush1.msra.mxu0 0.0
    %1796 = vmatprep.subr.mxu0 0.0
    %1797 = vmatpush1.msra.mxu0 0.0
    %1798 = vmatprep.subr.mxu0 0.0
    %1799 = vmatpush1.msra.mxu0 0.0
    %1800 = vmatprep.subr.mxu0 0.0
    %1801 = vmatpush1.msra.mxu0 0.0
    %1802 = vmatprep.subr.mxu0 0.0
    %1803 = vmatpush1.msra.mxu0 0.0
    %1804 = vmatprep.subr.mxu0 0.0
    %1805 = vmatpush1.msra.mxu0 0.0
    %1806 = vmatprep.subr.mxu0 0.0
    %1807 = vmatpush1.msra.mxu0 0.0
    %1808 = vmatprep.subr.mxu0 0.0
    %1809 = vmatpush1.msra.mxu0 0.0
    %1810 = vmatprep.subr.mxu0 0.0
    %1811 = vmatpush1.msra.mxu0 0.0
    %1812 = vmatprep.subr.mxu0 0.0
    %1813 = vmatpush1.msra.mxu0 0.0
    %1814 = vmatprep.subr.mxu0 0.0
    %1815 = vmatpush1.msra.mxu0 0.0
    %1816 = vmatprep.subr.mxu0 0.0
    %1817 = vmatpush1.msra.mxu0 0.0
    %1818 = vmatprep.subr.mxu0 0.0
    %1819 = vmatpush1.msra.mxu0 0.0
    %1820 = vmatprep.mubr.f32.mxu0 0.0
    %v1821 = vand.u32 %v1519, 4294901760
    %v1822 = vsub.f32 %v1519, %v1821
    %1823 = vmatmul.mubr.f32.gmra.mrb[0].mxu0 %v1822
    %v1824 = vpop.f32.mrb[0].mxu0
    %v1825 = vadd.f32 %v1727, %v1824
    %v1826 = vpop.f32.mrb[0].mxu0
    %1827 = vmatprep.mubr.f32.mxu0 0.0
    %v1828 = vand.u32 %v1522, 4294901760
    %v1829 = vsub.f32 %v1522, %v1828
    %1830 = vmatmul.mubr.f32.gmra.mrb[0].mxu0 %v1829
    %v1831 = vpop.f32.mrb[0].mxu0
    %v1832 = vadd.f32 %v1733, %v1831
    %v1833 = vpop.f32.mrb[0].mxu0
    %1834 = vmatprep.mubr.f32.mxu0 0.0
    %v1835 = vand.u32 %v1525, 4294901760
    %v1836 = vsub.f32 %v1525, %v1835
    %1837 = vmatmul.mubr.f32.gmra.mrb[0].mxu0 %v1836
    %v1838 = vpop.f32.mrb[0].mxu0
    %v1839 = vadd.f32 %v1739, %v1838
    %v1840 = vpop.f32.mrb[0].mxu0
    %1841 = vmatprep.mubr.f32.mxu0 0.0
    %v1842 = vand.u32 %v1528, 4294901760
    %v1843 = vsub.f32 %v1528, %v1842
    %1844 = vmatmul.mubr.f32.gmra.mrb[0].mxu0 %v1843
    %v1845 = vpop.f32.mrb[0].mxu0
    %v1846 = vadd.f32 %v1745, %v1845
    %v1847 = vpop.f32.mrb[0].mxu0
    %1848 = vdwg.mxu0
    %1849 = vmatprep.subr.mxu0 0.0
    %v1850 = vand.u32 %v263, 4294901760
    %1851 = vmatpush1.msra.mxu0 %v1850
    %1852 = vmatprep.subr.mxu0 0.0
    %v1853 = vand.u32 %v264, 4294901760
    %1854 = vmatpush1.msra.mxu0 %v1853
    %1855 = vmatprep.subr.mxu0 0.0
    %v1856 = vand.u32 %v265, 4294901760
    %1857 = vmatpush1.msra.mxu0 %v1856
    %1858 = vmatprep.subr.mxu0 0.0
    %v1859 = vand.u32 %v266, 4294901760
    %1860 = vmatpush1.msra.mxu0 %v1859
    %1861 = vmatprep.subr.mxu0 0.0
    %1862 = vmatpush1.msra.mxu0 0.0
    %1863 = vmatprep.subr.mxu0 0.0
    %1864 = vmatpush1.msra.mxu0 0.0
    %1865 = vmatprep.subr.mxu0 0.0
    %1866 = vmatpush1.msra.mxu0 0.0
    %1867 = vmatprep.subr.mxu0 0.0
    %1868 = vmatpush1.msra.mxu0 0.0
    %1869 = vmatprep.subr.mxu0 0.0
    %1870 = vmatpush1.msra.mxu0 0.0
    %1871 = vmatprep.subr.mxu0 0.0
    %1872 = vmatpush1.msra.mxu0 0.0
    %1873 = vmatprep.subr.mxu0 0.0
    %1874 = vmatpush1.msra.mxu0 0.0
    %1875 = vmatprep.subr.mxu0 0.0
    %1876 = vmatpush1.msra.mxu0 0.0
    %1877 = vmatprep.subr.mxu0 0.0
    %1878 = vmatpush1.msra.mxu0 0.0
    %1879 = vmatprep.subr.mxu0 0.0
    %1880 = vmatpush1.msra.mxu0 0.0
    %1881 = vmatprep.subr.mxu0 0.0
    %1882 = vmatpush1.msra.mxu0 0.0
    %1883 = vmatprep.subr.mxu0 0.0
    %1884 = vmatpush1.msra.mxu0 0.0
    %1885 = vmatprep.subr.mxu0 0.0
    %1886 = vmatpush1.msra.mxu0 0.0
    %1887 = vmatprep.subr.mxu0 0.0
    %1888 = vmatpush1.msra.mxu0 0.0
    %1889 = vmatprep.subr.mxu0 0.0
    %1890 = vmatpush1.msra.mxu0 0.0
    %1891 = vmatprep.subr.mxu0 0.0
    %1892 = vmatpush1.msra.mxu0 0.0
    %1893 = vmatprep.subr.mxu0 0.0
    %1894 = vmatpush1.msra.mxu0 0.0
    %1895 = vmatprep.subr.mxu0 0.0
    %1896 = vmatpush1.msra.mxu0 0.0
    %1897 = vmatprep.subr.mxu0 0.0
    %1898 = vmatpush1.msra.mxu0 0.0
    %1899 = vmatprep.subr.mxu0 0.0
    %1900 = vmatpush1.msra.mxu0 0.0
    %1901 = vmatprep.subr.mxu0 0.0
    %1902 = vmatpush1.msra.mxu0 0.0
    %1903 = vmatprep.subr.mxu0 0.0
    %1904 = vmatpush1.msra.mxu0 0.0
    %1905 = vmatprep.subr.mxu0 0.0
    %1906 = vmatpush1.msra.mxu0 0.0
    %1907 = vmatprep.subr.mxu0 0.0
    %1908 = vmatpush1.msra.mxu0 0.0
    %1909 = vmatprep.subr.mxu0 0.0
    %1910 = vmatpush1.msra.mxu0 0.0
    %1911 = vmatprep.subr.mxu0 0.0
    %1912 = vmatpush1.msra.mxu0 0.0
    %1913 = vmatprep.subr.mxu0 0.0
    %1914 = vmatpush1.msra.mxu0 0.0
    %1915 = vmatprep.subr.mxu0 0.0
    %1916 = vmatpush1.msra.mxu0 0.0
    %1917 = vmatprep.mubr.f32.mxu0 0.0
    %v1918 = vand.u32 %v1519, 4294901760
    %v1919 = vsub.f32 %v1519, %v1918
    %v1920 = vand.u32 %v1919, 4294901760
    %1921 = vmatmul.mubr.f32.gmra.mrb[0].mxu0 %v1920
    %v1922 = vpop.f32.mrb[0].mxu0
    %v1923 = vadd.f32 %v1825, %v1922
    %v1924 = vpop.f32.mrb[0].mxu0
    %1925 = vmatprep.mubr.f32.mxu0 0.0
    %v1926 = vand.u32 %v1522, 4294901760
    %v1927 = vsub.f32 %v1522, %v1926
    %v1928 = vand.u32 %v1927, 4294901760
    %1929 = vmatmul.mubr.f32.gmra.mrb[0].mxu0 %v1928
    %v1930 = vpop.f32.mrb[0].mxu0
    %v1931 = vadd.f32 %v1832, %v1930
    %v1932 = vpop.f32.mrb[0].mxu0
    %1933 = vmatprep.mubr.f32.mxu0 0.0
    %v1934 = vand.u32 %v1525, 4294901760
    %v1935 = vsub.f32 %v1525, %v1934
    %v1936 = vand.u32 %v1935, 4294901760
    %1937 = vmatmul.mubr.f32.gmra.mrb[0].mxu0 %v1936
    %v1938 = vpop.f32.mrb[0].mxu0
    %v1939 = vadd.f32 %v1839, %v1938
    %v1940 = vpop.f32.mrb[0].mxu0
    %1941 = vmatprep.mubr.f32.mxu0 0.0
    %v1942 = vand.u32 %v1528, 4294901760
    %v1943 = vsub.f32 %v1528, %v1942
    %v1944 = vand.u32 %v1943, 4294901760
    %1945 = vmatmul.mubr.f32.gmra.mrb[0].mxu0 %v1944
    %v1946 = vpop.f32.mrb[0].mxu0
    %v1947 = vadd.f32 %v1846, %v1946
    %v1948 = vpop.f32.mrb[0].mxu0
    %1949 = vdwg.mxu0
    %1950 = vmatprep.subr.mxu0 0.0
    %v1951 = vand.u32 %v263, 4294901760
    %v1952 = vsub.f32 %v263, %v1951
    %v1953 = vand.u32 %v1952, 4294901760
    %1954 = vmatpush1.msra.mxu0 %v1953
    %1955 = vmatprep.subr.mxu0 0.0
    %v1956 = vand.u32 %v264, 4294901760
    %v1957 = vsub.f32 %v264, %v1956
    %v1958 = vand.u32 %v1957, 4294901760
    %1959 = vmatpush1.msra.mxu0 %v1958
    %1960 = vmatprep.subr.mxu0 0.0
    %v1961 = vand.u32 %v265, 4294901760
    %v1962 = vsub.f32 %v265, %v1961
    %v1963 = vand.u32 %v1962, 4294901760
    %1964 = vmatpush1.msra.mxu0 %v1963
    %1965 = vmatprep.subr.mxu0 0.0
    %v1966 = vand.u32 %v266, 4294901760
    %v1967 = vsub.f32 %v266, %v1966
    %v1968 = vand.u32 %v1967, 4294901760
    %1969 = vmatpush1.msra.mxu0 %v1968
    %1970 = vmatprep.subr.mxu0 0.0
    %1971 = vmatpush1.msra.mxu0 0.0
    %1972 = vmatprep.subr.mxu0 0.0
    %1973 = vmatpush1.msra.mxu0 0.0
    %1974 = vmatprep.subr.mxu0 0.0
    %1975 = vmatpush1.msra.mxu0 0.0
    %1976 = vmatprep.subr.mxu0 0.0
    %1977 = vmatpush1.msra.mxu0 0.0
    %1978 = vmatprep.subr.mxu0 0.0
    %1979 = vmatpush1.msra.mxu0 0.0
    %1980 = vmatprep.subr.mxu0 0.0
    %1981 = vmatpush1.msra.mxu0 0.0
    %1982 = vmatprep.subr.mxu0 0.0
    %1983 = vmatpush1.msra.mxu0 0.0
    %1984 = vmatprep.subr.mxu0 0.0
    %1985 = vmatpush1.msra.mxu0 0.0
    %1986 = vmatprep.subr.mxu0 0.0
    %1987 = vmatpush1.msra.mxu0 0.0
    %1988 = vmatprep.subr.mxu0 0.0
    %1989 = vmatpush1.msra.mxu0 0.0
    %1990 = vmatprep.subr.mxu0 0.0
    %1991 = vmatpush1.msra.mxu0 0.0
    %1992 = vmatprep.subr.mxu0 0.0
    %1993 = vmatpush1.msra.mxu0 0.0
    %1994 = vmatprep.subr.mxu0 0.0
    %1995 = vmatpush1.msra.mxu0 0.0
    %1996 = vmatprep.subr.mxu0 0.0
    %1997 = vmatpush1.msra.mxu0 0.0
    %1998 = vmatprep.subr.mxu0 0.0
    %1999 = vmatpush1.msra.mxu0 0.0
    %2000 = vmatprep.subr.mxu0 0.0
    %2001 = vmatpush1.msra.mxu0 0.0
    %2002 = vmatprep.subr.mxu0 0.0
    %2003 = vmatpush1.msra.mxu0 0.0
    %2004 = vmatprep.subr.mxu0 0.0
    %2005 = vmatpush1.msra.mxu0 0.0
    %2006 = vmatprep.subr.mxu0 0.0
    %2007 = vmatpush1.msra.mxu0 0.0
    %2008 = vmatprep.subr.mxu0 0.0
    %2009 = vmatpush1.msra.mxu0 0.0
    %2010 = vmatprep.subr.mxu0 0.0
    %2011 = vmatpush1.msra.mxu0 0.0
    %2012 = vmatprep.subr.mxu0 0.0
    %2013 = vmatpush1.msra.mxu0 0.0
    %2014 = vmatprep.subr.mxu0 0.0
    %2015 = vmatpush1.msra.mxu0 0.0
    %2016 = vmatprep.subr.mxu0 0.0
    %2017 = vmatpush1.msra.mxu0 0.0
    %2018 = vmatprep.subr.mxu0 0.0
    %2019 = vmatpush1.msra.mxu0 0.0
    %2020 = vmatprep.subr.mxu0 0.0
    %2021 = vmatpush1.msra.mxu0 0.0
    %2022 = vmatprep.subr.mxu0 0.0
    %2023 = vmatpush1.msra.mxu0 0.0
    %2024 = vmatprep.subr.mxu0 0.0
    %2025 = vmatpush1.msra.mxu0 0.0
    %2026 = vmatprep.mubr.f32.mxu0 0.0
    %v2027 = vand.u32 %v1519, 4294901760
    %2028 = vmatmul.mubr.f32.gmra.mrb[0].mxu0 %v2027
    %v2029 = vpop.f32.mrb[0].mxu0
    %v2030 = vadd.f32 %v1923, %v2029
    %v2031 = vpop.f32.mrb[0].mxu0
    %2032 = vmatprep.mubr.f32.mxu0 0.0
    %v2033 = vand.u32 %v1522, 4294901760
    %2034 = vmatmul.mubr.f32.gmra.mrb[0].mxu0 %v2033
    %v2035 = vpop.f32.mrb[0].mxu0
    %v2036 = vadd.f32 %v1931, %v2035
    %v2037 = vpop.f32.mrb[0].mxu0
    %2038 = vmatprep.mubr.f32.mxu0 0.0
    %v2039 = vand.u32 %v1525, 4294901760
    %2040 = vmatmul.mubr.f32.gmra.mrb[0].mxu0 %v2039
    %v2041 = vpop.f32.mrb[0].mxu0
    %v2042 = vadd.f32 %v1939, %v2041
    %v2043 = vpop.f32.mrb[0].mxu0
    %2044 = vmatprep.mubr.f32.mxu0 0.0
    %v2045 = vand.u32 %v1528, 4294901760
    %2046 = vmatmul.mubr.f32.gmra.mrb[0].mxu0 %v2045
    %v2047 = vpop.f32.mrb[0].mxu0
    %v2048 = vadd.f32 %v1947, %v2047
    %v2049 = vpop.f32.mrb[0].mxu0
    %2050 = vdwg.mxu0
    %2051 = vmatprep.subr.mxu0 0.0
    %v2052 = vand.u32 %v263, 4294901760
    %2053 = vmatpush1.msra.mxu0 %v2052
    %2054 = vmatprep.subr.mxu0 0.0
    %v2055 = vand.u32 %v264, 4294901760
    %2056 = vmatpush1.msra.mxu0 %v2055
    %2057 = vmatprep.subr.mxu0 0.0
    %v2058 = vand.u32 %v265, 4294901760
    %2059 = vmatpush1.msra.mxu0 %v2058
    %2060 = vmatprep.subr.mxu0 0.0
    %v2061 = vand.u32 %v266, 4294901760
    %2062 = vmatpush1.msra.mxu0 %v2061
    %2063 = vmatprep.subr.mxu0 0.0
    %2064 = vmatpush1.msra.mxu0 0.0
    %2065 = vmatprep.subr.mxu0 0.0
    %2066 = vmatpush1.msra.mxu0 0.0
    %2067 = vmatprep.subr.mxu0 0.0
    %2068 = vmatpush1.msra.mxu0 0.0
    %2069 = vmatprep.subr.mxu0 0.0
    %2070 = vmatpush1.msra.mxu0 0.0
    %2071 = vmatprep.subr.mxu0 0.0
    %2072 = vmatpush1.msra.mxu0 0.0
    %2073 = vmatprep.subr.mxu0 0.0
    %2074 = vmatpush1.msra.mxu0 0.0
    %2075 = vmatprep.subr.mxu0 0.0
    %2076 = vmatpush1.msra.mxu0 0.0
    %2077 = vmatprep.subr.mxu0 0.0
    %2078 = vmatpush1.msra.mxu0 0.0
    %2079 = vmatprep.subr.mxu0 0.0
    %2080 = vmatpush1.msra.mxu0 0.0
    %2081 = vmatprep.subr.mxu0 0.0
    %2082 = vmatpush1.msra.mxu0 0.0
    %2083 = vmatprep.subr.mxu0 0.0
    %2084 = vmatpush1.msra.mxu0 0.0
    %2085 = vmatprep.subr.mxu0 0.0
    %2086 = vmatpush1.msra.mxu0 0.0
    %2087 = vmatprep.subr.mxu0 0.0
    %2088 = vmatpush1.msra.mxu0 0.0
    %2089 = vmatprep.subr.mxu0 0.0
    %2090 = vmatpush1.msra.mxu0 0.0
    %2091 = vmatprep.subr.mxu0 0.0
    %2092 = vmatpush1.msra.mxu0 0.0
    %2093 = vmatprep.subr.mxu0 0.0
    %2094 = vmatpush1.msra.mxu0 0.0
    %2095 = vmatprep.subr.mxu0 0.0
    %2096 = vmatpush1.msra.mxu0 0.0
    %2097 = vmatprep.subr.mxu0 0.0
    %2098 = vmatpush1.msra.mxu0 0.0
    %2099 = vmatprep.subr.mxu0 0.0
    %2100 = vmatpush1.msra.mxu0 0.0
    %2101 = vmatprep.subr.mxu0 0.0
    %2102 = vmatpush1.msra.mxu0 0.0
    %2103 = vmatprep.subr.mxu0 0.0
    %2104 = vmatpush1.msra.mxu0 0.0
    %2105 = vmatprep.subr.mxu0 0.0
    %2106 = vmatpush1.msra.mxu0 0.0
    %2107 = vmatprep.subr.mxu0 0.0
    %2108 = vmatpush1.msra.mxu0 0.0
    %2109 = vmatprep.subr.mxu0 0.0
    %2110 = vmatpush1.msra.mxu0 0.0
    %2111 = vmatprep.subr.mxu0 0.0
    %2112 = vmatpush1.msra.mxu0 0.0
    %2113 = vmatprep.subr.mxu0 0.0
    %2114 = vmatpush1.msra.mxu0 0.0
    %2115 = vmatprep.subr.mxu0 0.0
    %2116 = vmatpush1.msra.mxu0 0.0
    %2117 = vmatprep.subr.mxu0 0.0
    %2118 = vmatpush1.msra.mxu0 0.0
    %2119 = vmatprep.mubr.f32.mxu0 0.0
    %v2120 = vand.u32 %v1519, 4294901760
    %2121 = vmatmul.mubr.f32.gmra.mrb[0].mxu0 %v2120
    %v2122 = vpop.f32.mrb[0].mxu0
    %v2123 = vadd.f32 %v2030, %v2122
    %v2124 = vpop.f32.mrb[0].mxu0
    %2125 = vmatprep.mubr.f32.mxu0 0.0
    %v2126 = vand.u32 %v1522, 4294901760
    %2127 = vmatmul.mubr.f32.gmra.mrb[0].mxu0 %v2126
    %v2128 = vpop.f32.mrb[0].mxu0
    %v2129 = vadd.f32 %v2036, %v2128
    %v2130 = vpop.f32.mrb[0].mxu0
    %2131 = vmatprep.mubr.f32.mxu0 0.0
    %v2132 = vand.u32 %v1525, 4294901760
    %2133 = vmatmul.mubr.f32.gmra.mrb[0].mxu0 %v2132
    %v2134 = vpop.f32.mrb[0].mxu0
    %v2135 = vadd.f32 %v2042, %v2134
    %v2136 = vpop.f32.mrb[0].mxu0
    %2137 = vmatprep.mubr.f32.mxu0 0.0
    %v2138 = vand.u32 %v1528, 4294901760
    %2139 = vmatmul.mubr.f32.gmra.mrb[0].mxu0 %v2138
    %v2140 = vpop.f32.mrb[0].mxu0
    %v2141 = vadd.f32 %v2048, %v2140
    %v2142 = vpop.f32.mrb[0].mxu0
    %2143 = vdwg.mxu0
    %v2144 = vcvt.s32.f32 %v55
    %v2145 = vcvt.s32.f32 %v56
    %v2146 = vcvt.s32.f32 %v57
    %v2147 = vcvt.s32.f32 %v58
    %v2149 = vsel %vm903, %v2144, 0
    %v2152 = vsel %vm903, %v2145, 0
    %v2155 = vsel %vm903, %v2146, 0
    %v2158 = vsel %vm903, %v2147, 0
    %2160 = vmatprep.subr.mxu0 0.0
    %v2161 = vand.u32 %v902, 4294901760
    %2162 = vmatpush1.msra.mxu0 %v2161
    %2163 = vmatprep.subr.mxu0 0.0
    %2164 = vmatpush1.msra.mxu0 0.0
    %2165 = vmatprep.subr.mxu0 0.0
    %2166 = vmatpush1.msra.mxu0 0.0
    %2167 = vmatprep.subr.mxu0 0.0
    %2168 = vmatpush1.msra.mxu0 0.0
    %2169 = vmatprep.subr.mxu0 0.0
    %2170 = vmatpush1.msra.mxu0 0.0
    %2171 = vmatprep.subr.mxu0 0.0
    %2172 = vmatpush1.msra.mxu0 0.0
    %2173 = vmatprep.subr.mxu0 0.0
    %2174 = vmatpush1.msra.mxu0 0.0
    %2175 = vmatprep.subr.mxu0 0.0
    %2176 = vmatpush1.msra.mxu0 0.0
    %2177 = vmatprep.subr.mxu0 0.0
    %2178 = vmatpush1.msra.mxu0 0.0
    %2179 = vmatprep.subr.mxu0 0.0
    %2180 = vmatpush1.msra.mxu0 0.0
    %2181 = vmatprep.subr.mxu0 0.0
    %2182 = vmatpush1.msra.mxu0 0.0
    %2183 = vmatprep.subr.mxu0 0.0
    %2184 = vmatpush1.msra.mxu0 0.0
    %2185 = vmatprep.subr.mxu0 0.0
    %2186 = vmatpush1.msra.mxu0 0.0
    %2187 = vmatprep.subr.mxu0 0.0
    %2188 = vmatpush1.msra.mxu0 0.0
    %2189 = vmatprep.subr.mxu0 0.0
    %2190 = vmatpush1.msra.mxu0 0.0
    %2191 = vmatprep.subr.mxu0 0.0
    %2192 = vmatpush1.msra.mxu0 0.0
    %2193 = vmatprep.subr.mxu0 0.0
    %2194 = vmatpush1.msra.mxu0 0.0
    %2195 = vmatprep.subr.mxu0 0.0
    %2196 = vmatpush1.msra.mxu0 0.0
    %2197 = vmatprep.subr.mxu0 0.0
    %2198 = vmatpush1.msra.mxu0 0.0
    %2199 = vmatprep.subr.mxu0 0.0
    %2200 = vmatpush1.msra.mxu0 0.0
    %2201 = vmatprep.subr.mxu0 0.0
    %2202 = vmatpush1.msra.mxu0 0.0
    %2203 = vmatprep.subr.mxu0 0.0
    %2204 = vmatpush1.msra.mxu0 0.0
    %2205 = vmatprep.subr.mxu0 0.0
    %2206 = vmatpush1.msra.mxu0 0.0
    %2207 = vmatprep.subr.mxu0 0.0
    %2208 = vmatpush1.msra.mxu0 0.0
    %2209 = vmatprep.subr.mxu0 0.0
    %2210 = vmatpush1.msra.mxu0 0.0
    %2211 = vmatprep.subr.mxu0 0.0
    %2212 = vmatpush1.msra.mxu0 0.0
    %2213 = vmatprep.subr.mxu0 0.0
    %2214 = vmatpush1.msra.mxu0 0.0
    %2215 = vmatprep.subr.mxu0 0.0
    %2216 = vmatpush1.msra.mxu0 0.0
    %2217 = vmatprep.subr.mxu0 0.0
    %2218 = vmatpush1.msra.mxu0 0.0
    %2219 = vmatprep.subr.mxu0 0.0
    %2220 = vmatpush1.msra.mxu0 0.0
    %2221 = vmatprep.subr.mxu0 0.0
    %2222 = vmatpush1.msra.mxu0 0.0
    %2223 = vmatprep.subr.mxu0 0.0
    %2224 = vmatpush1.msra.mxu0 0.0
    %2225 = vmatprep.mubr.f32.mxu0 0.0
    %v2226 = vand.u32 %v2149, 4294901760
    %v2227 = vsub.f32 %v2149, %v2226
    %v2228 = vand.u32 %v2227, 4294901760
    %v2229 = vsub.f32 %v2227, %v2228
    %v2230 = vand.u32 %v2229, 4294901760
    %2231 = vmatmul.mubr.f32.gmra.mrb[0].mxu0 %v2230
    %v2232 = vpop.f32.mrb[0].mxu0
    %v2233 = vadd.f32 0.0, %v2232
    %v2234 = vpop.f32.mrb[0].mxu0
    %2235 = vmatprep.mubr.f32.mxu0 0.0
    %v2236 = vand.u32 %v2152, 4294901760
    %v2237 = vsub.f32 %v2152, %v2236
    %v2238 = vand.u32 %v2237, 4294901760
    %v2239 = vsub.f32 %v2237, %v2238
    %v2240 = vand.u32 %v2239, 4294901760
    %2241 = vmatmul.mubr.f32.gmra.mrb[0].mxu0 %v2240
    %v2242 = vpop.f32.mrb[0].mxu0
    %v2243 = vadd.f32 0.0, %v2242
    %v2244 = vpop.f32.mrb[0].mxu0
    %2245 = vmatprep.mubr.f32.mxu0 0.0
    %v2246 = vand.u32 %v2155, 4294901760
    %v2247 = vsub.f32 %v2155, %v2246
    %v2248 = vand.u32 %v2247, 4294901760
    %v2249 = vsub.f32 %v2247, %v2248
    %v2250 = vand.u32 %v2249, 4294901760
    %2251 = vmatmul.mubr.f32.gmra.mrb[0].mxu0 %v2250
    %v2252 = vpop.f32.mrb[0].mxu0
    %v2253 = vadd.f32 0.0, %v2252
    %v2254 = vpop.f32.mrb[0].mxu0
    %2255 = vmatprep.mubr.f32.mxu0 0.0
    %v2256 = vand.u32 %v2158, 4294901760
    %v2257 = vsub.f32 %v2158, %v2256
    %v2258 = vand.u32 %v2257, 4294901760
    %v2259 = vsub.f32 %v2257, %v2258
    %v2260 = vand.u32 %v2259, 4294901760
    %2261 = vmatmul.mubr.f32.gmra.mrb[0].mxu0 %v2260
    %v2262 = vpop.f32.mrb[0].mxu0
    %v2263 = vadd.f32 0.0, %v2262
    %v2264 = vpop.f32.mrb[0].mxu0
    %2265 = vdwg.mxu0
    %2266 = vmatprep.subr.mxu0 0.0
    %v2267 = vand.u32 %v902, 4294901760
    %v2268 = vsub.f32 %v902, %v2267
    %v2269 = vand.u32 %v2268, 4294901760
    %v2270 = vsub.f32 %v2268, %v2269
    %v2271 = vand.u32 %v2270, 4294901760
    %2272 = vmatpush1.msra.mxu0 %v2271
    %2273 = vmatprep.subr.mxu0 0.0
    %2274 = vmatpush1.msra.mxu0 0.0
    %2275 = vmatprep.subr.mxu0 0.0
    %2276 = vmatpush1.msra.mxu0 0.0
    %2277 = vmatprep.subr.mxu0 0.0
    %2278 = vmatpush1.msra.mxu0 0.0
    %2279 = vmatprep.subr.mxu0 0.0
    %2280 = vmatpush1.msra.mxu0 0.0
    %2281 = vmatprep.subr.mxu0 0.0
    %2282 = vmatpush1.msra.mxu0 0.0
    %2283 = vmatprep.subr.mxu0 0.0
    %2284 = vmatpush1.msra.mxu0 0.0
    %2285 = vmatprep.subr.mxu0 0.0
    %2286 = vmatpush1.msra.mxu0 0.0
    %2287 = vmatprep.subr.mxu0 0.0
    %2288 = vmatpush1.msra.mxu0 0.0
    %2289 = vmatprep.subr.mxu0 0.0
    %2290 = vmatpush1.msra.mxu0 0.0
    %2291 = vmatprep.subr.mxu0 0.0
    %2292 = vmatpush1.msra.mxu0 0.0
    %2293 = vmatprep.subr.mxu0 0.0
    %2294 = vmatpush1.msra.mxu0 0.0
    %2295 = vmatprep.subr.mxu0 0.0
    %2296 = vmatpush1.msra.mxu0 0.0
    %2297 = vmatprep.subr.mxu0 0.0
    %2298 = vmatpush1.msra.mxu0 0.0
    %2299 = vmatprep.subr.mxu0 0.0
    %2300 = vmatpush1.msra.mxu0 0.0
    %2301 = vmatprep.subr.mxu0 0.0
    %2302 = vmatpush1.msra.mxu0 0.0
    %2303 = vmatprep.subr.mxu0 0.0
    %2304 = vmatpush1.msra.mxu0 0.0
    %2305 = vmatprep.subr.mxu0 0.0
    %2306 = vmatpush1.msra.mxu0 0.0
    %2307 = vmatprep.subr.mxu0 0.0
    %2308 = vmatpush1.msra.mxu0 0.0
    %2309 = vmatprep.subr.mxu0 0.0
    %2310 = vmatpush1.msra.mxu0 0.0
    %2311 = vmatprep.subr.mxu0 0.0
    %2312 = vmatpush1.msra.mxu0 0.0
    %2313 = vmatprep.subr.mxu0 0.0
    %2314 = vmatpush1.msra.mxu0 0.0
    %2315 = vmatprep.subr.mxu0 0.0
    %2316 = vmatpush1.msra.mxu0 0.0
    %2317 = vmatprep.subr.mxu0 0.0
    %2318 = vmatpush1.msra.mxu0 0.0
    %2319 = vmatprep.subr.mxu0 0.0
    %2320 = vmatpush1.msra.mxu0 0.0
    %2321 = vmatprep.subr.mxu0 0.0
    %2322 = vmatpush1.msra.mxu0 0.0
    %2323 = vmatprep.subr.mxu0 0.0
    %2324 = vmatpush1.msra.mxu0 0.0
    %2325 = vmatprep.subr.mxu0 0.0
    %2326 = vmatpush1.msra.mxu0 0.0
    %2327 = vmatprep.subr.mxu0 0.0
    %2328 = vmatpush1.msra.mxu0 0.0
    %2329 = vmatprep.subr.mxu0 0.0
    %2330 = vmatpush1.msra.mxu0 0.0
    %2331 = vmatprep.subr.mxu0 0.0
    %2332 = vmatpush1.msra.mxu0 0.0
    %2333 = vmatprep.subr.mxu0 0.0
    %2334 = vmatpush1.msra.mxu0 0.0
    %2335 = vmatprep.mubr.f32.mxu0 0.0
    %v2336 = vand.u32 %v2149, 4294901760
    %2337 = vmatmul.mubr.f32.gmra.mrb[0].mxu0 %v2336
    %v2338 = vpop.f32.mrb[0].mxu0
    %v2339 = vadd.f32 %v2233, %v2338
    %v2340 = vpop.f32.mrb[0].mxu0
    %2341 = vmatprep.mubr.f32.mxu0 0.0
    %v2342 = vand.u32 %v2152, 4294901760
    %2343 = vmatmul.mubr.f32.gmra.mrb[0].mxu0 %v2342
    %v2344 = vpop.f32.mrb[0].mxu0
    %v2345 = vadd.f32 %v2243, %v2344
    %v2346 = vpop.f32.mrb[0].mxu0
    %2347 = vmatprep.mubr.f32.mxu0 0.0
    %v2348 = vand.u32 %v2155, 4294901760
    %2349 = vmatmul.mubr.f32.gmra.mrb[0].mxu0 %v2348
    %v2350 = vpop.f32.mrb[0].mxu0
    %v2351 = vadd.f32 %v2253, %v2350
    %v2352 = vpop.f32.mrb[0].mxu0
    %2353 = vmatprep.mubr.f32.mxu0 0.0
    %v2354 = vand.u32 %v2158, 4294901760
    %2355 = vmatmul.mubr.f32.gmra.mrb[0].mxu0 %v2354
    %v2356 = vpop.f32.mrb[0].mxu0
    %v2357 = vadd.f32 %v2263, %v2356
    %v2358 = vpop.f32.mrb[0].mxu0
    %2359 = vdwg.mxu0
    %2360 = vmatprep.subr.mxu0 0.0
    %v2361 = vand.u32 %v902, 4294901760
    %v2362 = vsub.f32 %v902, %v2361
    %2363 = vmatpush1.msra.mxu0 %v2362
    %2364 = vmatprep.subr.mxu0 0.0
    %2365 = vmatpush1.msra.mxu0 0.0
    %2366 = vmatprep.subr.mxu0 0.0
    %2367 = vmatpush1.msra.mxu0 0.0
    %2368 = vmatprep.subr.mxu0 0.0
    %2369 = vmatpush1.msra.mxu0 0.0
    %2370 = vmatprep.subr.mxu0 0.0
    %2371 = vmatpush1.msra.mxu0 0.0
    %2372 = vmatprep.subr.mxu0 0.0
    %2373 = vmatpush1.msra.mxu0 0.0
    %2374 = vmatprep.subr.mxu0 0.0
    %2375 = vmatpush1.msra.mxu0 0.0
    %2376 = vmatprep.subr.mxu0 0.0
    %2377 = vmatpush1.msra.mxu0 0.0
    %2378 = vmatprep.subr.mxu0 0.0
    %2379 = vmatpush1.msra.mxu0 0.0
    %2380 = vmatprep.subr.mxu0 0.0
    %2381 = vmatpush1.msra.mxu0 0.0
    %2382 = vmatprep.subr.mxu0 0.0
    %2383 = vmatpush1.msra.mxu0 0.0
    %2384 = vmatprep.subr.mxu0 0.0
    %2385 = vmatpush1.msra.mxu0 0.0
    %2386 = vmatprep.subr.mxu0 0.0
    %2387 = vmatpush1.msra.mxu0 0.0
    %2388 = vmatprep.subr.mxu0 0.0
    %2389 = vmatpush1.msra.mxu0 0.0
    %2390 = vmatprep.subr.mxu0 0.0
    %2391 = vmatpush1.msra.mxu0 0.0
    %2392 = vmatprep.subr.mxu0 0.0
    %2393 = vmatpush1.msra.mxu0 0.0
    %2394 = vmatprep.subr.mxu0 0.0
    %2395 = vmatpush1.msra.mxu0 0.0
    %2396 = vmatprep.subr.mxu0 0.0
    %2397 = vmatpush1.msra.mxu0 0.0
    %2398 = vmatprep.subr.mxu0 0.0
    %2399 = vmatpush1.msra.mxu0 0.0
    %2400 = vmatprep.subr.mxu0 0.0
    %2401 = vmatpush1.msra.mxu0 0.0
    %2402 = vmatprep.subr.mxu0 0.0
    %2403 = vmatpush1.msra.mxu0 0.0
    %2404 = vmatprep.subr.mxu0 0.0
    %2405 = vmatpush1.msra.mxu0 0.0
    %2406 = vmatprep.subr.mxu0 0.0
    %2407 = vmatpush1.msra.mxu0 0.0
    %2408 = vmatprep.subr.mxu0 0.0
    %2409 = vmatpush1.msra.mxu0 0.0
    %2410 = vmatprep.subr.mxu0 0.0
    %2411 = vmatpush1.msra.mxu0 0.0
    %2412 = vmatprep.subr.mxu0 0.0
    %2413 = vmatpush1.msra.mxu0 0.0
    %2414 = vmatprep.subr.mxu0 0.0
    %2415 = vmatpush1.msra.mxu0 0.0
    %2416 = vmatprep.subr.mxu0 0.0
    %2417 = vmatpush1.msra.mxu0 0.0
    %2418 = vmatprep.subr.mxu0 0.0
    %2419 = vmatpush1.msra.mxu0 0.0
    %2420 = vmatprep.subr.mxu0 0.0
    %2421 = vmatpush1.msra.mxu0 0.0
    %2422 = vmatprep.subr.mxu0 0.0
    %2423 = vmatpush1.msra.mxu0 0.0
    %2424 = vmatprep.subr.mxu0 0.0
    %2425 = vmatpush1.msra.mxu0 0.0
    %2426 = vmatprep.mubr.f32.mxu0 0.0
    %v2427 = vand.u32 %v2149, 4294901760
    %v2428 = vsub.f32 %v2149, %v2427
    %2429 = vmatmul.mubr.f32.gmra.mrb[0].mxu0 %v2428
    %v2430 = vpop.f32.mrb[0].mxu0
    %v2431 = vadd.f32 %v2339, %v2430
    %v2432 = vpop.f32.mrb[0].mxu0
    %2433 = vmatprep.mubr.f32.mxu0 0.0
    %v2434 = vand.u32 %v2152, 4294901760
    %v2435 = vsub.f32 %v2152, %v2434
    %2436 = vmatmul.mubr.f32.gmra.mrb[0].mxu0 %v2435
    %v2437 = vpop.f32.mrb[0].mxu0
    %v2438 = vadd.f32 %v2345, %v2437
    %v2439 = vpop.f32.mrb[0].mxu0
    %2440 = vmatprep.mubr.f32.mxu0 0.0
    %v2441 = vand.u32 %v2155, 4294901760
    %v2442 = vsub.f32 %v2155, %v2441
    %2443 = vmatmul.mubr.f32.gmra.mrb[0].mxu0 %v2442
    %v2444 = vpop.f32.mrb[0].mxu0
    %v2445 = vadd.f32 %v2351, %v2444
    %v2446 = vpop.f32.mrb[0].mxu0
    %2447 = vmatprep.mubr.f32.mxu0 0.0
    %v2448 = vand.u32 %v2158, 4294901760
    %v2449 = vsub.f32 %v2158, %v2448
    %2450 = vmatmul.mubr.f32.gmra.mrb[0].mxu0 %v2449
    %v2451 = vpop.f32.mrb[0].mxu0
    %v2452 = vadd.f32 %v2357, %v2451
    %v2453 = vpop.f32.mrb[0].mxu0
    %2454 = vdwg.mxu0
    %2455 = vmatprep.subr.mxu0 0.0
    %v2456 = vand.u32 %v902, 4294901760
    %2457 = vmatpush1.msra.mxu0 %v2456
    %2458 = vmatprep.subr.mxu0 0.0
    %2459 = vmatpush1.msra.mxu0 0.0
    %2460 = vmatprep.subr.mxu0 0.0
    %2461 = vmatpush1.msra.mxu0 0.0
    %2462 = vmatprep.subr.mxu0 0.0
    %2463 = vmatpush1.msra.mxu0 0.0
    %2464 = vmatprep.subr.mxu0 0.0
    %2465 = vmatpush1.msra.mxu0 0.0
    %2466 = vmatprep.subr.mxu0 0.0
    %2467 = vmatpush1.msra.mxu0 0.0
    %2468 = vmatprep.subr.mxu0 0.0
    %2469 = vmatpush1.msra.mxu0 0.0
    %2470 = vmatprep.subr.mxu0 0.0
    %2471 = vmatpush1.msra.mxu0 0.0
    %2472 = vmatprep.subr.mxu0 0.0
    %2473 = vmatpush1.msra.mxu0 0.0
    %2474 = vmatprep.subr.mxu0 0.0
    %2475 = vmatpush1.msra.mxu0 0.0
    %2476 = vmatprep.subr.mxu0 0.0
    %2477 = vmatpush1.msra.mxu0 0.0
    %2478 = vmatprep.subr.mxu0 0.0
    %2479 = vmatpush1.msra.mxu0 0.0
    %2480 = vmatprep.subr.mxu0 0.0
    %2481 = vmatpush1.msra.mxu0 0.0
    %2482 = vmatprep.subr.mxu0 0.0
    %2483 = vmatpush1.msra.mxu0 0.0
    %2484 = vmatprep.subr.mxu0 0.0
    %2485 = vmatpush1.msra.mxu0 0.0
    %2486 = vmatprep.subr.mxu0 0.0
    %2487 = vmatpush1.msra.mxu0 0.0
    %2488 = vmatprep.subr.mxu0 0.0
    %2489 = vmatpush1.msra.mxu0 0.0
    %2490 = vmatprep.subr.mxu0 0.0
    %2491 = vmatpush1.msra.mxu0 0.0
    %2492 = vmatprep.subr.mxu0 0.0
    %2493 = vmatpush1.msra.mxu0 0.0
    %2494 = vmatprep.subr.mxu0 0.0
    %2495 = vmatpush1.msra.mxu0 0.0
    %2496 = vmatprep.subr.mxu0 0.0
    %2497 = vmatpush1.msra.mxu0 0.0
    %2498 = vmatprep.subr.mxu0 0.0
    %2499 = vmatpush1.msra.mxu0 0.0
    %2500 = vmatprep.subr.mxu0 0.0
    %2501 = vmatpush1.msra.mxu0 0.0
    %2502 = vmatprep.subr.mxu0 0.0
    %2503 = vmatpush1.msra.mxu0 0.0
    %2504 = vmatprep.subr.mxu0 0.0
    %2505 = vmatpush1.msra.mxu0 0.0
    %2506 = vmatprep.subr.mxu0 0.0
    %2507 = vmatpush1.msra.mxu0 0.0
    %2508 = vmatprep.subr.mxu0 0.0
    %2509 = vmatpush1.msra.mxu0 0.0
    %2510 = vmatprep.subr.mxu0 0.0
    %2511 = vmatpush1.msra.mxu0 0.0
    %2512 = vmatprep.subr.mxu0 0.0
    %2513 = vmatpush1.msra.mxu0 0.0
    %2514 = vmatprep.subr.mxu0 0.0
    %2515 = vmatpush1.msra.mxu0 0.0
    %2516 = vmatprep.subr.mxu0 0.0
    %2517 = vmatpush1.msra.mxu0 0.0
    %2518 = vmatprep.subr.mxu0 0.0
    %2519 = vmatpush1.msra.mxu0 0.0
    %2520 = vmatprep.mubr.f32.mxu0 0.0
    %v2521 = vand.u32 %v2149, 4294901760
    %v2522 = vsub.f32 %v2149, %v2521
    %v2523 = vand.u32 %v2522, 4294901760
    %2524 = vmatmul.mubr.f32.gmra.mrb[0].mxu0 %v2523
    %v2525 = vpop.f32.mrb[0].mxu0
    %v2526 = vadd.f32 %v2431, %v2525
    %v2527 = vpop.f32.mrb[0].mxu0
    %2528 = vmatprep.mubr.f32.mxu0 0.0
    %v2529 = vand.u32 %v2152, 4294901760
    %v2530 = vsub.f32 %v2152, %v2529
    %v2531 = vand.u32 %v2530, 4294901760
    %2532 = vmatmul.mubr.f32.gmra.mrb[0].mxu0 %v2531
    %v2533 = vpop.f32.mrb[0].mxu0
    %v2534 = vadd.f32 %v2438, %v2533
    %v2535 = vpop.f32.mrb[0].mxu0
    %2536 = vmatprep.mubr.f32.mxu0 0.0
    %v2537 = vand.u32 %v2155, 4294901760
    %v2538 = vsub.f32 %v2155, %v2537
    %v2539 = vand.u32 %v2538, 4294901760
    %2540 = vmatmul.mubr.f32.gmra.mrb[0].mxu0 %v2539
    %v2541 = vpop.f32.mrb[0].mxu0
    %v2542 = vadd.f32 %v2445, %v2541
    %v2543 = vpop.f32.mrb[0].mxu0
    %2544 = vmatprep.mubr.f32.mxu0 0.0
    %v2545 = vand.u32 %v2158, 4294901760
    %v2546 = vsub.f32 %v2158, %v2545
    %v2547 = vand.u32 %v2546, 4294901760
    %2548 = vmatmul.mubr.f32.gmra.mrb[0].mxu0 %v2547
    %v2549 = vpop.f32.mrb[0].mxu0
    %v2550 = vadd.f32 %v2452, %v2549
    %v2551 = vpop.f32.mrb[0].mxu0
    %2552 = vdwg.mxu0
    %2553 = vmatprep.subr.mxu0 0.0
    %v2554 = vand.u32 %v902, 4294901760
    %v2555 = vsub.f32 %v902, %v2554
    %v2556 = vand.u32 %v2555, 4294901760
    %2557 = vmatpush1.msra.mxu0 %v2556
    %2558 = vmatprep.subr.mxu0 0.0
    %2559 = vmatpush1.msra.mxu0 0.0
    %2560 = vmatprep.subr.mxu0 0.0
    %2561 = vmatpush1.msra.mxu0 0.0
    %2562 = vmatprep.subr.mxu0 0.0
    %2563 = vmatpush1.msra.mxu0 0.0
    %2564 = vmatprep.subr.mxu0 0.0
    %2565 = vmatpush1.msra.mxu0 0.0
    %2566 = vmatprep.subr.mxu0 0.0
    %2567 = vmatpush1.msra.mxu0 0.0
    %2568 = vmatprep.subr.mxu0 0.0
    %2569 = vmatpush1.msra.mxu0 0.0
    %2570 = vmatprep.subr.mxu0 0.0
    %2571 = vmatpush1.msra.mxu0 0.0
    %2572 = vmatprep.subr.mxu0 0.0
    %2573 = vmatpush1.msra.mxu0 0.0
    %2574 = vmatprep.subr.mxu0 0.0
    %2575 = vmatpush1.msra.mxu0 0.0
    %2576 = vmatprep.subr.mxu0 0.0
    %2577 = vmatpush1.msra.mxu0 0.0
    %2578 = vmatprep.subr.mxu0 0.0
    %2579 = vmatpush1.msra.mxu0 0.0
    %2580 = vmatprep.subr.mxu0 0.0
    %2581 = vmatpush1.msra.mxu0 0.0
    %2582 = vmatprep.subr.mxu0 0.0
    %2583 = vmatpush1.msra.mxu0 0.0
    %2584 = vmatprep.subr.mxu0 0.0
    %2585 = vmatpush1.msra.mxu0 0.0
    %2586 = vmatprep.subr.mxu0 0.0
    %2587 = vmatpush1.msra.mxu0 0.0
    %2588 = vmatprep.subr.mxu0 0.0
    %2589 = vmatpush1.msra.mxu0 0.0
    %2590 = vmatprep.subr.mxu0 0.0
    %2591 = vmatpush1.msra.mxu0 0.0
    %2592 = vmatprep.subr.mxu0 0.0
    %2593 = vmatpush1.msra.mxu0 0.0
    %2594 = vmatprep.subr.mxu0 0.0
    %2595 = vmatpush1.msra.mxu0 0.0
    %2596 = vmatprep.subr.mxu0 0.0
    %2597 = vmatpush1.msra.mxu0 0.0
    %2598 = vmatprep.subr.mxu0 0.0
    %2599 = vmatpush1.msra.mxu0 0.0
    %2600 = vmatprep.subr.mxu0 0.0
    %2601 = vmatpush1.msra.mxu0 0.0
    %2602 = vmatprep.subr.mxu0 0.0
    %2603 = vmatpush1.msra.mxu0 0.0
    %2604 = vmatprep.subr.mxu0 0.0
    %2605 = vmatpush1.msra.mxu0 0.0
    %2606 = vmatprep.subr.mxu0 0.0
    %2607 = vmatpush1.msra.mxu0 0.0
    %2608 = vmatprep.subr.mxu0 0.0
    %2609 = vmatpush1.msra.mxu0 0.0
    %2610 = vmatprep.subr.mxu0 0.0
    %2611 = vmatpush1.msra.mxu0 0.0
    %2612 = vmatprep.subr.mxu0 0.0
    %2613 = vmatpush1.msra.mxu0 0.0
    %2614 = vmatprep.subr.mxu0 0.0
    %2615 = vmatpush1.msra.mxu0 0.0
    %2616 = vmatprep.subr.mxu0 0.0
    %2617 = vmatpush1.msra.mxu0 0.0
    %2618 = vmatprep.subr.mxu0 0.0
    %2619 = vmatpush1.msra.mxu0 0.0
    %2620 = vmatprep.mubr.f32.mxu0 0.0
    %v2621 = vand.u32 %v2149, 4294901760
    %2622 = vmatmul.mubr.f32.gmra.mrb[0].mxu0 %v2621
    %v2623 = vpop.f32.mrb[0].mxu0
    %v2624 = vadd.f32 %v2526, %v2623
    %v2625 = vpop.f32.mrb[0].mxu0
    %2626 = vmatprep.mubr.f32.mxu0 0.0
    %v2627 = vand.u32 %v2152, 4294901760
    %2628 = vmatmul.mubr.f32.gmra.mrb[0].mxu0 %v2627
    %v2629 = vpop.f32.mrb[0].mxu0
    %v2630 = vadd.f32 %v2534, %v2629
    %v2631 = vpop.f32.mrb[0].mxu0
    %2632 = vmatprep.mubr.f32.mxu0 0.0
    %v2633 = vand.u32 %v2155, 4294901760
    %2634 = vmatmul.mubr.f32.gmra.mrb[0].mxu0 %v2633
    %v2635 = vpop.f32.mrb[0].mxu0
    %v2636 = vadd.f32 %v2542, %v2635
    %v2637 = vpop.f32.mrb[0].mxu0
    %2638 = vmatprep.mubr.f32.mxu0 0.0
    %v2639 = vand.u32 %v2158, 4294901760
    %2640 = vmatmul.mubr.f32.gmra.mrb[0].mxu0 %v2639
    %v2641 = vpop.f32.mrb[0].mxu0
    %v2642 = vadd.f32 %v2550, %v2641
    %v2643 = vpop.f32.mrb[0].mxu0
    %2644 = vdwg.mxu0
    %2645 = vmatprep.subr.mxu0 0.0
    %v2646 = vand.u32 %v902, 4294901760
    %2647 = vmatpush1.msra.mxu0 %v2646
    %2648 = vmatprep.subr.mxu0 0.0
    %2649 = vmatpush1.msra.mxu0 0.0
    %2650 = vmatprep.subr.mxu0 0.0
    %2651 = vmatpush1.msra.mxu0 0.0
    %2652 = vmatprep.subr.mxu0 0.0
    %2653 = vmatpush1.msra.mxu0 0.0
    %2654 = vmatprep.subr.mxu0 0.0
    %2655 = vmatpush1.msra.mxu0 0.0
    %2656 = vmatprep.subr.mxu0 0.0
    %2657 = vmatpush1.msra.mxu0 0.0
    %2658 = vmatprep.subr.mxu0 0.0
    %2659 = vmatpush1.msra.mxu0 0.0
    %2660 = vmatprep.subr.mxu0 0.0
    %2661 = vmatpush1.msra.mxu0 0.0
    %2662 = vmatprep.subr.mxu0 0.0
    %2663 = vmatpush1.msra.mxu0 0.0
    %2664 = vmatprep.subr.mxu0 0.0
    %2665 = vmatpush1.msra.mxu0 0.0
    %2666 = vmatprep.subr.mxu0 0.0
    %2667 = vmatpush1.msra.mxu0 0.0
    %2668 = vmatprep.subr.mxu0 0.0
    %2669 = vmatpush1.msra.mxu0 0.0
    %2670 = vmatprep.subr.mxu0 0.0
    %2671 = vmatpush1.msra.mxu0 0.0
    %2672 = vmatprep.subr.mxu0 0.0
    %2673 = vmatpush1.msra.mxu0 0.0
    %2674 = vmatprep.subr.mxu0 0.0
    %2675 = vmatpush1.msra.mxu0 0.0
    %2676 = vmatprep.subr.mxu0 0.0
    %2677 = vmatpush1.msra.mxu0 0.0
    %2678 = vmatprep.subr.mxu0 0.0
    %2679 = vmatpush1.msra.mxu0 0.0
    %2680 = vmatprep.subr.mxu0 0.0
    %2681 = vmatpush1.msra.mxu0 0.0
    %2682 = vmatprep.subr.mxu0 0.0
    %2683 = vmatpush1.msra.mxu0 0.0
    %2684 = vmatprep.subr.mxu0 0.0
    %2685 = vmatpush1.msra.mxu0 0.0
    %2686 = vmatprep.subr.mxu0 0.0
    %2687 = vmatpush1.msra.mxu0 0.0
    %2688 = vmatprep.subr.mxu0 0.0
    %2689 = vmatpush1.msra.mxu0 0.0
    %2690 = vmatprep.subr.mxu0 0.0
    %2691 = vmatpush1.msra.mxu0 0.0
    %2692 = vmatprep.subr.mxu0 0.0
    %2693 = vmatpush1.msra.mxu0 0.0
    %2694 = vmatprep.subr.mxu0 0.0
    %2695 = vmatpush1.msra.mxu0 0.0
    %2696 = vmatprep.subr.mxu0 0.0
    %2697 = vmatpush1.msra.mxu0 0.0
    %2698 = vmatprep.subr.mxu0 0.0
    %2699 = vmatpush1.msra.mxu0 0.0
    %2700 = vmatprep.subr.mxu0 0.0
    %2701 = vmatpush1.msra.mxu0 0.0
    %2702 = vmatprep.subr.mxu0 0.0
    %2703 = vmatpush1.msra.mxu0 0.0
    %2704 = vmatprep.subr.mxu0 0.0
    %2705 = vmatpush1.msra.mxu0 0.0
    %2706 = vmatprep.subr.mxu0 0.0
    %2707 = vmatpush1.msra.mxu0 0.0
    %2708 = vmatprep.subr.mxu0 0.0
    %2709 = vmatpush1.msra.mxu0 0.0
    %2710 = vmatprep.mubr.f32.mxu0 0.0
    %v2711 = vand.u32 %v2149, 4294901760
    %2712 = vmatmul.mubr.f32.gmra.mrb[0].mxu0 %v2711
    %v2713 = vpop.f32.mrb[0].mxu0
    %v2714 = vadd.f32 %v2624, %v2713
    %v2715 = vpop.f32.mrb[0].mxu0
    %2716 = vmatprep.mubr.f32.mxu0 0.0
    %v2717 = vand.u32 %v2152, 4294901760
    %2718 = vmatmul.mubr.f32.gmra.mrb[0].mxu0 %v2717
    %v2719 = vpop.f32.mrb[0].mxu0
    %v2720 = vadd.f32 %v2630, %v2719
    %v2721 = vpop.f32.mrb[0].mxu0
    %2722 = vmatprep.mubr.f32.mxu0 0.0
    %v2723 = vand.u32 %v2155, 4294901760
    %2724 = vmatmul.mubr.f32.gmra.mrb[0].mxu0 %v2723
    %v2725 = vpop.f32.mrb[0].mxu0
    %v2726 = vadd.f32 %v2636, %v2725
    %v2727 = vpop.f32.mrb[0].mxu0
    %2728 = vmatprep.mubr.f32.mxu0 0.0
    %v2729 = vand.u32 %v2158, 4294901760
    %2730 = vmatmul.mubr.f32.gmra.mrb[0].mxu0 %v2729
    %v2731 = vpop.f32.mrb[0].mxu0
    %v2732 = vadd.f32 %v2642, %v2731
    %v2733 = vpop.f32.mrb[0].mxu0
    %2734 = vdwg.mxu0
    %v2735 = vcvt.s32.f32 %v104
    %vm2736 = vcmp.eq.f32.partialorder %v2735, %v2714
    %vm2737 = vcmp.eq.f32.partialorder %v2735, %v2720
    %vm2738 = vcmp.eq.f32.partialorder %v2735, %v2726
    %vm2739 = vcmp.eq.f32.partialorder %v2735, %v2732
    %v2740 = vsel %vm2736, %v251, 0.0
    %v2741 = vsel %vm2737, %v252, 0.0
    %v2742 = vsel %vm2738, %v253, 0.0
    %v2743 = vsel %vm2739, %v254, 0.0
    %v2745 = vsel %vm267, %v2740, 0
    %v2748 = vsel %vm267, %v2741, 0
    %v2751 = vsel %vm267, %v2742, 0
    %v2754 = vsel %vm267, %v2743, 0
    %2756 = vmatprep.subr.mxu0 0.0
    %v2757 = vand.u32 %v263, 4294901760
    %2758 = vmatpush1.msra.mxu0 %v2757
    %2759 = vmatprep.subr.mxu0 0.0
    %v2760 = vand.u32 %v264, 4294901760
    %2761 = vmatpush1.msra.mxu0 %v2760
    %2762 = vmatprep.subr.mxu0 0.0
    %v2763 = vand.u32 %v265, 4294901760
    %2764 = vmatpush1.msra.mxu0 %v2763
    %2765 = vmatprep.subr.mxu0 0.0
    %v2766 = vand.u32 %v266, 4294901760
    %2767 = vmatpush1.msra.mxu0 %v2766
    %2768 = vmatprep.subr.mxu0 0.0
    %2769 = vmatpush1.msra.mxu0 0.0
    %2770 = vmatprep.subr.mxu0 0.0
    %2771 = vmatpush1.msra.mxu0 0.0
    %2772 = vmatprep.subr.mxu0 0.0
    %2773 = vmatpush1.msra.mxu0 0.0
    %2774 = vmatprep.subr.mxu0 0.0
    %2775 = vmatpush1.msra.mxu0 0.0
    %2776 = vmatprep.subr.mxu0 0.0
    %2777 = vmatpush1.msra.mxu0 0.0
    %2778 = vmatprep.subr.mxu0 0.0
    %2779 = vmatpush1.msra.mxu0 0.0
    %2780 = vmatprep.subr.mxu0 0.0
    %2781 = vmatpush1.msra.mxu0 0.0
    %2782 = vmatprep.subr.mxu0 0.0
    %2783 = vmatpush1.msra.mxu0 0.0
    %2784 = vmatprep.subr.mxu0 0.0
    %2785 = vmatpush1.msra.mxu0 0.0
    %2786 = vmatprep.subr.mxu0 0.0
    %2787 = vmatpush1.msra.mxu0 0.0
    %2788 = vmatprep.subr.mxu0 0.0
    %2789 = vmatpush1.msra.mxu0 0.0
    %2790 = vmatprep.subr.mxu0 0.0
    %2791 = vmatpush1.msra.mxu0 0.0
    %2792 = vmatprep.subr.mxu0 0.0
    %2793 = vmatpush1.msra.mxu0 0.0
    %2794 = vmatprep.subr.mxu0 0.0
    %2795 = vmatpush1.msra.mxu0 0.0
    %2796 = vmatprep.subr.mxu0 0.0
    %2797 = vmatpush1.msra.mxu0 0.0
    %2798 = vmatprep.subr.mxu0 0.0
    %2799 = vmatpush1.msra.mxu0 0.0
    %2800 = vmatprep.subr.mxu0 0.0
    %2801 = vmatpush1.msra.mxu0 0.0
    %2802 = vmatprep.subr.mxu0 0.0
    %2803 = vmatpush1.msra.mxu0 0.0
    %2804 = vmatprep.subr.mxu0 0.0
    %2805 = vmatpush1.msra.mxu0 0.0
    %2806 = vmatprep.subr.mxu0 0.0
    %2807 = vmatpush1.msra.mxu0 0.0
    %2808 = vmatprep.subr.mxu0 0.0
    %2809 = vmatpush1.msra.mxu0 0.0
    %2810 = vmatprep.subr.mxu0 0.0
    %2811 = vmatpush1.msra.mxu0 0.0
    %2812 = vmatprep.subr.mxu0 0.0
    %2813 = vmatpush1.msra.mxu0 0.0
    %2814 = vmatprep.subr.mxu0 0.0
    %2815 = vmatpush1.msra.mxu0 0.0
    %2816 = vmatprep.subr.mxu0 0.0
    %2817 = vmatpush1.msra.mxu0 0.0
    %2818 = vmatprep.subr.mxu0 0.0
    %2819 = vmatpush1.msra.mxu0 0.0
    %2820 = vmatprep.subr.mxu0 0.0
    %2821 = vmatpush1.msra.mxu0 0.0
    %2822 = vmatprep.subr.mxu0 0.0
    %2823 = vmatpush1.msra.mxu0 0.0
    %2824 = vmatprep.mubr.f32.mxu0 0.0
    %v2825 = vand.u32 %v2745, 4294901760
    %v2826 = vsub.f32 %v2745, %v2825
    %v2827 = vand.u32 %v2826, 4294901760
    %v2828 = vsub.f32 %v2826, %v2827
    %v2829 = vand.u32 %v2828, 4294901760
    %2830 = vmatmul.mubr.f32.gmra.mrb[0].mxu0 %v2829
    %v2831 = vpop.f32.mrb[0].mxu0
    %v2832 = vadd.f32 0.0, %v2831
    %v2833 = vpop.f32.mrb[0].mxu0
    %2834 = vmatprep.mubr.f32.mxu0 0.0
    %v2835 = vand.u32 %v2748, 4294901760
    %v2836 = vsub.f32 %v2748, %v2835
    %v2837 = vand.u32 %v2836, 4294901760
    %v2838 = vsub.f32 %v2836, %v2837
    %v2839 = vand.u32 %v2838, 4294901760
    %2840 = vmatmul.mubr.f32.gmra.mrb[0].mxu0 %v2839
    %v2841 = vpop.f32.mrb[0].mxu0
    %v2842 = vadd.f32 0.0, %v2841
    %v2843 = vpop.f32.mrb[0].mxu0
    %2844 = vmatprep.mubr.f32.mxu0 0.0
    %v2845 = vand.u32 %v2751, 4294901760
    %v2846 = vsub.f32 %v2751, %v2845
    %v2847 = vand.u32 %v2846, 4294901760
    %v2848 = vsub.f32 %v2846, %v2847
    %v2849 = vand.u32 %v2848, 4294901760
    %2850 = vmatmul.mubr.f32.gmra.mrb[0].mxu0 %v2849
    %v2851 = vpop.f32.mrb[0].mxu0
    %v2852 = vadd.f32 0.0, %v2851
    %v2853 = vpop.f32.mrb[0].mxu0
    %2854 = vmatprep.mubr.f32.mxu0 0.0
    %v2855 = vand.u32 %v2754, 4294901760
    %v2856 = vsub.f32 %v2754, %v2855
    %v2857 = vand.u32 %v2856, 4294901760
    %v2858 = vsub.f32 %v2856, %v2857
    %v2859 = vand.u32 %v2858, 4294901760
    %2860 = vmatmul.mubr.f32.gmra.mrb[0].mxu0 %v2859
    %v2861 = vpop.f32.mrb[0].mxu0
    %v2862 = vadd.f32 0.0, %v2861
    %v2863 = vpop.f32.mrb[0].mxu0
    %2864 = vdwg.mxu0
    %2865 = vmatprep.subr.mxu0 0.0
    %v2866 = vand.u32 %v263, 4294901760
    %v2867 = vsub.f32 %v263, %v2866
    %v2868 = vand.u32 %v2867, 4294901760
    %v2869 = vsub.f32 %v2867, %v2868
    %v2870 = vand.u32 %v2869, 4294901760
    %2871 = vmatpush1.msra.mxu0 %v2870
    %2872 = vmatprep.subr.mxu0 0.0
    %v2873 = vand.u32 %v264, 4294901760
    %v2874 = vsub.f32 %v264, %v2873
    %v2875 = vand.u32 %v2874, 4294901760
    %v2876 = vsub.f32 %v2874, %v2875
    %v2877 = vand.u32 %v2876, 4294901760
    %2878 = vmatpush1.msra.mxu0 %v2877
    %2879 = vmatprep.subr.mxu0 0.0
    %v2880 = vand.u32 %v265, 4294901760
    %v2881 = vsub.f32 %v265, %v2880
    %v2882 = vand.u32 %v2881, 4294901760
    %v2883 = vsub.f32 %v2881, %v2882
    %v2884 = vand.u32 %v2883, 4294901760
    %2885 = vmatpush1.msra.mxu0 %v2884
    %2886 = vmatprep.subr.mxu0 0.0
    %v2887 = vand.u32 %v266, 4294901760
    %v2888 = vsub.f32 %v266, %v2887
    %v2889 = vand.u32 %v2888, 4294901760
    %v2890 = vsub.f32 %v2888, %v2889
    %v2891 = vand.u32 %v2890, 4294901760
    %2892 = vmatpush1.msra.mxu0 %v2891
    %2893 = vmatprep.subr.mxu0 0.0
    %2894 = vmatpush1.msra.mxu0 0.0
    %2895 = vmatprep.subr.mxu0 0.0
    %2896 = vmatpush1.msra.mxu0 0.0
    %2897 = vmatprep.subr.mxu0 0.0
    %2898 = vmatpush1.msra.mxu0 0.0
    %2899 = vmatprep.subr.mxu0 0.0
    %2900 = vmatpush1.msra.mxu0 0.0
    %2901 = vmatprep.subr.mxu0 0.0
    %2902 = vmatpush1.msra.mxu0 0.0
    %2903 = vmatprep.subr.mxu0 0.0
    %2904 = vmatpush1.msra.mxu0 0.0
    %2905 = vmatprep.subr.mxu0 0.0
    %2906 = vmatpush1.msra.mxu0 0.0
    %2907 = vmatprep.subr.mxu0 0.0
    %2908 = vmatpush1.msra.mxu0 0.0
    %2909 = vmatprep.subr.mxu0 0.0
    %2910 = vmatpush1.msra.mxu0 0.0
    %2911 = vmatprep.subr.mxu0 0.0
    %2912 = vmatpush1.msra.mxu0 0.0
    %2913 = vmatprep.subr.mxu0 0.0
    %2914 = vmatpush1.msra.mxu0 0.0
    %2915 = vmatprep.subr.mxu0 0.0
    %2916 = vmatpush1.msra.mxu0 0.0
    %2917 = vmatprep.subr.mxu0 0.0
    %2918 = vmatpush1.msra.mxu0 0.0
    %2919 = vmatprep.subr.mxu0 0.0
    %2920 = vmatpush1.msra.mxu0 0.0
    %2921 = vmatprep.subr.mxu0 0.0
    %2922 = vmatpush1.msra.mxu0 0.0
    %2923 = vmatprep.subr.mxu0 0.0
    %2924 = vmatpush1.msra.mxu0 0.0
    %2925 = vmatprep.subr.mxu0 0.0
    %2926 = vmatpush1.msra.mxu0 0.0
    %2927 = vmatprep.subr.mxu0 0.0
    %2928 = vmatpush1.msra.mxu0 0.0
    %2929 = vmatprep.subr.mxu0 0.0
    %2930 = vmatpush1.msra.mxu0 0.0
    %2931 = vmatprep.subr.mxu0 0.0
    %2932 = vmatpush1.msra.mxu0 0.0
    %2933 = vmatprep.subr.mxu0 0.0
    %2934 = vmatpush1.msra.mxu0 0.0
    %2935 = vmatprep.subr.mxu0 0.0
    %2936 = vmatpush1.msra.mxu0 0.0
    %2937 = vmatprep.subr.mxu0 0.0
    %2938 = vmatpush1.msra.mxu0 0.0
    %2939 = vmatprep.subr.mxu0 0.0
    %2940 = vmatpush1.msra.mxu0 0.0
    %2941 = vmatprep.subr.mxu0 0.0
    %2942 = vmatpush1.msra.mxu0 0.0
    %2943 = vmatprep.subr.mxu0 0.0
    %2944 = vmatpush1.msra.mxu0 0.0
    %2945 = vmatprep.subr.mxu0 0.0
    %2946 = vmatpush1.msra.mxu0 0.0
    %2947 = vmatprep.subr.mxu0 0.0
    %2948 = vmatpush1.msra.mxu0 0.0
    %2949 = vmatprep.mubr.f32.mxu0 0.0
    %v2950 = vand.u32 %v2745, 4294901760
    %2951 = vmatmul.mubr.f32.gmra.mrb[0].mxu0 %v2950
    %v2952 = vpop.f32.mrb[0].mxu0
    %v2953 = vadd.f32 %v2832, %v2952
    %v2954 = vpop.f32.mrb[0].mxu0
    %2955 = vmatprep.mubr.f32.mxu0 0.0
    %v2956 = vand.u32 %v2748, 4294901760
    %2957 = vmatmul.mubr.f32.gmra.mrb[0].mxu0 %v2956
    %v2958 = vpop.f32.mrb[0].mxu0
    %v2959 = vadd.f32 %v2842, %v2958
    %v2960 = vpop.f32.mrb[0].mxu0
    %2961 = vmatprep.mubr.f32.mxu0 0.0
    %v2962 = vand.u32 %v2751, 4294901760
    %2963 = vmatmul.mubr.f32.gmra.mrb[0].mxu0 %v2962
    %v2964 = vpop.f32.mrb[0].mxu0
    %v2965 = vadd.f32 %v2852, %v2964
    %v2966 = vpop.f32.mrb[0].mxu0
    %2967 = vmatprep.mubr.f32.mxu0 0.0
    %v2968 = vand.u32 %v2754, 4294901760
    %2969 = vmatmul.mubr.f32.gmra.mrb[0].mxu0 %v2968
    %v2970 = vpop.f32.mrb[0].mxu0
    %v2971 = vadd.f32 %v2862, %v2970
    %v2972 = vpop.f32.mrb[0].mxu0
    %2973 = vdwg.mxu0
    %2974 = vmatprep.subr.mxu0 0.0
    %v2975 = vand.u32 %v263, 4294901760
    %v2976 = vsub.f32 %v263, %v2975
    %2977 = vmatpush1.msra.mxu0 %v2976
    %2978 = vmatprep.subr.mxu0 0.0
    %v2979 = vand.u32 %v264, 4294901760
    %v2980 = vsub.f32 %v264, %v2979
    %2981 = vmatpush1.msra.mxu0 %v2980
    %2982 = vmatprep.subr.mxu0 0.0
    %v2983 = vand.u32 %v265, 4294901760
    %v2984 = vsub.f32 %v265, %v2983
    %2985 = vmatpush1.msra.mxu0 %v2984
    %2986 = vmatprep.subr.mxu0 0.0
    %v2987 = vand.u32 %v266, 4294901760
    %v2988 = vsub.f32 %v266, %v2987
    %2989 = vmatpush1.msra.mxu0 %v2988
    %2990 = vmatprep.subr.mxu0 0.0
    %2991 = vmatpush1.msra.mxu0 0.0
    %2992 = vmatprep.subr.mxu0 0.0
    %2993 = vmatpush1.msra.mxu0 0.0
    %2994 = vmatprep.subr.mxu0 0.0
    %2995 = vmatpush1.msra.mxu0 0.0
    %2996 = vmatprep.subr.mxu0 0.0
    %2997 = vmatpush1.msra.mxu0 0.0
    %2998 = vmatprep.subr.mxu0 0.0
    %2999 = vmatpush1.msra.mxu0 0.0
    %3000 = vmatprep.subr.mxu0 0.0
    %3001 = vmatpush1.msra.mxu0 0.0
    %3002 = vmatprep.subr.mxu0 0.0
    %3003 = vmatpush1.msra.mxu0 0.0
    %3004 = vmatprep.subr.mxu0 0.0
    %3005 = vmatpush1.msra.mxu0 0.0
    %3006 = vmatprep.subr.mxu0 0.0
    %3007 = vmatpush1.msra.mxu0 0.0
    %3008 = vmatprep.subr.mxu0 0.0
    %3009 = vmatpush1.msra.mxu0 0.0
    %3010 = vmatprep.subr.mxu0 0.0
    %3011 = vmatpush1.msra.mxu0 0.0
    %3012 = vmatprep.subr.mxu0 0.0
    %3013 = vmatpush1.msra.mxu0 0.0
    %3014 = vmatprep.subr.mxu0 0.0
    %3015 = vmatpush1.msra.mxu0 0.0
    %3016 = vmatprep.subr.mxu0 0.0
    %3017 = vmatpush1.msra.mxu0 0.0
    %3018 = vmatprep.subr.mxu0 0.0
    %3019 = vmatpush1.msra.mxu0 0.0
    %3020 = vmatprep.subr.mxu0 0.0
    %3021 = vmatpush1.msra.mxu0 0.0
    %3022 = vmatprep.subr.mxu0 0.0
    %3023 = vmatpush1.msra.mxu0 0.0
    %3024 = vmatprep.subr.mxu0 0.0
    %3025 = vmatpush1.msra.mxu0 0.0
    %3026 = vmatprep.subr.mxu0 0.0
    %3027 = vmatpush1.msra.mxu0 0.0
    %3028 = vmatprep.subr.mxu0 0.0
    %3029 = vmatpush1.msra.mxu0 0.0
    %3030 = vmatprep.subr.mxu0 0.0
    %3031 = vmatpush1.msra.mxu0 0.0
    %3032 = vmatprep.subr.mxu0 0.0
    %3033 = vmatpush1.msra.mxu0 0.0
    %3034 = vmatprep.subr.mxu0 0.0
    %3035 = vmatpush1.msra.mxu0 0.0
    %3036 = vmatprep.subr.mxu0 0.0
    %3037 = vmatpush1.msra.mxu0 0.0
    %3038 = vmatprep.subr.mxu0 0.0
    %3039 = vmatpush1.msra.mxu0 0.0
    %3040 = vmatprep.subr.mxu0 0.0
    %3041 = vmatpush1.msra.mxu0 0.0
    %3042 = vmatprep.subr.mxu0 0.0
    %3043 = vmatpush1.msra.mxu0 0.0
    %3044 = vmatprep.subr.mxu0 0.0
    %3045 = vmatpush1.msra.mxu0 0.0
    %3046 = vmatprep.mubr.f32.mxu0 0.0
    %v3047 = vand.u32 %v2745, 4294901760
    %v3048 = vsub.f32 %v2745, %v3047
    %3049 = vmatmul.mubr.f32.gmra.mrb[0].mxu0 %v3048
    %v3050 = vpop.f32.mrb[0].mxu0
    %v3051 = vadd.f32 %v2953, %v3050
    %v3052 = vpop.f32.mrb[0].mxu0
    %3053 = vmatprep.mubr.f32.mxu0 0.0
    %v3054 = vand.u32 %v2748, 4294901760
    %v3055 = vsub.f32 %v2748, %v3054
    %3056 = vmatmul.mubr.f32.gmra.mrb[0].mxu0 %v3055
    %v3057 = vpop.f32.mrb[0].mxu0
    %v3058 = vadd.f32 %v2959, %v3057
    %v3059 = vpop.f32.mrb[0].mxu0
    %3060 = vmatprep.mubr.f32.mxu0 0.0
    %v3061 = vand.u32 %v2751, 4294901760
    %v3062 = vsub.f32 %v2751, %v3061
    %3063 = vmatmul.mubr.f32.gmra.mrb[0].mxu0 %v3062
    %v3064 = vpop.f32.mrb[0].mxu0
    %v3065 = vadd.f32 %v2965, %v3064
    %v3066 = vpop.f32.mrb[0].mxu0
    %3067 = vmatprep.mubr.f32.mxu0 0.0
    %v3068 = vand.u32 %v2754, 4294901760
    %v3069 = vsub.f32 %v2754, %v3068
    %3070 = vmatmul.mubr.f32.gmra.mrb[0].mxu0 %v3069
    %v3071 = vpop.f32.mrb[0].mxu0
    %v3072 = vadd.f32 %v2971, %v3071
    %v3073 = vpop.f32.mrb[0].mxu0
    %3074 = vdwg.mxu0
    %3075 = vmatprep.subr.mxu0 0.0
    %v3076 = vand.u32 %v263, 4294901760
    %3077 = vmatpush1.msra.mxu0 %v3076
    %3078 = vmatprep.subr.mxu0 0.0
    %v3079 = vand.u32 %v264, 4294901760
    %3080 = vmatpush1.msra.mxu0 %v3079
    %3081 = vmatprep.subr.mxu0 0.0
    %v3082 = vand.u32 %v265, 4294901760
    %3083 = vmatpush1.msra.mxu0 %v3082
    %3084 = vmatprep.subr.mxu0 0.0
    %v3085 = vand.u32 %v266, 4294901760
    %3086 = vmatpush1.msra.mxu0 %v3085
    %3087 = vmatprep.subr.mxu0 0.0
    %3088 = vmatpush1.msra.mxu0 0.0
    %3089 = vmatprep.subr.mxu0 0.0
    %3090 = vmatpush1.msra.mxu0 0.0
    %3091 = vmatprep.subr.mxu0 0.0
    %3092 = vmatpush1.msra.mxu0 0.0
    %3093 = vmatprep.subr.mxu0 0.0
    %3094 = vmatpush1.msra.mxu0 0.0
    %3095 = vmatprep.subr.mxu0 0.0
    %3096 = vmatpush1.msra.mxu0 0.0
    %3097 = vmatprep.subr.mxu0 0.0
    %3098 = vmatpush1.msra.mxu0 0.0
    %3099 = vmatprep.subr.mxu0 0.0
    %3100 = vmatpush1.msra.mxu0 0.0
    %3101 = vmatprep.subr.mxu0 0.0
    %3102 = vmatpush1.msra.mxu0 0.0
    %3103 = vmatprep.subr.mxu0 0.0
    %3104 = vmatpush1.msra.mxu0 0.0
    %3105 = vmatprep.subr.mxu0 0.0
    %3106 = vmatpush1.msra.mxu0 0.0
    %3107 = vmatprep.subr.mxu0 0.0
    %3108 = vmatpush1.msra.mxu0 0.0
    %3109 = vmatprep.subr.mxu0 0.0
    %3110 = vmatpush1.msra.mxu0 0.0
    %3111 = vmatprep.subr.mxu0 0.0
    %3112 = vmatpush1.msra.mxu0 0.0
    %3113 = vmatprep.subr.mxu0 0.0
    %3114 = vmatpush1.msra.mxu0 0.0
    %3115 = vmatprep.subr.mxu0 0.0
    %3116 = vmatpush1.msra.mxu0 0.0
    %3117 = vmatprep.subr.mxu0 0.0
    %3118 = vmatpush1.msra.mxu0 0.0
    %3119 = vmatprep.subr.mxu0 0.0
    %3120 = vmatpush1.msra.mxu0 0.0
    %3121 = vmatprep.subr.mxu0 0.0
    %3122 = vmatpush1.msra.mxu0 0.0
    %3123 = vmatprep.subr.mxu0 0.0
    %3124 = vmatpush1.msra.mxu0 0.0
    %3125 = vmatprep.subr.mxu0 0.0
    %3126 = vmatpush1.msra.mxu0 0.0
    %3127 = vmatprep.subr.mxu0 0.0
    %3128 = vmatpush1.msra.mxu0 0.0
    %3129 = vmatprep.subr.mxu0 0.0
    %3130 = vmatpush1.msra.mxu0 0.0
    %3131 = vmatprep.subr.mxu0 0.0
    %3132 = vmatpush1.msra.mxu0 0.0
    %3133 = vmatprep.subr.mxu0 0.0
    %3134 = vmatpush1.msra.mxu0 0.0
    %3135 = vmatprep.subr.mxu0 0.0
    %3136 = vmatpush1.msra.mxu0 0.0
    %3137 = vmatprep.subr.mxu0 0.0
    %3138 = vmatpush1.msra.mxu0 0.0
    %3139 = vmatprep.subr.mxu0 0.0
    %3140 = vmatpush1.msra.mxu0 0.0
    %3141 = vmatprep.subr.mxu0 0.0
    %3142 = vmatpush1.msra.mxu0 0.0
    %3143 = vmatprep.mubr.f32.mxu0 0.0
    %v3144 = vand.u32 %v2745, 4294901760
    %v3145 = vsub.f32 %v2745, %v3144
    %v3146 = vand.u32 %v3145, 4294901760
    %3147 = vmatmul.mubr.f32.gmra.mrb[0].mxu0 %v3146
    %v3148 = vpop.f32.mrb[0].mxu0
    %v3149 = vadd.f32 %v3051, %v3148
    %v3150 = vpop.f32.mrb[0].mxu0
    %3151 = vmatprep.mubr.f32.mxu0 0.0
    %v3152 = vand.u32 %v2748, 4294901760
    %v3153 = vsub.f32 %v2748, %v3152
    %v3154 = vand.u32 %v3153, 4294901760
    %3155 = vmatmul.mubr.f32.gmra.mrb[0].mxu0 %v3154
    %v3156 = vpop.f32.mrb[0].mxu0
    %v3157 = vadd.f32 %v3058, %v3156
    %v3158 = vpop.f32.mrb[0].mxu0
    %3159 = vmatprep.mubr.f32.mxu0 0.0
    %v3160 = vand.u32 %v2751, 4294901760
    %v3161 = vsub.f32 %v2751, %v3160
    %v3162 = vand.u32 %v3161, 4294901760
    %3163 = vmatmul.mubr.f32.gmra.mrb[0].mxu0 %v3162
    %v3164 = vpop.f32.mrb[0].mxu0
    %v3165 = vadd.f32 %v3065, %v3164
    %v3166 = vpop.f32.mrb[0].mxu0
    %3167 = vmatprep.mubr.f32.mxu0 0.0
    %v3168 = vand.u32 %v2754, 4294901760
    %v3169 = vsub.f32 %v2754, %v3168
    %v3170 = vand.u32 %v3169, 4294901760
    %3171 = vmatmul.mubr.f32.gmra.mrb[0].mxu0 %v3170
    %v3172 = vpop.f32.mrb[0].mxu0
    %v3173 = vadd.f32 %v3072, %v3172
    %v3174 = vpop.f32.mrb[0].mxu0
    %3175 = vdwg.mxu0
    %3176 = vmatprep.subr.mxu0 0.0
    %v3177 = vand.u32 %v263, 4294901760
    %v3178 = vsub.f32 %v263, %v3177
    %v3179 = vand.u32 %v3178, 4294901760
    %3180 = vmatpush1.msra.mxu0 %v3179
    %3181 = vmatprep.subr.mxu0 0.0
    %v3182 = vand.u32 %v264, 4294901760
    %v3183 = vsub.f32 %v264, %v3182
    %v3184 = vand.u32 %v3183, 4294901760
    %3185 = vmatpush1.msra.mxu0 %v3184
    %3186 = vmatprep.subr.mxu0 0.0
    %v3187 = vand.u32 %v265, 4294901760
    %v3188 = vsub.f32 %v265, %v3187
    %v3189 = vand.u32 %v3188, 4294901760
    %3190 = vmatpush1.msra.mxu0 %v3189
    %3191 = vmatprep.subr.mxu0 0.0
    %v3192 = vand.u32 %v266, 4294901760
    %v3193 = vsub.f32 %v266, %v3192
    %v3194 = vand.u32 %v3193, 4294901760
    %3195 = vmatpush1.msra.mxu0 %v3194
    %3196 = vmatprep.subr.mxu0 0.0
    %3197 = vmatpush1.msra.mxu0 0.0
    %3198 = vmatprep.subr.mxu0 0.0
    %3199 = vmatpush1.msra.mxu0 0.0
    %3200 = vmatprep.subr.mxu0 0.0
    %3201 = vmatpush1.msra.mxu0 0.0
    %3202 = vmatprep.subr.mxu0 0.0
    %3203 = vmatpush1.msra.mxu0 0.0
    %3204 = vmatprep.subr.mxu0 0.0
    %3205 = vmatpush1.msra.mxu0 0.0
    %3206 = vmatprep.subr.mxu0 0.0
    %3207 = vmatpush1.msra.mxu0 0.0
    %3208 = vmatprep.subr.mxu0 0.0
    %3209 = vmatpush1.msra.mxu0 0.0
    %3210 = vmatprep.subr.mxu0 0.0
    %3211 = vmatpush1.msra.mxu0 0.0
    %3212 = vmatprep.subr.mxu0 0.0
    %3213 = vmatpush1.msra.mxu0 0.0
    %3214 = vmatprep.subr.mxu0 0.0
    %3215 = vmatpush1.msra.mxu0 0.0
    %3216 = vmatprep.subr.mxu0 0.0
    %3217 = vmatpush1.msra.mxu0 0.0
    %3218 = vmatprep.subr.mxu0 0.0
    %3219 = vmatpush1.msra.mxu0 0.0
    %3220 = vmatprep.subr.mxu0 0.0
    %3221 = vmatpush1.msra.mxu0 0.0
    %3222 = vmatprep.subr.mxu0 0.0
    %3223 = vmatpush1.msra.mxu0 0.0
    %3224 = vmatprep.subr.mxu0 0.0
    %3225 = vmatpush1.msra.mxu0 0.0
    %3226 = vmatprep.subr.mxu0 0.0
    %3227 = vmatpush1.msra.mxu0 0.0
    %3228 = vmatprep.subr.mxu0 0.0
    %3229 = vmatpush1.msra.mxu0 0.0
    %3230 = vmatprep.subr.mxu0 0.0
    %3231 = vmatpush1.msra.mxu0 0.0
    %3232 = vmatprep.subr.mxu0 0.0
    %3233 = vmatpush1.msra.mxu0 0.0
    %3234 = vmatprep.subr.mxu0 0.0
    %3235 = vmatpush1.msra.mxu0 0.0
    %3236 = vmatprep.subr.mxu0 0.0
    %3237 = vmatpush1.msra.mxu0 0.0
    %3238 = vmatprep.subr.mxu0 0.0
    %3239 = vmatpush1.msra.mxu0 0.0
    %3240 = vmatprep.subr.mxu0 0.0
    %3241 = vmatpush1.msra.mxu0 0.0
    %3242 = vmatprep.subr.mxu0 0.0
    %3243 = vmatpush1.msra.mxu0 0.0
    %3244 = vmatprep.subr.mxu0 0.0
    %3245 = vmatpush1.msra.mxu0 0.0
    %3246 = vmatprep.subr.mxu0 0.0
    %3247 = vmatpush1.msra.mxu0 0.0
    %3248 = vmatprep.subr.mxu0 0.0
    %3249 = vmatpush1.msra.mxu0 0.0
    %3250 = vmatprep.subr.mxu0 0.0
    %3251 = vmatpush1.msra.mxu0 0.0
    %3252 = vmatprep.mubr.f32.mxu0 0.0
    %v3253 = vand.u32 %v2745, 4294901760
    %3254 = vmatmul.mubr.f32.gmra.mrb[0].mxu0 %v3253
    %v3255 = vpop.f32.mrb[0].mxu0
    %v3256 = vadd.f32 %v3149, %v3255
    %v3257 = vpop.f32.mrb[0].mxu0
    %3258 = vmatprep.mubr.f32.mxu0 0.0
    %v3259 = vand.u32 %v2748, 4294901760
    %3260 = vmatmul.mubr.f32.gmra.mrb[0].mxu0 %v3259
    %v3261 = vpop.f32.mrb[0].mxu0
    %v3262 = vadd.f32 %v3157, %v3261
    %v3263 = vpop.f32.mrb[0].mxu0
    %3264 = vmatprep.mubr.f32.mxu0 0.0
    %v3265 = vand.u32 %v2751, 4294901760
    %3266 = vmatmul.mubr.f32.gmra.mrb[0].mxu0 %v3265
    %v3267 = vpop.f32.mrb[0].mxu0
    %v3268 = vadd.f32 %v3165, %v3267
    %v3269 = vpop.f32.mrb[0].mxu0
    %3270 = vmatprep.mubr.f32.mxu0 0.0
    %v3271 = vand.u32 %v2754, 4294901760
    %3272 = vmatmul.mubr.f32.gmra.mrb[0].mxu0 %v3271
    %v3273 = vpop.f32.mrb[0].mxu0
    %v3274 = vadd.f32 %v3173, %v3273
    %v3275 = vpop.f32.mrb[0].mxu0
    %3276 = vdwg.mxu0
    %3277 = vmatprep.subr.mxu0 0.0
    %v3278 = vand.u32 %v263, 4294901760
    %3279 = vmatpush1.msra.mxu0 %v3278
    %3280 = vmatprep.subr.mxu0 0.0
    %v3281 = vand.u32 %v264, 4294901760
    %3282 = vmatpush1.msra.mxu0 %v3281
    %3283 = vmatprep.subr.mxu0 0.0
    %v3284 = vand.u32 %v265, 4294901760
    %3285 = vmatpush1.msra.mxu0 %v3284
    %3286 = vmatprep.subr.mxu0 0.0
    %v3287 = vand.u32 %v266, 4294901760
    %3288 = vmatpush1.msra.mxu0 %v3287
    %3289 = vmatprep.subr.mxu0 0.0
    %3290 = vmatpush1.msra.mxu0 0.0
    %3291 = vmatprep.subr.mxu0 0.0
    %3292 = vmatpush1.msra.mxu0 0.0
    %3293 = vmatprep.subr.mxu0 0.0
    %3294 = vmatpush1.msra.mxu0 0.0
    %3295 = vmatprep.subr.mxu0 0.0
    %3296 = vmatpush1.msra.mxu0 0.0
    %3297 = vmatprep.subr.mxu0 0.0
    %3298 = vmatpush1.msra.mxu0 0.0
    %3299 = vmatprep.subr.mxu0 0.0
    %3300 = vmatpush1.msra.mxu0 0.0
    %3301 = vmatprep.subr.mxu0 0.0
    %3302 = vmatpush1.msra.mxu0 0.0
    %3303 = vmatprep.subr.mxu0 0.0
    %3304 = vmatpush1.msra.mxu0 0.0
    %3305 = vmatprep.subr.mxu0 0.0
    %3306 = vmatpush1.msra.mxu0 0.0
    %3307 = vmatprep.subr.mxu0 0.0
    %3308 = vmatpush1.msra.mxu0 0.0
    %3309 = vmatprep.subr.mxu0 0.0
    %3310 = vmatpush1.msra.mxu0 0.0
    %3311 = vmatprep.subr.mxu0 0.0
    %3312 = vmatpush1.msra.mxu0 0.0
    %3313 = vmatprep.subr.mxu0 0.0
    %3314 = vmatpush1.msra.mxu0 0.0
    %3315 = vmatprep.subr.mxu0 0.0
    %3316 = vmatpush1.msra.mxu0 0.0
    %3317 = vmatprep.subr.mxu0 0.0
    %3318 = vmatpush1.msra.mxu0 0.0
    %3319 = vmatprep.subr.mxu0 0.0
    %3320 = vmatpush1.msra.mxu0 0.0
    %3321 = vmatprep.subr.mxu0 0.0
    %3322 = vmatpush1.msra.mxu0 0.0
    %3323 = vmatprep.subr.mxu0 0.0
    %3324 = vmatpush1.msra.mxu0 0.0
    %3325 = vmatprep.subr.mxu0 0.0
    %3326 = vmatpush1.msra.mxu0 0.0
    %3327 = vmatprep.subr.mxu0 0.0
    %3328 = vmatpush1.msra.mxu0 0.0
    %3329 = vmatprep.subr.mxu0 0.0
    %3330 = vmatpush1.msra.mxu0 0.0
    %3331 = vmatprep.subr.mxu0 0.0
    %3332 = vmatpush1.msra.mxu0 0.0
    %3333 = vmatprep.subr.mxu0 0.0
    %3334 = vmatpush1.msra.mxu0 0.0
    %3335 = vmatprep.subr.mxu0 0.0
    %3336 = vmatpush1.msra.mxu0 0.0
    %3337 = vmatprep.subr.mxu0 0.0
    %3338 = vmatpush1.msra.mxu0 0.0
    %3339 = vmatprep.subr.mxu0 0.0
    %3340 = vmatpush1.msra.mxu0 0.0
    %3341 = vmatprep.subr.mxu0 0.0
    %3342 = vmatpush1.msra.mxu0 0.0
    %3343 = vmatprep.subr.mxu0 0.0
    %3344 = vmatpush1.msra.mxu0 0.0
    %3345 = vmatprep.mubr.f32.mxu0 0.0
    %v3346 = vand.u32 %v2745, 4294901760
    %3347 = vmatmul.mubr.f32.gmra.mrb[0].mxu0 %v3346
    %v3348 = vpop.f32.mrb[0].mxu0
    %v3349 = vadd.f32 %v3256, %v3348
    %v3350 = vpop.f32.mrb[0].mxu0
    %3351 = vmatprep.mubr.f32.mxu0 0.0
    %v3352 = vand.u32 %v2748, 4294901760
    %3353 = vmatmul.mubr.f32.gmra.mrb[0].mxu0 %v3352
    %v3354 = vpop.f32.mrb[0].mxu0
    %v3355 = vadd.f32 %v3262, %v3354
    %v3356 = vpop.f32.mrb[0].mxu0
    %3357 = vmatprep.mubr.f32.mxu0 0.0
    %v3358 = vand.u32 %v2751, 4294901760
    %3359 = vmatmul.mubr.f32.gmra.mrb[0].mxu0 %v3358
    %v3360 = vpop.f32.mrb[0].mxu0
    %v3361 = vadd.f32 %v3268, %v3360
    %v3362 = vpop.f32.mrb[0].mxu0
    %3363 = vmatprep.mubr.f32.mxu0 0.0
    %v3364 = vand.u32 %v2754, 4294901760
    %3365 = vmatmul.mubr.f32.gmra.mrb[0].mxu0 %v3364
    %v3366 = vpop.f32.mrb[0].mxu0
    %v3367 = vadd.f32 %v3274, %v3366
    %v3368 = vpop.f32.mrb[0].mxu0
    %3369 = vdwg.mxu0
    %v3370 = vld [vmem:[%s2] sm:$0x1]
    %v3372 = vlaneseq
    %v3373 = vshrl.u32 %v3372, 7
    %v3374 = vsub.s32 0, %v3373
    %v3375 = vrot.slane %v3370, %v3374
    %v3377 = vsel %vm2736, %v3375, 0.0
    %v3378 = vsel %vm2737, %v3375, 0.0
    %v3379 = vsel %vm2738, %v3375, 0.0
    %v3380 = vsel %vm2739, %v3375, 0.0
    %v3382 = vsel %vm267, %v3377, 0
    %v3385 = vsel %vm267, %v3378, 0
    %v3388 = vsel %vm267, %v3379, 0
    %v3391 = vsel %vm267, %v3380, 0
    %3393 = vmatprep.subr.mxu0 0.0
    %v3394 = vand.u32 %v263, 4294901760
    %3395 = vmatpush1.msra.mxu0 %v3394
    %3396 = vmatprep.subr.mxu0 0.0
    %v3397 = vand.u32 %v264, 4294901760
    %3398 = vmatpush1.msra.mxu0 %v3397
    %3399 = vmatprep.subr.mxu0 0.0
    %v3400 = vand.u32 %v265, 4294901760
    %3401 = vmatpush1.msra.mxu0 %v3400
    %3402 = vmatprep.subr.mxu0 0.0
    %v3403 = vand.u32 %v266, 4294901760
    %3404 = vmatpush1.msra.mxu0 %v3403
    %3405 = vmatprep.subr.mxu0 0.0
    %3406 = vmatpush1.msra.mxu0 0.0
    %3407 = vmatprep.subr.mxu0 0.0
    %3408 = vmatpush1.msra.mxu0 0.0
    %3409 = vmatprep.subr.mxu0 0.0
    %3410 = vmatpush1.msra.mxu0 0.0
    %3411 = vmatprep.subr.mxu0 0.0
    %3412 = vmatpush1.msra.mxu0 0.0
    %3413 = vmatprep.subr.mxu0 0.0
    %3414 = vmatpush1.msra.mxu0 0.0
    %3415 = vmatprep.subr.mxu0 0.0
    %3416 = vmatpush1.msra.mxu0 0.0
    %3417 = vmatprep.subr.mxu0 0.0
    %3418 = vmatpush1.msra.mxu0 0.0
    %3419 = vmatprep.subr.mxu0 0.0
    %3420 = vmatpush1.msra.mxu0 0.0
    %3421 = vmatprep.subr.mxu0 0.0
    %3422 = vmatpush1.msra.mxu0 0.0
    %3423 = vmatprep.subr.mxu0 0.0
    %3424 = vmatpush1.msra.mxu0 0.0
    %3425 = vmatprep.subr.mxu0 0.0
    %3426 = vmatpush1.msra.mxu0 0.0
    %3427 = vmatprep.subr.mxu0 0.0
    %3428 = vmatpush1.msra.mxu0 0.0
    %3429 = vmatprep.subr.mxu0 0.0
    %3430 = vmatpush1.msra.mxu0 0.0
    %3431 = vmatprep.subr.mxu0 0.0
    %3432 = vmatpush1.msra.mxu0 0.0
    %3433 = vmatprep.subr.mxu0 0.0
    %3434 = vmatpush1.msra.mxu0 0.0
    %3435 = vmatprep.subr.mxu0 0.0
    %3436 = vmatpush1.msra.mxu0 0.0
    %3437 = vmatprep.subr.mxu0 0.0
    %3438 = vmatpush1.msra.mxu0 0.0
    %3439 = vmatprep.subr.mxu0 0.0
    %3440 = vmatpush1.msra.mxu0 0.0
    %3441 = vmatprep.subr.mxu0 0.0
    %3442 = vmatpush1.msra.mxu0 0.0
    %3443 = vmatprep.subr.mxu0 0.0
    %3444 = vmatpush1.msra.mxu0 0.0
    %3445 = vmatprep.subr.mxu0 0.0
    %3446 = vmatpush1.msra.mxu0 0.0
    %3447 = vmatprep.subr.mxu0 0.0
    %3448 = vmatpush1.msra.mxu0 0.0
    %3449 = vmatprep.subr.mxu0 0.0
    %3450 = vmatpush1.msra.mxu0 0.0
    %3451 = vmatprep.subr.mxu0 0.0
    %3452 = vmatpush1.msra.mxu0 0.0
    %3453 = vmatprep.subr.mxu0 0.0
    %3454 = vmatpush1.msra.mxu0 0.0
    %3455 = vmatprep.subr.mxu0 0.0
    %3456 = vmatpush1.msra.mxu0 0.0
    %3457 = vmatprep.subr.mxu0 0.0
    %3458 = vmatpush1.msra.mxu0 0.0
    %3459 = vmatprep.subr.mxu0 0.0
    %3460 = vmatpush1.msra.mxu0 0.0
    %3461 = vmatprep.mubr.f32.mxu0 0.0
    %v3462 = vand.u32 %v3382, 4294901760
    %v3463 = vsub.f32 %v3382, %v3462
    %v3464 = vand.u32 %v3463, 4294901760
    %v3465 = vsub.f32 %v3463, %v3464
    %v3466 = vand.u32 %v3465, 4294901760
    %3467 = vmatmul.mubr.f32.gmra.mrb[0].mxu0 %v3466
    %v3468 = vpop.f32.mrb[0].mxu0
    %v3469 = vadd.f32 0.0, %v3468
    %v3470 = vpop.f32.mrb[0].mxu0
    %3471 = vmatprep.mubr.f32.mxu0 0.0
    %v3472 = vand.u32 %v3385, 4294901760
    %v3473 = vsub.f32 %v3385, %v3472
    %v3474 = vand.u32 %v3473, 4294901760
    %v3475 = vsub.f32 %v3473, %v3474
    %v3476 = vand.u32 %v3475, 4294901760
    %3477 = vmatmul.mubr.f32.gmra.mrb[0].mxu0 %v3476
    %v3478 = vpop.f32.mrb[0].mxu0
    %v3479 = vadd.f32 0.0, %v3478
    %v3480 = vpop.f32.mrb[0].mxu0
    %3481 = vmatprep.mubr.f32.mxu0 0.0
    %v3482 = vand.u32 %v3388, 4294901760
    %v3483 = vsub.f32 %v3388, %v3482
    %v3484 = vand.u32 %v3483, 4294901760
    %v3485 = vsub.f32 %v3483, %v3484
    %v3486 = vand.u32 %v3485, 4294901760
    %3487 = vmatmul.mubr.f32.gmra.mrb[0].mxu0 %v3486
    %v3488 = vpop.f32.mrb[0].mxu0
    %v3489 = vadd.f32 0.0, %v3488
    %v3490 = vpop.f32.mrb[0].mxu0
    %3491 = vmatprep.mubr.f32.mxu0 0.0
    %v3492 = vand.u32 %v3391, 4294901760
    %v3493 = vsub.f32 %v3391, %v3492
    %v3494 = vand.u32 %v3493, 4294901760
    %v3495 = vsub.f32 %v3493, %v3494
    %v3496 = vand.u32 %v3495, 4294901760
    %3497 = vmatmul.mubr.f32.gmra.mrb[0].mxu0 %v3496
    %v3498 = vpop.f32.mrb[0].mxu0
    %v3499 = vadd.f32 0.0, %v3498
    %v3500 = vpop.f32.mrb[0].mxu0
    %3501 = vdwg.mxu0
    %3502 = vmatprep.subr.mxu0 0.0
    %v3503 = vand.u32 %v263, 4294901760
    %v3504 = vsub.f32 %v263, %v3503
    %v3505 = vand.u32 %v3504, 4294901760
    %v3506 = vsub.f32 %v3504, %v3505
    %v3507 = vand.u32 %v3506, 4294901760
    %3508 = vmatpush1.msra.mxu0 %v3507
    %3509 = vmatprep.subr.mxu0 0.0
    %v3510 = vand.u32 %v264, 4294901760
    %v3511 = vsub.f32 %v264, %v3510
    %v3512 = vand.u32 %v3511, 4294901760
    %v3513 = vsub.f32 %v3511, %v3512
    %v3514 = vand.u32 %v3513, 4294901760
    %3515 = vmatpush1.msra.mxu0 %v3514
    %3516 = vmatprep.subr.mxu0 0.0
    %v3517 = vand.u32 %v265, 4294901760
    %v3518 = vsub.f32 %v265, %v3517
    %v3519 = vand.u32 %v3518, 4294901760
    %v3520 = vsub.f32 %v3518, %v3519
    %v3521 = vand.u32 %v3520, 4294901760
    %3522 = vmatpush1.msra.mxu0 %v3521
    %3523 = vmatprep.subr.mxu0 0.0
    %v3524 = vand.u32 %v266, 4294901760
    %v3525 = vsub.f32 %v266, %v3524
    %v3526 = vand.u32 %v3525, 4294901760
    %v3527 = vsub.f32 %v3525, %v3526
    %v3528 = vand.u32 %v3527, 4294901760
    %3529 = vmatpush1.msra.mxu0 %v3528
    %3530 = vmatprep.subr.mxu0 0.0
    %3531 = vmatpush1.msra.mxu0 0.0
    %3532 = vmatprep.subr.mxu0 0.0
    %3533 = vmatpush1.msra.mxu0 0.0
    %3534 = vmatprep.subr.mxu0 0.0
    %3535 = vmatpush1.msra.mxu0 0.0
    %3536 = vmatprep.subr.mxu0 0.0
    %3537 = vmatpush1.msra.mxu0 0.0
    %3538 = vmatprep.subr.mxu0 0.0
    %3539 = vmatpush1.msra.mxu0 0.0
    %3540 = vmatprep.subr.mxu0 0.0
    %3541 = vmatpush1.msra.mxu0 0.0
    %3542 = vmatprep.subr.mxu0 0.0
    %3543 = vmatpush1.msra.mxu0 0.0
    %3544 = vmatprep.subr.mxu0 0.0
    %3545 = vmatpush1.msra.mxu0 0.0
    %3546 = vmatprep.subr.mxu0 0.0
    %3547 = vmatpush1.msra.mxu0 0.0
    %3548 = vmatprep.subr.mxu0 0.0
    %3549 = vmatpush1.msra.mxu0 0.0
    %3550 = vmatprep.subr.mxu0 0.0
    %3551 = vmatpush1.msra.mxu0 0.0
    %3552 = vmatprep.subr.mxu0 0.0
    %3553 = vmatpush1.msra.mxu0 0.0
    %3554 = vmatprep.subr.mxu0 0.0
    %3555 = vmatpush1.msra.mxu0 0.0
    %3556 = vmatprep.subr.mxu0 0.0
    %3557 = vmatpush1.msra.mxu0 0.0
    %3558 = vmatprep.subr.mxu0 0.0
    %3559 = vmatpush1.msra.mxu0 0.0
    %3560 = vmatprep.subr.mxu0 0.0
    %3561 = vmatpush1.msra.mxu0 0.0
    %3562 = vmatprep.subr.mxu0 0.0
    %3563 = vmatpush1.msra.mxu0 0.0
    %3564 = vmatprep.subr.mxu0 0.0
    %3565 = vmatpush1.msra.mxu0 0.0
    %3566 = vmatprep.subr.mxu0 0.0
    %3567 = vmatpush1.msra.mxu0 0.0
    %3568 = vmatprep.subr.mxu0 0.0
    %3569 = vmatpush1.msra.mxu0 0.0
    %3570 = vmatprep.subr.mxu0 0.0
    %3571 = vmatpush1.msra.mxu0 0.0
    %3572 = vmatprep.subr.mxu0 0.0
    %3573 = vmatpush1.msra.mxu0 0.0
    %3574 = vmatprep.subr.mxu0 0.0
    %3575 = vmatpush1.msra.mxu0 0.0
    %3576 = vmatprep.subr.mxu0 0.0
    %3577 = vmatpush1.msra.mxu0 0.0
    %3578 = vmatprep.subr.mxu0 0.0
    %3579 = vmatpush1.msra.mxu0 0.0
    %3580 = vmatprep.subr.mxu0 0.0
    %3581 = vmatpush1.msra.mxu0 0.0
    %3582 = vmatprep.subr.mxu0 0.0
    %3583 = vmatpush1.msra.mxu0 0.0
    %3584 = vmatprep.subr.mxu0 0.0
    %3585 = vmatpush1.msra.mxu0 0.0
    %3586 = vmatprep.mubr.f32.mxu0 0.0
    %v3587 = vand.u32 %v3382, 4294901760
    %3588 = vmatmul.mubr.f32.gmra.mrb[0].mxu0 %v3587
    %v3589 = vpop.f32.mrb[0].mxu0
    %v3590 = vadd.f32 %v3469, %v3589
    %v3591 = vpop.f32.mrb[0].mxu0
    %3592 = vmatprep.mubr.f32.mxu0 0.0
    %v3593 = vand.u32 %v3385, 4294901760
    %3594 = vmatmul.mubr.f32.gmra.mrb[0].mxu0 %v3593
    %v3595 = vpop.f32.mrb[0].mxu0
    %v3596 = vadd.f32 %v3479, %v3595
    %v3597 = vpop.f32.mrb[0].mxu0
    %3598 = vmatprep.mubr.f32.mxu0 0.0
    %v3599 = vand.u32 %v3388, 4294901760
    %3600 = vmatmul.mubr.f32.gmra.mrb[0].mxu0 %v3599
    %v3601 = vpop.f32.mrb[0].mxu0
    %v3602 = vadd.f32 %v3489, %v3601
    %v3603 = vpop.f32.mrb[0].mxu0
    %3604 = vmatprep.mubr.f32.mxu0 0.0
    %v3605 = vand.u32 %v3391, 4294901760
    %3606 = vmatmul.mubr.f32.gmra.mrb[0].mxu0 %v3605
    %v3607 = vpop.f32.mrb[0].mxu0
    %v3608 = vadd.f32 %v3499, %v3607
    %v3609 = vpop.f32.mrb[0].mxu0
    %3610 = vdwg.mxu0
    %3611 = vmatprep.subr.mxu0 0.0
    %v3612 = vand.u32 %v263, 4294901760
    %v3613 = vsub.f32 %v263, %v3612
    %3614 = vmatpush1.msra.mxu0 %v3613
    %3615 = vmatprep.subr.mxu0 0.0
    %v3616 = vand.u32 %v264, 4294901760
    %v3617 = vsub.f32 %v264, %v3616
    %3618 = vmatpush1.msra.mxu0 %v3617
    %3619 = vmatprep.subr.mxu0 0.0
    %v3620 = vand.u32 %v265, 4294901760
    %v3621 = vsub.f32 %v265, %v3620
    %3622 = vmatpush1.msra.mxu0 %v3621
    %3623 = vmatprep.subr.mxu0 0.0
    %v3624 = vand.u32 %v266, 4294901760
    %v3625 = vsub.f32 %v266, %v3624
    %3626 = vmatpush1.msra.mxu0 %v3625
    %3627 = vmatprep.subr.mxu0 0.0
    %3628 = vmatpush1.msra.mxu0 0.0
    %3629 = vmatprep.subr.mxu0 0.0
    %3630 = vmatpush1.msra.mxu0 0.0
    %3631 = vmatprep.subr.mxu0 0.0
    %3632 = vmatpush1.msra.mxu0 0.0
    %3633 = vmatprep.subr.mxu0 0.0
    %3634 = vmatpush1.msra.mxu0 0.0
    %3635 = vmatprep.subr.mxu0 0.0
    %3636 = vmatpush1.msra.mxu0 0.0
    %3637 = vmatprep.subr.mxu0 0.0
    %3638 = vmatpush1.msra.mxu0 0.0
    %3639 = vmatprep.subr.mxu0 0.0
    %3640 = vmatpush1.msra.mxu0 0.0
    %3641 = vmatprep.subr.mxu0 0.0
    %3642 = vmatpush1.msra.mxu0 0.0
    %3643 = vmatprep.subr.mxu0 0.0
    %3644 = vmatpush1.msra.mxu0 0.0
    %3645 = vmatprep.subr.mxu0 0.0
    %3646 = vmatpush1.msra.mxu0 0.0
    %3647 = vmatprep.subr.mxu0 0.0
    %3648 = vmatpush1.msra.mxu0 0.0
    %3649 = vmatprep.subr.mxu0 0.0
    %3650 = vmatpush1.msra.mxu0 0.0
    %3651 = vmatprep.subr.mxu0 0.0
    %3652 = vmatpush1.msra.mxu0 0.0
    %3653 = vmatprep.subr.mxu0 0.0
    %3654 = vmatpush1.msra.mxu0 0.0
    %3655 = vmatprep.subr.mxu0 0.0
    %3656 = vmatpush1.msra.mxu0 0.0
    %3657 = vmatprep.subr.mxu0 0.0
    %3658 = vmatpush1.msra.mxu0 0.0
    %3659 = vmatprep.subr.mxu0 0.0
    %3660 = vmatpush1.msra.mxu0 0.0
    %3661 = vmatprep.subr.mxu0 0.0
    %3662 = vmatpush1.msra.mxu0 0.0
    %3663 = vmatprep.subr.mxu0 0.0
    %3664 = vmatpush1.msra.mxu0 0.0
    %3665 = vmatprep.subr.mxu0 0.0
    %3666 = vmatpush1.msra.mxu0 0.0
    %3667 = vmatprep.subr.mxu0 0.0
    %3668 = vmatpush1.msra.mxu0 0.0
    %3669 = vmatprep.subr.mxu0 0.0
    %3670 = vmatpush1.msra.mxu0 0.0
    %3671 = vmatprep.subr.mxu0 0.0
    %3672 = vmatpush1.msra.mxu0 0.0
    %3673 = vmatprep.subr.mxu0 0.0
    %3674 = vmatpush1.msra.mxu0 0.0
    %3675 = vmatprep.subr.mxu0 0.0
    %3676 = vmatpush1.msra.mxu0 0.0
    %3677 = vmatprep.subr.mxu0 0.0
    %3678 = vmatpush1.msra.mxu0 0.0
    %3679 = vmatprep.subr.mxu0 0.0
    %3680 = vmatpush1.msra.mxu0 0.0
    %3681 = vmatprep.subr.mxu0 0.0
    %3682 = vmatpush1.msra.mxu0 0.0
    %3683 = vmatprep.mubr.f32.mxu0 0.0
    %v3684 = vand.u32 %v3382, 4294901760
    %v3685 = vsub.f32 %v3382, %v3684
    %3686 = vmatmul.mubr.f32.gmra.mrb[0].mxu0 %v3685
    %v3687 = vpop.f32.mrb[0].mxu0
    %v3688 = vadd.f32 %v3590, %v3687
    %v3689 = vpop.f32.mrb[0].mxu0
    %3690 = vmatprep.mubr.f32.mxu0 0.0
    %v3691 = vand.u32 %v3385, 4294901760
    %v3692 = vsub.f32 %v3385, %v3691
    %3693 = vmatmul.mubr.f32.gmra.mrb[0].mxu0 %v3692
    %v3694 = vpop.f32.mrb[0].mxu0
    %v3695 = vadd.f32 %v3596, %v3694
    %v3696 = vpop.f32.mrb[0].mxu0
    %3697 = vmatprep.mubr.f32.mxu0 0.0
    %v3698 = vand.u32 %v3388, 4294901760
    %v3699 = vsub.f32 %v3388, %v3698
    %3700 = vmatmul.mubr.f32.gmra.mrb[0].mxu0 %v3699
    %v3701 = vpop.f32.mrb[0].mxu0
    %v3702 = vadd.f32 %v3602, %v3701
    %v3703 = vpop.f32.mrb[0].mxu0
    %3704 = vmatprep.mubr.f32.mxu0 0.0
    %v3705 = vand.u32 %v3391, 4294901760
    %v3706 = vsub.f32 %v3391, %v3705
    %3707 = vmatmul.mubr.f32.gmra.mrb[0].mxu0 %v3706
    %v3708 = vpop.f32.mrb[0].mxu0
    %v3709 = vadd.f32 %v3608, %v3708
    %v3710 = vpop.f32.mrb[0].mxu0
    %3711 = vdwg.mxu0
    %3712 = vmatprep.subr.mxu0 0.0
    %v3713 = vand.u32 %v263, 4294901760
    %3714 = vmatpush1.msra.mxu0 %v3713
    %3715 = vmatprep.subr.mxu0 0.0
    %v3716 = vand.u32 %v264, 4294901760
    %3717 = vmatpush1.msra.mxu0 %v3716
    %3718 = vmatprep.subr.mxu0 0.0
    %v3719 = vand.u32 %v265, 4294901760
    %3720 = vmatpush1.msra.mxu0 %v3719
    %3721 = vmatprep.subr.mxu0 0.0
    %v3722 = vand.u32 %v266, 4294901760
    %3723 = vmatpush1.msra.mxu0 %v3722
    %3724 = vmatprep.subr.mxu0 0.0
    %3725 = vmatpush1.msra.mxu0 0.0
    %3726 = vmatprep.subr.mxu0 0.0
    %3727 = vmatpush1.msra.mxu0 0.0
    %3728 = vmatprep.subr.mxu0 0.0
    %3729 = vmatpush1.msra.mxu0 0.0
    %3730 = vmatprep.subr.mxu0 0.0
    %3731 = vmatpush1.msra.mxu0 0.0
    %3732 = vmatprep.subr.mxu0 0.0
    %3733 = vmatpush1.msra.mxu0 0.0
    %3734 = vmatprep.subr.mxu0 0.0
    %3735 = vmatpush1.msra.mxu0 0.0
    %3736 = vmatprep.subr.mxu0 0.0
    %3737 = vmatpush1.msra.mxu0 0.0
    %3738 = vmatprep.subr.mxu0 0.0
    %3739 = vmatpush1.msra.mxu0 0.0
    %3740 = vmatprep.subr.mxu0 0.0
    %3741 = vmatpush1.msra.mxu0 0.0
    %3742 = vmatprep.subr.mxu0 0.0
    %3743 = vmatpush1.msra.mxu0 0.0
    %3744 = vmatprep.subr.mxu0 0.0
    %3745 = vmatpush1.msra.mxu0 0.0
    %3746 = vmatprep.subr.mxu0 0.0
    %3747 = vmatpush1.msra.mxu0 0.0
    %3748 = vmatprep.subr.mxu0 0.0
    %3749 = vmatpush1.msra.mxu0 0.0
    %3750 = vmatprep.subr.mxu0 0.0
    %3751 = vmatpush1.msra.mxu0 0.0
    %3752 = vmatprep.subr.mxu0 0.0
    %3753 = vmatpush1.msra.mxu0 0.0
    %3754 = vmatprep.subr.mxu0 0.0
    %3755 = vmatpush1.msra.mxu0 0.0
    %3756 = vmatprep.subr.mxu0 0.0
    %3757 = vmatpush1.msra.mxu0 0.0
    %3758 = vmatprep.subr.mxu0 0.0
    %3759 = vmatpush1.msra.mxu0 0.0
    %3760 = vmatprep.subr.mxu0 0.0
    %3761 = vmatpush1.msra.mxu0 0.0
    %3762 = vmatprep.subr.mxu0 0.0
    %3763 = vmatpush1.msra.mxu0 0.0
    %3764 = vmatprep.subr.mxu0 0.0
    %3765 = vmatpush1.msra.mxu0 0.0
    %3766 = vmatprep.subr.mxu0 0.0
    %3767 = vmatpush1.msra.mxu0 0.0
    %3768 = vmatprep.subr.mxu0 0.0
    %3769 = vmatpush1.msra.mxu0 0.0
    %3770 = vmatprep.subr.mxu0 0.0
    %3771 = vmatpush1.msra.mxu0 0.0
    %3772 = vmatprep.subr.mxu0 0.0
    %3773 = vmatpush1.msra.mxu0 0.0
    %3774 = vmatprep.subr.mxu0 0.0
    %3775 = vmatpush1.msra.mxu0 0.0
    %3776 = vmatprep.subr.mxu0 0.0
    %3777 = vmatpush1.msra.mxu0 0.0
    %3778 = vmatprep.subr.mxu0 0.0
    %3779 = vmatpush1.msra.mxu0 0.0
    %3780 = vmatprep.mubr.f32.mxu0 0.0
    %v3781 = vand.u32 %v3382, 4294901760
    %v3782 = vsub.f32 %v3382, %v3781
    %v3783 = vand.u32 %v3782, 4294901760
    %3784 = vmatmul.mubr.f32.gmra.mrb[0].mxu0 %v3783
    %v3785 = vpop.f32.mrb[0].mxu0
    %v3786 = vadd.f32 %v3688, %v3785
    %v3787 = vpop.f32.mrb[0].mxu0
    %3788 = vmatprep.mubr.f32.mxu0 0.0
    %v3789 = vand.u32 %v3385, 4294901760
    %v3790 = vsub.f32 %v3385, %v3789
    %v3791 = vand.u32 %v3790, 4294901760
    %3792 = vmatmul.mubr.f32.gmra.mrb[0].mxu0 %v3791
    %v3793 = vpop.f32.mrb[0].mxu0
    %v3794 = vadd.f32 %v3695, %v3793
    %v3795 = vpop.f32.mrb[0].mxu0
    %3796 = vmatprep.mubr.f32.mxu0 0.0
    %v3797 = vand.u32 %v3388, 4294901760
    %v3798 = vsub.f32 %v3388, %v3797
    %v3799 = vand.u32 %v3798, 4294901760
    %3800 = vmatmul.mubr.f32.gmra.mrb[0].mxu0 %v3799
    %v3801 = vpop.f32.mrb[0].mxu0
    %v3802 = vadd.f32 %v3702, %v3801
    %v3803 = vpop.f32.mrb[0].mxu0
    %3804 = vmatprep.mubr.f32.mxu0 0.0
    %v3805 = vand.u32 %v3391, 4294901760
    %v3806 = vsub.f32 %v3391, %v3805
    %v3807 = vand.u32 %v3806, 4294901760
    %3808 = vmatmul.mubr.f32.gmra.mrb[0].mxu0 %v3807
    %v3809 = vpop.f32.mrb[0].mxu0
    %v3810 = vadd.f32 %v3709, %v3809
    %v3811 = vpop.f32.mrb[0].mxu0
    %3812 = vdwg.mxu0
    %3813 = vmatprep.subr.mxu0 0.0
    %v3814 = vand.u32 %v263, 4294901760
    %v3815 = vsub.f32 %v263, %v3814
    %v3816 = vand.u32 %v3815, 4294901760
    %3817 = vmatpush1.msra.mxu0 %v3816
    %3818 = vmatprep.subr.mxu0 0.0
    %v3819 = vand.u32 %v264, 4294901760
    %v3820 = vsub.f32 %v264, %v3819
    %v3821 = vand.u32 %v3820, 4294901760
    %3822 = vmatpush1.msra.mxu0 %v3821
    %3823 = vmatprep.subr.mxu0 0.0
    %v3824 = vand.u32 %v265, 4294901760
    %v3825 = vsub.f32 %v265, %v3824
    %v3826 = vand.u32 %v3825, 4294901760
    %3827 = vmatpush1.msra.mxu0 %v3826
    %3828 = vmatprep.subr.mxu0 0.0
    %v3829 = vand.u32 %v266, 4294901760
    %v3830 = vsub.f32 %v266, %v3829
    %v3831 = vand.u32 %v3830, 4294901760
    %3832 = vmatpush1.msra.mxu0 %v3831
    %3833 = vmatprep.subr.mxu0 0.0
    %3834 = vmatpush1.msra.mxu0 0.0
    %3835 = vmatprep.subr.mxu0 0.0
    %3836 = vmatpush1.msra.mxu0 0.0
    %3837 = vmatprep.subr.mxu0 0.0
    %3838 = vmatpush1.msra.mxu0 0.0
    %3839 = vmatprep.subr.mxu0 0.0
    %3840 = vmatpush1.msra.mxu0 0.0
    %3841 = vmatprep.subr.mxu0 0.0
    %3842 = vmatpush1.msra.mxu0 0.0
    %3843 = vmatprep.subr.mxu0 0.0
    %3844 = vmatpush1.msra.mxu0 0.0
    %3845 = vmatprep.subr.mxu0 0.0
    %3846 = vmatpush1.msra.mxu0 0.0
    %3847 = vmatprep.subr.mxu0 0.0
    %3848 = vmatpush1.msra.mxu0 0.0
    %3849 = vmatprep.subr.mxu0 0.0
    %3850 = vmatpush1.msra.mxu0 0.0
    %3851 = vmatprep.subr.mxu0 0.0
    %3852 = vmatpush1.msra.mxu0 0.0
    %3853 = vmatprep.subr.mxu0 0.0
    %3854 = vmatpush1.msra.mxu0 0.0
    %3855 = vmatprep.subr.mxu0 0.0
    %3856 = vmatpush1.msra.mxu0 0.0
    %3857 = vmatprep.subr.mxu0 0.0
    %3858 = vmatpush1.msra.mxu0 0.0
    %3859 = vmatprep.subr.mxu0 0.0
    %3860 = vmatpush1.msra.mxu0 0.0
    %3861 = vmatprep.subr.mxu0 0.0
    %3862 = vmatpush1.msra.mxu0 0.0
    %3863 = vmatprep.subr.mxu0 0.0
    %3864 = vmatpush1.msra.mxu0 0.0
    %3865 = vmatprep.subr.mxu0 0.0
    %3866 = vmatpush1.msra.mxu0 0.0
    %3867 = vmatprep.subr.mxu0 0.0
    %3868 = vmatpush1.msra.mxu0 0.0
    %3869 = vmatprep.subr.mxu0 0.0
    %3870 = vmatpush1.msra.mxu0 0.0
    %3871 = vmatprep.subr.mxu0 0.0
    %3872 = vmatpush1.msra.mxu0 0.0
    %3873 = vmatprep.subr.mxu0 0.0
    %3874 = vmatpush1.msra.mxu0 0.0
    %3875 = vmatprep.subr.mxu0 0.0
    %3876 = vmatpush1.msra.mxu0 0.0
    %3877 = vmatprep.subr.mxu0 0.0
    %3878 = vmatpush1.msra.mxu0 0.0
    %3879 = vmatprep.subr.mxu0 0.0
    %3880 = vmatpush1.msra.mxu0 0.0
    %3881 = vmatprep.subr.mxu0 0.0
    %3882 = vmatpush1.msra.mxu0 0.0
    %3883 = vmatprep.subr.mxu0 0.0
    %3884 = vmatpush1.msra.mxu0 0.0
    %3885 = vmatprep.subr.mxu0 0.0
    %3886 = vmatpush1.msra.mxu0 0.0
    %3887 = vmatprep.subr.mxu0 0.0
    %3888 = vmatpush1.msra.mxu0 0.0
    %3889 = vmatprep.mubr.f32.mxu0 0.0
    %v3890 = vand.u32 %v3382, 4294901760
    %3891 = vmatmul.mubr.f32.gmra.mrb[0].mxu0 %v3890
    %v3892 = vpop.f32.mrb[0].mxu0
    %v3893 = vadd.f32 %v3786, %v3892
    %v3894 = vpop.f32.mrb[0].mxu0
    %3895 = vmatprep.mubr.f32.mxu0 0.0
    %v3896 = vand.u32 %v3385, 4294901760
    %3897 = vmatmul.mubr.f32.gmra.mrb[0].mxu0 %v3896
    %v3898 = vpop.f32.mrb[0].mxu0
    %v3899 = vadd.f32 %v3794, %v3898
    %v3900 = vpop.f32.mrb[0].mxu0
    %3901 = vmatprep.mubr.f32.mxu0 0.0
    %v3902 = vand.u32 %v3388, 4294901760
    %3903 = vmatmul.mubr.f32.gmra.mrb[0].mxu0 %v3902
    %v3904 = vpop.f32.mrb[0].mxu0
    %v3905 = vadd.f32 %v3802, %v3904
    %v3906 = vpop.f32.mrb[0].mxu0
    %3907 = vmatprep.mubr.f32.mxu0 0.0
    %v3908 = vand.u32 %v3391, 4294901760
    %3909 = vmatmul.mubr.f32.gmra.mrb[0].mxu0 %v3908
    %v3910 = vpop.f32.mrb[0].mxu0
    %v3911 = vadd.f32 %v3810, %v3910
    %v3912 = vpop.f32.mrb[0].mxu0
    %3913 = vdwg.mxu0
    %3914 = vmatprep.subr.mxu0 0.0
    %v3915 = vand.u32 %v263, 4294901760
    %3916 = vmatpush1.msra.mxu0 %v3915
    %3917 = vmatprep.subr.mxu0 0.0
    %v3918 = vand.u32 %v264, 4294901760
    %3919 = vmatpush1.msra.mxu0 %v3918
    %3920 = vmatprep.subr.mxu0 0.0
    %v3921 = vand.u32 %v265, 4294901760
    %3922 = vmatpush1.msra.mxu0 %v3921
    %3923 = vmatprep.subr.mxu0 0.0
    %v3924 = vand.u32 %v266, 4294901760
    %3925 = vmatpush1.msra.mxu0 %v3924
    %3926 = vmatprep.subr.mxu0 0.0
    %3927 = vmatpush1.msra.mxu0 0.0
    %3928 = vmatprep.subr.mxu0 0.0
    %3929 = vmatpush1.msra.mxu0 0.0
    %3930 = vmatprep.subr.mxu0 0.0
    %3931 = vmatpush1.msra.mxu0 0.0
    %3932 = vmatprep.subr.mxu0 0.0
    %3933 = vmatpush1.msra.mxu0 0.0
    %3934 = vmatprep.subr.mxu0 0.0
    %3935 = vmatpush1.msra.mxu0 0.0
    %3936 = vmatprep.subr.mxu0 0.0
    %3937 = vmatpush1.msra.mxu0 0.0
    %3938 = vmatprep.subr.mxu0 0.0
    %3939 = vmatpush1.msra.mxu0 0.0
    %3940 = vmatprep.subr.mxu0 0.0
    %3941 = vmatpush1.msra.mxu0 0.0
    %3942 = vmatprep.subr.mxu0 0.0
    %3943 = vmatpush1.msra.mxu0 0.0
    %3944 = vmatprep.subr.mxu0 0.0
    %3945 = vmatpush1.msra.mxu0 0.0
    %3946 = vmatprep.subr.mxu0 0.0
    %3947 = vmatpush1.msra.mxu0 0.0
    %3948 = vmatprep.subr.mxu0 0.0
    %3949 = vmatpush1.msra.mxu0 0.0
    %3950 = vmatprep.subr.mxu0 0.0
    %3951 = vmatpush1.msra.mxu0 0.0
    %3952 = vmatprep.subr.mxu0 0.0
    %3953 = vmatpush1.msra.mxu0 0.0
    %3954 = vmatprep.subr.mxu0 0.0
    %3955 = vmatpush1.msra.mxu0 0.0
    %3956 = vmatprep.subr.mxu0 0.0
    %3957 = vmatpush1.msra.mxu0 0.0
    %3958 = vmatprep.subr.mxu0 0.0
    %3959 = vmatpush1.msra.mxu0 0.0
    %3960 = vmatprep.subr.mxu0 0.0
    %3961 = vmatpush1.msra.mxu0 0.0
    %3962 = vmatprep.subr.mxu0 0.0
    %3963 = vmatpush1.msra.mxu0 0.0
    %3964 = vmatprep.subr.mxu0 0.0
    %3965 = vmatpush1.msra.mxu0 0.0
    %3966 = vmatprep.subr.mxu0 0.0
    %3967 = vmatpush1.msra.mxu0 0.0
    %3968 = vmatprep.subr.mxu0 0.0
    %3969 = vmatpush1.msra.mxu0 0.0
    %3970 = vmatprep.subr.mxu0 0.0
    %3971 = vmatpush1.msra.mxu0 0.0
    %3972 = vmatprep.subr.mxu0 0.0
    %3973 = vmatpush1.msra.mxu0 0.0
    %3974 = vmatprep.subr.mxu0 0.0
    %3975 = vmatpush1.msra.mxu0 0.0
    %3976 = vmatprep.subr.mxu0 0.0
    %3977 = vmatpush1.msra.mxu0 0.0
    %3978 = vmatprep.subr.mxu0 0.0
    %3979 = vmatpush1.msra.mxu0 0.0
    %3980 = vmatprep.subr.mxu0 0.0
    %3981 = vmatpush1.msra.mxu0 0.0
    %3982 = vmatprep.mubr.f32.mxu0 0.0
    %v3983 = vand.u32 %v3382, 4294901760
    %3984 = vmatmul.mubr.f32.gmra.mrb[0].mxu0 %v3983
    %v3985 = vpop.f32.mrb[0].mxu0
    %v3986 = vadd.f32 %v3893, %v3985
    %v3987 = vpop.f32.mrb[0].mxu0
    %3988 = vmatprep.mubr.f32.mxu0 0.0
    %v3989 = vand.u32 %v3385, 4294901760
    %3990 = vmatmul.mubr.f32.gmra.mrb[0].mxu0 %v3989
    %v3991 = vpop.f32.mrb[0].mxu0
    %v3992 = vadd.f32 %v3899, %v3991
    %v3993 = vpop.f32.mrb[0].mxu0
    %3994 = vmatprep.mubr.f32.mxu0 0.0
    %v3995 = vand.u32 %v3388, 4294901760
    %3996 = vmatmul.mubr.f32.gmra.mrb[0].mxu0 %v3995
    %v3997 = vpop.f32.mrb[0].mxu0
    %v3998 = vadd.f32 %v3905, %v3997
    %v3999 = vpop.f32.mrb[0].mxu0
    %4000 = vmatprep.mubr.f32.mxu0 0.0
    %v4001 = vand.u32 %v3391, 4294901760
    %4002 = vmatmul.mubr.f32.gmra.mrb[0].mxu0 %v4001
    %v4003 = vpop.f32.mrb[0].mxu0
    %v4004 = vadd.f32 %v3911, %v4003
    %v4005 = vpop.f32.mrb[0].mxu0
    %4006 = vdwg.mxu0
    %v4007 = vmul.f32 %v3349, 1.442695
    %v4008 = vpow.pop %v4007
    %v4009 = vmul.f32 %v3355, 1.442695
    %v4010 = vpow.pop %v4009
    %v4011 = vmul.f32 %v3361, 1.442695
    %v4012 = vpow.pop %v4011
    %v4013 = vmul.f32 %v3367, 1.442695
    %v4014 = vpow.pop %v4013
    %v4015 = vmul.f32 %v873, 1.000001
    %v4016 = vmul.f32 %v879, 1.000001
    %v4017 = vmul.f32 %v885, 1.000001
    %v4018 = vmul.f32 %v891, 1.000001
    %v4019 = vsub.f32 %v4015, %v4008
    %v4020 = vsub.f32 %v4016, %v4010
    %v4021 = vsub.f32 %v4017, %v4012
    %v4022 = vsub.f32 %v4018, %v4014
    %v4023 = vlog2.pop %v4019
    %v4024 = vmul.f32 %v4023, 0.6931472
    %v4025 = vlog2.pop %v4020
    %v4026 = vmul.f32 %v4025, 0.6931472
    %v4027 = vlog2.pop %v4021
    %v4028 = vmul.f32 %v4027, 0.6931472
    %v4029 = vlog2.pop %v4022
    %v4030 = vmul.f32 %v4029, 0.6931472
    %v4031 = vsub.f32 %v895, %v4024
    %v4032 = vsub.f32 %v897, %v4026
    %v4033 = vsub.f32 %v899, %v4028
    %v4034 = vsub.f32 %v901, %v4030
    %v4035 = vmul.f32 %v895, %v87
    %v4036 = vmul.f32 %v897, %v88
    %v4037 = vmul.f32 %v899, %v89
    %v4038 = vmul.f32 %v901, %v90
    %v4039 = vsel %vm903, %v4035, 0.0
    %v4040 = vsel %vm903, %v4036, 0.0
    %v4041 = vadd.f32 %v4039, %v4040
    %v4042 = vsel %vm903, %v4037, 0.0
    %v4043 = vadd.f32 %v4041, %v4042
    %v4044 = vsel %vm903, %v4038, 0.0
    %v4045 = vadd.f32 %v4043, %v4044
    %4046 = vadd.xlane.f32.xlu0 %v4045
    %v4047 = vpop.xlane.xlu0 %4046
    %v4048 = vrot.slane %v4047, 4
    %v4049 = vadd.f32 %v4047, %v4048
    %v4050 = vrot.slane %v4049, 2
    %v4051 = vadd.f32 %v4049, %v4050
    %v4052 = vrot.slane %v4051, 1
    %v4053 = vadd.f32 %v4051, %v4052
    %s4054 = vtos %v4053
    %s4055 = scalar_lea.smem [#allocation2], 0
    %4056 = sst [smem:[%s4055]] %s4054
    %v4057 = vmul.f32 %v895, %v71
    %v4058 = vmul.f32 %v897, %v72
    %v4059 = vmul.f32 %v899, %v73
    %v4060 = vmul.f32 %v901, %v74
    %v4061 = vsel %vm903, %v4057, 0.0
    %v4062 = vsel %vm903, %v4058, 0.0
    %v4063 = vadd.f32 %v4061, %v4062
    %v4064 = vsel %vm903, %v4059, 0.0
    %v4065 = vadd.f32 %v4063, %v4064
    %v4066 = vsel %vm903, %v4060, 0.0
    %v4067 = vadd.f32 %v4065, %v4066
    %4068 = vadd.xlane.f32.xlu0 %v4067
    %v4069 = vpop.xlane.xlu0 %4068
    %v4070 = vrot.slane %v4069, 4
    %v4071 = vadd.f32 %v4069, %v4070
    %v4072 = vrot.slane %v4071, 2
    %v4073 = vadd.f32 %v4071, %v4072
    %v4074 = vrot.slane %v4073, 1
    %v4075 = vadd.f32 %v4073, %v4074
    %s4076 = vtos %v4075
    %s4077 = scalar_lea.smem [#allocation2], 1
    %4078 = sst [smem:[%s4077]] %s4076
    %v4079 = vmul.f32 %v2123, %v87
    %v4080 = vmul.f32 %v2129, %v88
    %v4081 = vmul.f32 %v2135, %v89
    %v4082 = vmul.f32 %v2141, %v90
    %v4083 = vsel %vm903, %v4079, 0.0
    %v4084 = vsel %vm903, %v4080, 0.0
    %v4085 = vadd.f32 %v4083, %v4084
    %v4086 = vsel %vm903, %v4081, 0.0
    %v4087 = vadd.f32 %v4085, %v4086
    %v4088 = vsel %vm903, %v4082, 0.0
    %v4089 = vadd.f32 %v4087, %v4088
    %4090 = vadd.xlane.f32.xlu0 %v4089
    %v4091 = vpop.xlane.xlu0 %4090
    %v4092 = vrot.slane %v4091, 4
    %v4093 = vadd.f32 %v4091, %v4092
    %v4094 = vrot.slane %v4093, 2
    %v4095 = vadd.f32 %v4093, %v4094
    %v4096 = vrot.slane %v4095, 1
    %v4097 = vadd.f32 %v4095, %v4096
    %s4098 = vtos %v4097
    %s4099 = scalar_lea.smem [#allocation2], 2
    %4100 = sst [smem:[%s4099]] %s4098
    %v4101 = vmul.f32 %v2123, %v71
    %v4102 = vmul.f32 %v2129, %v72
    %v4103 = vmul.f32 %v2135, %v73
    %v4104 = vmul.f32 %v2141, %v74
    %v4105 = vsel %vm903, %v4101, 0.0
    %v4106 = vsel %vm903, %v4102, 0.0
    %v4107 = vadd.f32 %v4105, %v4106
    %v4108 = vsel %vm903, %v4103, 0.0
    %v4109 = vadd.f32 %v4107, %v4108
    %v4110 = vsel %vm903, %v4104, 0.0
    %v4111 = vadd.f32 %v4109, %v4110
    %4112 = vadd.xlane.f32.xlu0 %v4111
    %v4113 = vpop.xlane.xlu0 %4112
    %v4114 = vrot.slane %v4113, 4
    %v4115 = vadd.f32 %v4113, %v4114
    %v4116 = vrot.slane %v4115, 2
    %v4117 = vadd.f32 %v4115, %v4116
    %v4118 = vrot.slane %v4117, 1
    %v4119 = vadd.f32 %v4117, %v4118
    %s4120 = vtos %v4119
    %s4121 = scalar_lea.smem [#allocation2], 3
    %4122 = sst [smem:[%s4121]] %s4120
    %v4123 = vmul.f32 %v4031, %v3986
    %v4124 = vmul.f32 %v4032, %v3992
    %v4125 = vmul.f32 %v4033, %v3998
    %v4126 = vmul.f32 %v4034, %v4004
    %v4127 = vmul.f32 %v4123, %v71
    %v4128 = vmul.f32 %v4124, %v72
    %v4129 = vmul.f32 %v4125, %v73
    %v4130 = vmul.f32 %v4126, %v74
    %v4131 = vsel %vm903, %v4127, 0.0
    %v4132 = vsel %vm903, %v4128, 0.0
    %v4133 = vadd.f32 %v4131, %v4132
    %v4134 = vsel %vm903, %v4129, 0.0
    %v4135 = vadd.f32 %v4133, %v4134
    %v4136 = vsel %vm903, %v4130, 0.0
    %v4137 = vadd.f32 %v4135, %v4136
    %4138 = vadd.xlane.f32.xlu0 %v4137
    %v4139 = vpop.xlane.xlu0 %4138
    %v4140 = vrot.slane %v4139, 4
    %v4141 = vadd.f32 %v4139, %v4140
    %v4142 = vrot.slane %v4141, 2
    %v4143 = vadd.f32 %v4141, %v4142
    %v4144 = vrot.slane %v4143, 1
    %v4145 = vadd.f32 %v4143, %v4144
    %s4146 = vtos %v4145
    %s4147 = scalar_lea.smem [#allocation2], 4
    %4148 = sst [smem:[%s4147]] %s4146
    %v4149 = vmul.f32 %v3986, %v71
    %v4150 = vmul.f32 %v3992, %v72
    %v4151 = vmul.f32 %v3998, %v73
    %v4152 = vmul.f32 %v4004, %v74
    %v4153 = vsel %vm903, %v4149, 0.0
    %v4154 = vsel %vm903, %v4150, 0.0
    %v4155 = vadd.f32 %v4153, %v4154
    %v4156 = vsel %vm903, %v4151, 0.0
    %v4157 = vadd.f32 %v4155, %v4156
    %v4158 = vsel %vm903, %v4152, 0.0
    %v4159 = vadd.f32 %v4157, %v4158
    %4160 = vadd.xlane.f32.xlu0 %v4159
    %v4161 = vpop.xlane.xlu0 %4160
    %v4162 = vrot.slane %v4161, 4
    %v4163 = vadd.f32 %v4161, %v4162
    %v4164 = vrot.slane %v4163, 2
    %v4165 = vadd.f32 %v4163, %v4164
    %v4166 = vrot.slane %v4165, 1
    %v4167 = vadd.f32 %v4165, %v4166
    %s4168 = vtos %v4167
    %s4169 = scalar_lea.smem [#allocation2], 5
    %4170 = sst [smem:[%s4169]] %s4168
    %v4171 = vsub.f32 %v895, %v3349
    %v4172 = vsub.f32 %v897, %v3355
    %v4173 = vsub.f32 %v899, %v3361
    %v4174 = vsub.f32 %v901, %v3367
    %v4175 = vmul.f32 %v4171, %v71
    %v4176 = vmul.f32 %v4172, %v72
    %v4177 = vmul.f32 %v4173, %v73
    %v4178 = vmul.f32 %v4174, %v74
    %v4179 = vsel %vm903, %v4175, 0.0
    %v4180 = vsel %vm903, %v4176, 0.0
    %v4181 = vadd.f32 %v4179, %v4180
    %v4182 = vsel %vm903, %v4177, 0.0
    %v4183 = vadd.f32 %v4181, %v4182
    %v4184 = vsel %vm903, %v4178, 0.0
    %v4185 = vadd.f32 %v4183, %v4184
    %4186 = vadd.xlane.f32.xlu0 %v4185
    %v4187 = vpop.xlane.xlu0 %4186
    %v4188 = vrot.slane %v4187, 4
    %v4189 = vadd.f32 %v4187, %v4188
    %v4190 = vrot.slane %v4189, 2
    %v4191 = vadd.f32 %v4189, %v4190
    %v4192 = vrot.slane %v4191, 1
    %v4193 = vadd.f32 %v4191, %v4192
    %s4194 = vtos %v4193
    %s4195 = scalar_lea.smem [#allocation2], 6
    %4196 = sst [smem:[%s4195]] %s4194
    %v4197 = vsel %vm903, %v71, 0.0
    %v4198 = vsel %vm903, %v72, 0.0
    %v4199 = vadd.f32 %v4197, %v4198
    %v4200 = vsel %vm903, %v73, 0.0
    %v4201 = vadd.f32 %v4199, %v4200
    %v4202 = vsel %vm903, %v74, 0.0
    %v4203 = vadd.f32 %v4201, %v4202
    %4204 = vadd.xlane.f32.xlu0 %v4203
    %v4205 = vpop.xlane.xlu0 %4204
    %v4206 = vrot.slane %v4205, 4
    %v4207 = vadd.f32 %v4205, %v4206
    %v4208 = vrot.slane %v4207, 2
    %v4209 = vadd.f32 %v4207, %v4208
    %v4210 = vrot.slane %v4209, 1
    %v4211 = vadd.f32 %v4209, %v4210
    %s4212 = vtos %v4211
    %s4213 = scalar_lea.smem [#allocation2], 7
    %4214 = sst [smem:[%s4213]] %s4212
    // Predicated region
    $region26: #{tpu_custom_call.1} parent=1 // pred_check
      _
    $region27: #{tpu_custom_call.1} parent=1 // pred_check_branch
      %4216 = sbr.rel (0) target = $region29
    $region28: #{tpu_custom_call.1} parent=1 // pred_region
      %s4218 = ssub.s32 16, 16
      %4219 = vsyncadd [#allocation3], %s4218
      %4222 = dma.smem_to_hbm [#allocation2], 16, %s6, [#allocation3]
    $region29: #{tpu_custom_call.1} parent=1 // pred_fallthru
      _
    // Predicated region
    $region30: #{tpu_custom_call.1} parent=1 // pred_check
      _
    $region31: #{tpu_custom_call.1} parent=1 // pred_check_branch
      %4224 = sbr.rel (0) target = $region33
    $region32: #{tpu_custom_call.1} parent=1 // pred_region
      %4225 = dma.done [#allocation3], 16
    $region33: #{tpu_custom_call.1} parent=1 // pred_fallthru
      _
    %4226 = sfence
    %4227 = vsyncpa [#allocation3], 1

</llo_original>
